<compile_context>
chip_gen: v7x
topology: tpu7x:2x2x1
jax: 0.10.0
libtpu: 0.0.40
codegen_flags: <defaults>
</compile_context>

<pallas_src>
import math

import jax
import jax.numpy as jnp
import numpy as np
from jax import lax
from jax.experimental import pallas as pl
from jax.experimental.pallas import tpu as pltpu


# ------------------------------- Pallas kernel ------------------------------ #

def lstm_fused_kernel(x_ref, weff_ref, beff_ref, whh_ref, wl_ref, bl_ref,
                      y_ref, h_scr, c_scr, hall_scr, gx_scr):
    # Per grid step (one batch element):
    #   x_ref:   (1, T, C*W)  raw input pixels, time on axis 1, (c,w) flattened
    #   weff_ref:(C*W, 4H)    conv_head folded into W_ih   (gate order i,f,g,o)
    #   beff_ref:(1, 4H)      b_ih + b_hh + conv-bias contribution
    #   whh_ref: (H, 4H)      PyTorch weight_hh_l0.T
    #   wl_ref:  (H, O)       linear.weight.T     bl_ref: (1, O)
    #   y_ref:   (1, T, O)
    T = x_ref.shape[1]
    H = h_scr.shape[1]

    # Hoisted input projection: one MXU matmul covering every timestep.
    gx_scr[...] = (
        jnp.dot(x_ref[0], weff_ref[...], preferred_element_type=jnp.float32)
        + beff_ref[...]
    )                                                    # (T, 4H)

    h_scr[...] = jnp.zeros_like(h_scr)
    c_scr[...] = jnp.zeros_like(c_scr)

    def step(t, carry):
        h = h_scr[...]                                   # (1, H)
        c = c_scr[...]
        gates = gx_scr[pl.ds(t, 1), :] + jnp.dot(
            h, whh_ref[...], preferred_element_type=jnp.float32)   # (1, 4H)
        # Nonlinearities on the whole 4H-wide vector (EUP), then slice gates.
        sg = jax.nn.sigmoid(gates)
        th = jnp.tanh(gates)
        i_g = sg[:, 0 * H:1 * H]
        f_g = sg[:, 1 * H:2 * H]
        g_g = th[:, 2 * H:3 * H]
        o_g = sg[:, 3 * H:4 * H]
        c_new = f_g * c + i_g * g_g
        h_new = o_g * jnp.tanh(c_new)
        h_scr[...] = h_new
        c_scr[...] = c_new
        hall_scr[pl.ds(t, 1), :] = h_new
        return carry

    # Short, static trip count: fully unroll so the scheduler can overlap
    # MXU / EUP / VPU work across timesteps.
    lax.fori_loop(0, T, step, 0, unroll=True)

    # Batched Linear head: one matmul + one bulk store for the whole sequence.
    y = (jnp.dot(hall_scr[...], wl_ref[...], preferred_element_type=jnp.float32)
         + bl_ref[...])                                  # (T, O)
    y_ref[...] = y[None]


# ------------------------------- Model forward ------------------------------ #

def lstm_model_forward(x, params, hidden_size, output):
    """Equivalent of LSTM_Model.forward(x) for x in NCHW (conv_head = 1x1 conv)."""
    B, C, Hs, W = x.shape
    T = Hs
    OC = params['conv_w'].shape[0]
    H = hidden_size
    O = output
    CW = C * W

    # Fold conv_head (1x1 conv over channels) + reshape + W_ih into one
    # effective input projection:
    #   feats[b,t,oc*W+w] = sum_c x[b,c,t,w]*conv_w[oc,c] + conv_b[oc]
    #   gates_x = feats @ W_ih.T  ==  x_(b,t,(c,w)) @ w_eff + b_fold
    wih_t = params['w_ih'].T.reshape(OC, W, 4 * H)                     # (OC, W, 4H)
    w_eff = jnp.einsum('oc,owj->cwj', params['conv_w'], wih_t).reshape(CW, 4 * H)
    b_fold = (params['b_ih'] + params['b_hh']
              + jnp.einsum('o,owj->j', params['conv_b'], wih_t))[None, :]
    whh_t = params['w_hh'].T                                           # (H, 4H)
    wl_t = params['w_lin'].T                                           # (H, O)
    bl = params['b_lin'][None, :]                                      # (1, O)

    # Input layout prep only (no compute): NCHW -> (B, T, C*W), time-on-axis-1.
    x_btf = jnp.transpose(x, (0, 2, 1, 3)).reshape(B, T, CW)

    cost = pl.CostEstimate(
        flops=2 * B * T * (CW * 4 * H + H * 4 * H + H * O),
        transcendentals=B * T * 9 * H,
        bytes_accessed=4 * (x_btf.size + w_eff.size + b_fold.size
                            + whh_t.size + wl_t.size + bl.size + B * T * O),
    )

    y = pl.pallas_call(
        lstm_fused_kernel,
        out_shape=jax.ShapeDtypeStruct((B, T, O), jnp.float32),
        grid_spec=pltpu.PrefetchScalarGridSpec(
            num_scalar_prefetch=0,
            grid=(B,),
            in_specs=[
                pl.BlockSpec((1, T, CW), lambda b: (b, 0, 0)),
                pl.BlockSpec((CW, 4 * H), lambda b: (0, 0)),
                pl.BlockSpec((1, 4 * H), lambda b: (0, 0)),
                pl.BlockSpec((H, 4 * H), lambda b: (0, 0)),
                pl.BlockSpec((H, O), lambda b: (0, 0)),
                pl.BlockSpec((1, O), lambda b: (0, 0)),
            ],
            out_specs=pl.BlockSpec((1, T, O), lambda b: (b, 0, 0)),
            scratch_shapes=[
                pltpu.VMEM((1, H), jnp.float32),       # h state
                pltpu.VMEM((1, H), jnp.float32),       # c state
                pltpu.VMEM((T, H), jnp.float32),       # all hidden states
                pltpu.VMEM((T, 4 * H), jnp.float32),   # hoisted input gates
            ],
        ),
        compiler_params=pltpu.CompilerParams(
            dimension_semantics=("parallel",)),        # batch across TCs (v7x)
        cost_estimate=cost,
    )(x_btf, w_eff, b_fold, whh_t, wl_t, bl)
    return y                                           # (B, time_step, output)


# ------------------------- Deterministic parameter init --------------------- #

def init_params(key, C, OC, input_size, hidden_size, output):
    ks = jax.random.split(key, 8)

    def u(k, shape, bound):
        return jax.random.uniform(k, shape, jnp.float32, -bound, bound)

    bc = 1.0 / math.sqrt(C)
    bh = 1.0 / math.sqrt(hidden_size)
    return dict(
        conv_w=u(ks[0], (OC, C), bc),                      # Conv2d(C, OC, 1) weight
        conv_b=u(ks[1], (OC,), bc),
        w_ih=u(ks[2], (4 * hidden_size, input_size), bh),  # lstm.weight_ih_l0
        w_hh=u(ks[3], (4 * hidden_size, hidden_size), bh), # lstm.weight_hh_l0
        b_ih=u(ks[4], (4 * hidden_size,), bh),
        b_hh=u(ks[5], (4 * hidden_size,), bh),
        w_lin=u(ks[6], (output, hidden_size), bh),         # linear.weight
        b_lin=u(ks[7], (output,), bh),
    )


# ------------------------------ Pure-JAX reference -------------------------- #

def reference_forward(x, params, hidden_size, output):
    B, C, Hs, W = x.shape
    OC = params['conv_w'].shape[0]
    conv = (jnp.einsum('bchw,oc->bohw', x, params['conv_w'])
            + params['conv_b'][None, :, None, None])
    feats = jnp.transpose(conv, (0, 2, 1, 3)).reshape(B, Hs, OC * W)

    wih, whh = params['w_ih'], params['w_hh']
    bih, bhh = params['b_ih'], params['b_hh']
    Hd = hidden_size

    def step(carry, x_t):
        h, c = carry
        gates = x_t @ wih.T + bih + h @ whh.T + bhh
        i = jax.nn.sigmoid(gates[:, :Hd])
        f = jax.nn.sigmoid(gates[:, Hd:2 * Hd])
        g = jnp.tanh(gates[:, 2 * Hd:3 * Hd])
        o = jax.nn.sigmoid(gates[:, 3 * Hd:])
        c = f * c + i * g
        h = o * jnp.tanh(c)
        return (h, c), h

    h0 = jnp.zeros((B, Hd), jnp.float32)
    _, hs = lax.scan(step, (h0, h0), jnp.transpose(feats, (1, 0, 2)))
    hs = jnp.transpose(hs, (1, 0, 2)).reshape(B * Hs, Hd)
    y = hs @ params['w_lin'].T + params['b_lin']
    return y.reshape(B, Hs, output)


# ------------------------------------ main ---------------------------------- #

if __name__ == "__main__":
    # Module-default shapes: time_step=16, input_size=128, hidden_size=64, output=3.
    B, C, HS, W = 2, 4, 16, 16      # x: NCHW; time axis = H
    OC = 8                          # conv_head output channels
    time_step = HS                  # 16
    input_size = OC * W             # 128
    hidden_size = 64
    output = 3

    key = jax.random.PRNGKey(0)
    kx, kp = jax.random.split(key)
    x = jax.random.normal(kx, (B, C, HS, W), jnp.float32)
    params = init_params(kp, C, OC, input_size, hidden_size, output)

    fwd = jax.jit(lambda xx: lstm_model_forward(xx, params, hidden_size, output))
    y = jax.block_until_ready(fwd(x))

    assert y.shape == (B, time_step, output)
    y_ref = reference_forward(x, params, hidden_size, output)
    np.testing.assert_allclose(np.asarray(y), np.asarray(y_ref),
                               rtol=1e-4, atol=1e-5)
    # TODO(synk): training-side members (Adam optimizer, MSE loss, save/load)
    # have no Pallas forward-pass equivalent and are intentionally omitted.
    print("KERNEL_OK")
</pallas_src>

<mosaic_0001>
module attributes {stable_mosaic.version = 11 : i64} {
  func.func @lstm_fused_kernel(%arg0: i32, %arg1: memref<1x16x64xf32, #tpu.memory_space<vmem>>, %arg2: memref<64x256xf32, #tpu.memory_space<vmem>>, %arg3: memref<1x256xf32, #tpu.memory_space<vmem>>, %arg4: memref<64x256xf32, #tpu.memory_space<vmem>>, %arg5: memref<64x3xf32, #tpu.memory_space<vmem>>, %arg6: memref<1x3xf32, #tpu.memory_space<vmem>>, %arg7: memref<1x16x3xf32, #tpu.memory_space<vmem>>, %arg8: memref<1x64xf32, #tpu.memory_space<vmem>>, %arg9: memref<1x64xf32, #tpu.memory_space<vmem>>, %arg10: memref<16x64xf32, #tpu.memory_space<vmem>>, %arg11: memref<16x256xf32, #tpu.memory_space<vmem>>) attributes {dimension_semantics = [#tpu.dimension_semantics<parallel>], iteration_bounds = array<i64: 2>, scalar_prefetch = 0 : i64, scratch_operands = 4 : i64, tpu.core_type = #tpu.core_type<tc>, window_params = [{transform_indices = @transform_0, window_bounds = array<i64: 1, 16, 64>}, {pipeline_mode = #tpu.pipeline_mode<synchronous>, transform_indices = @transform_1, window_bounds = array<i64: 64, 256>}, {pipeline_mode = #tpu.pipeline_mode<synchronous>, transform_indices = @transform_2, window_bounds = array<i64: 1, 256>}, {pipeline_mode = #tpu.pipeline_mode<synchronous>, transform_indices = @transform_3, window_bounds = array<i64: 64, 256>}, {pipeline_mode = #tpu.pipeline_mode<synchronous>, transform_indices = @transform_4, window_bounds = array<i64: 64, 3>}, {pipeline_mode = #tpu.pipeline_mode<synchronous>, transform_indices = @transform_5, window_bounds = array<i64: 1, 3>}, {transform_indices = @transform_6, window_bounds = array<i64: 1, 16, 3>}]} {
    %c0 = arith.constant 0 : index
    %c0_0 = arith.constant 0 : index
    %c0_1 = arith.constant 0 : index
    %0 = vector.load %arg1[%c0, %c0_0, %c0_1] : memref<1x16x64xf32, #tpu.memory_space<vmem>>, vector<1x16x64xf32>
    %1 = vector.shape_cast %0 : vector<1x16x64xf32> to vector<16x64xf32>
    %c0_2 = arith.constant 0 : index
    %c0_3 = arith.constant 0 : index
    %2 = vector.load %arg2[%c0_2, %c0_3] : memref<64x256xf32, #tpu.memory_space<vmem>>, vector<64x256xf32>
    %cst = arith.constant dense<0.000000e+00> : vector<16x256xf32>
    %3 = tpu.matmul %1, %2, %cst {dimension_numbers = #tpu.dot_dimension_numbers<[1], [0], [0], [1], [0, 0, 1, 1], [], []>} : vector<16x64xf32>, vector<64x256xf32>, vector<16x256xf32> -> vector<16x256xf32>
    %c0_4 = arith.constant 0 : index
    %c0_5 = arith.constant 0 : index
    %4 = vector.load %arg3[%c0_4, %c0_5] : memref<1x256xf32, #tpu.memory_space<vmem>>, vector<1x256xf32>
    %5 = vector.broadcast %4 : vector<1x256xf32> to vector<16x256xf32>
    %6 = arith.addf %3, %5 : vector<16x256xf32>
    %c0_6 = arith.constant 0 : index
    %c0_7 = arith.constant 0 : index
    %7 = vector.load %arg11[%c0_6, %c0_7] : memref<16x256xf32, #tpu.memory_space<vmem>>, vector<16x256xf32>
    tpu.vector_store %arg11[%c0_6, %c0_7], %6 {strides = array<i32>} : memref<16x256xf32, #tpu.memory_space<vmem>>, vector<16x256xf32>,
    %cst_8 = arith.constant 0.000000e+00 : f32
    %8 = vector.broadcast %cst_8 : f32 to vector<1x64xf32>
    %c0_9 = arith.constant 0 : index
    %c0_10 = arith.constant 0 : index
    %9 = vector.load %arg8[%c0_9, %c0_10] : memref<1x64xf32, #tpu.memory_space<vmem>>, vector<1x64xf32>
    tpu.vector_store %arg8[%c0_9, %c0_10], %8 {strides = array<i32>} : memref<1x64xf32, #tpu.memory_space<vmem>>, vector<1x64xf32>,
    %cst_11 = arith.constant 0.000000e+00 : f32
    %10 = vector.broadcast %cst_11 : f32 to vector<1x64xf32>
    %c0_12 = arith.constant 0 : index
    %c0_13 = arith.constant 0 : index
    %11 = vector.load %arg9[%c0_12, %c0_13] : memref<1x64xf32, #tpu.memory_space<vmem>>, vector<1x64xf32>
    tpu.vector_store %arg9[%c0_12, %c0_13], %10 {strides = array<i32>} : memref<1x64xf32, #tpu.memory_space<vmem>>, vector<1x64xf32>,
    %c0_i32 = arith.constant 0 : i32
    %c0_14 = arith.constant 0 : index
    %c0_15 = arith.constant 0 : index
    %12 = vector.load %arg8[%c0_14, %c0_15] : memref<1x64xf32, #tpu.memory_space<vmem>>, vector<1x64xf32>
    %c0_16 = arith.constant 0 : index
    %c0_17 = arith.constant 0 : index
    %13 = vector.load %arg9[%c0_16, %c0_17] : memref<1x64xf32, #tpu.memory_space<vmem>>, vector<1x64xf32>
    %14 = arith.index_cast %c0_i32 : i32 to index
    %c0_18 = arith.constant 0 : index
    %15 = vector.load %arg11[%14, %c0_18] : memref<16x256xf32, #tpu.memory_space<vmem>>, vector<1x256xf32>
    %c0_19 = arith.constant 0 : index
    %c0_20 = arith.constant 0 : index
    %16 = vector.load %arg4[%c0_19, %c0_20] : memref<64x256xf32, #tpu.memory_space<vmem>>, vector<64x256xf32>
    %cst_21 = arith.constant dense<0.000000e+00> : vector<1x256xf32>
    %17 = tpu.matmul %12, %16, %cst_21 {dimension_numbers = #tpu.dot_dimension_numbers<[1], [0], [0], [1], [0, 0, 1, 1], [], []>} : vector<1x64xf32>, vector<64x256xf32>, vector<1x256xf32> -> vector<1x256xf32>
    %18 = arith.addf %15, %17 : vector<1x256xf32>
    %19 = arith.negf %18 : vector<1x256xf32>
    %20 = math.exp %19 : vector<1x256xf32>
    %cst_22 = arith.constant 1.000000e+00 : f32
    %21 = vector.broadcast %cst_22 : f32 to vector<1x256xf32>
    %22 = arith.addf %21, %20 : vector<1x256xf32>
    %23 = arith.divf %21, %22 : vector<1x256xf32>
    %24 = math.tanh %18 : vector<1x256xf32>
    %25 = vector.extract_strided_slice %23 {offsets = [0, 0], sizes = [1, 64], strides = [1, 1]} : vector<1x256xf32> to vector<1x64xf32>
    %26 = vector.extract_strided_slice %23 {offsets = [0, 64], sizes = [1, 64], strides = [1, 1]} : vector<1x256xf32> to vector<1x64xf32>
    %27 = vector.extract_strided_slice %24 {offsets = [0, 128], sizes = [1, 64], strides = [1, 1]} : vector<1x256xf32> to vector<1x64xf32>
    %28 = vector.extract_strided_slice %23 {offsets = [0, 192], sizes = [1, 64], strides = [1, 1]} : vector<1x256xf32> to vector<1x64xf32>
    %29 = arith.mulf %26, %13 : vector<1x64xf32>
    %30 = arith.mulf %25, %27 : vector<1x64xf32>
    %31 = arith.addf %29, %30 : vector<1x64xf32>
    %32 = math.tanh %31 : vector<1x64xf32>
    %33 = arith.mulf %28, %32 : vector<1x64xf32>
    %c0_23 = arith.constant 0 : index
    %c0_24 = arith.constant 0 : index
    %34 = vector.load %arg8[%c0_23, %c0_24] : memref<1x64xf32, #tpu.memory_space<vmem>>, vector<1x64xf32>
    tpu.vector_store %arg8[%c0_23, %c0_24], %33 {strides = array<i32>} : memref<1x64xf32, #tpu.memory_space<vmem>>, vector<1x64xf32>,
    %c0_25 = arith.constant 0 : index
    %c0_26 = arith.constant 0 : index
    %35 = vector.load %arg9[%c0_25, %c0_26] : memref<1x64xf32, #tpu.memory_space<vmem>>, vector<1x64xf32>
    tpu.vector_store %arg9[%c0_25, %c0_26], %31 {strides = array<i32>} : memref<1x64xf32, #tpu.memory_space<vmem>>, vector<1x64xf32>,
    %36 = arith.index_cast %c0_i32 : i32 to index
    %c0_27 = arith.constant 0 : index
    %37 = vector.load %arg10[%36, %c0_27] : memref<16x64xf32, #tpu.memory_space<vmem>>, vector<1x64xf32>
    tpu.vector_store %arg10[%36, %c0_27], %33 {strides = array<i32>} : memref<16x64xf32, #tpu.memory_space<vmem>>, vector<1x64xf32>,
    %c1_i32 = arith.constant 1 : i32
    %c0_28 = arith.constant 0 : index
    %c0_29 = arith.constant 0 : index
    %38 = vector.load %arg8[%c0_28, %c0_29] : memref<1x64xf32, #tpu.memory_space<vmem>>, vector<1x64xf32>
    %c0_30 = arith.constant 0 : index
    %c0_31 = arith.constant 0 : index
    %39 = vector.load %arg9[%c0_30, %c0_31] : memref<1x64xf32, #tpu.memory_space<vmem>>, vector<1x64xf32>
    %40 = arith.index_cast %c1_i32 : i32 to index
    %c0_32 = arith.constant 0 : index
    %41 = vector.load %arg11[%40, %c0_32] : memref<16x256xf32, #tpu.memory_space<vmem>>, vector<1x256xf32>
    %c0_33 = arith.constant 0 : index
    %c0_34 = arith.constant 0 : index
    %42 = vector.load %arg4[%c0_33, %c0_34] : memref<64x256xf32, #tpu.memory_space<vmem>>, vector<64x256xf32>
    %cst_35 = arith.constant dense<0.000000e+00> : vector<1x256xf32>
    %43 = tpu.matmul %38, %42, %cst_35 {dimension_numbers = #tpu.dot_dimension_numbers<[1], [0], [0], [1], [0, 0, 1, 1], [], []>} : vector<1x64xf32>, vector<64x256xf32>, vector<1x256xf32> -> vector<1x256xf32>
    %44 = arith.addf %41, %43 : vector<1x256xf32>
    %45 = arith.negf %44 : vector<1x256xf32>
    %46 = math.exp %45 : vector<1x256xf32>
    %cst_36 = arith.constant 1.000000e+00 : f32
    %47 = vector.broadcast %cst_36 : f32 to vector<1x256xf32>
    %48 = arith.addf %47, %46 : vector<1x256xf32>
    %49 = arith.divf %47, %48 : vector<1x256xf32>
    %50 = math.tanh %44 : vector<1x256xf32>
    %51 = vector.extract_strided_slice %49 {offsets = [0, 0], sizes = [1, 64], strides = [1, 1]} : vector<1x256xf32> to vector<1x64xf32>
    %52 = vector.extract_strided_slice %49 {offsets = [0, 64], sizes = [1, 64], strides = [1, 1]} : vector<1x256xf32> to vector<1x64xf32>
    %53 = vector.extract_strided_slice %50 {offsets = [0, 128], sizes = [1, 64], strides = [1, 1]} : vector<1x256xf32> to vector<1x64xf32>
    %54 = vector.extract_strided_slice %49 {offsets = [0, 192], sizes = [1, 64], strides = [1, 1]} : vector<1x256xf32> to vector<1x64xf32>
    %55 = arith.mulf %52, %39 : vector<1x64xf32>
    %56 = arith.mulf %51, %53 : vector<1x64xf32>
    %57 = arith.addf %55, %56 : vector<1x64xf32>
    %58 = math.tanh %57 : vector<1x64xf32>
    %59 = arith.mulf %54, %58 : vector<1x64xf32>
    %c0_37 = arith.constant 0 : index
    %c0_38 = arith.constant 0 : index
    %60 = vector.load %arg8[%c0_37, %c0_38] : memref<1x64xf32, #tpu.memory_space<vmem>>, vector<1x64xf32>
    tpu.vector_store %arg8[%c0_37, %c0_38], %59 {strides = array<i32>} : memref<1x64xf32, #tpu.memory_space<vmem>>, vector<1x64xf32>,
    %c0_39 = arith.constant 0 : index
    %c0_40 = arith.constant 0 : index
    %61 = vector.load %arg9[%c0_39, %c0_40] : memref<1x64xf32, #tpu.memory_space<vmem>>, vector<1x64xf32>
    tpu.vector_store %arg9[%c0_39, %c0_40], %57 {strides = array<i32>} : memref<1x64xf32, #tpu.memory_space<vmem>>, vector<1x64xf32>,
    %62 = arith.index_cast %c1_i32 : i32 to index
    %c0_41 = arith.constant 0 : index
    %63 = vector.load %arg10[%62, %c0_41] : memref<16x64xf32, #tpu.memory_space<vmem>>, vector<1x64xf32>
    tpu.vector_store %arg10[%62, %c0_41], %59 {strides = array<i32>} : memref<16x64xf32, #tpu.memory_space<vmem>>, vector<1x64xf32>,
    %c2_i32 = arith.constant 2 : i32
    %c0_42 = arith.constant 0 : index
    %c0_43 = arith.constant 0 : index
    %64 = vector.load %arg8[%c0_42, %c0_43] : memref<1x64xf32, #tpu.memory_space<vmem>>, vector<1x64xf32>
    %c0_44 = arith.constant 0 : index
    %c0_45 = arith.constant 0 : index
    %65 = vector.load %arg9[%c0_44, %c0_45] : memref<1x64xf32, #tpu.memory_space<vmem>>, vector<1x64xf32>
    %66 = arith.index_cast %c2_i32 : i32 to index
    %c0_46 = arith.constant 0 : index
    %67 = vector.load %arg11[%66, %c0_46] : memref<16x256xf32, #tpu.memory_space<vmem>>, vector<1x256xf32>
    %c0_47 = arith.constant 0 : index
    %c0_48 = arith.constant 0 : index
    %68 = vector.load %arg4[%c0_47, %c0_48] : memref<64x256xf32, #tpu.memory_space<vmem>>, vector<64x256xf32>
    %cst_49 = arith.constant dense<0.000000e+00> : vector<1x256xf32>
    %69 = tpu.matmul %64, %68, %cst_49 {dimension_numbers = #tpu.dot_dimension_numbers<[1], [0], [0], [1], [0, 0, 1, 1], [], []>} : vector<1x64xf32>, vector<64x256xf32>, vector<1x256xf32> -> vector<1x256xf32>
    %70 = arith.addf %67, %69 : vector<1x256xf32>
    %71 = arith.negf %70 : vector<1x256xf32>
    %72 = math.exp %71 : vector<1x256xf32>
    %cst_50 = arith.constant 1.000000e+00 : f32
    %73 = vector.broadcast %cst_50 : f32 to vector<1x256xf32>
    %74 = arith.addf %73, %72 : vector<1x256xf32>
    %75 = arith.divf %73, %74 : vector<1x256xf32>
    %76 = math.tanh %70 : vector<1x256xf32>
    %77 = vector.extract_strided_slice %75 {offsets = [0, 0], sizes = [1, 64], strides = [1, 1]} : vector<1x256xf32> to vector<1x64xf32>
    %78 = vector.extract_strided_slice %75 {offsets = [0, 64], sizes = [1, 64], strides = [1, 1]} : vector<1x256xf32> to vector<1x64xf32>
    %79 = vector.extract_strided_slice %76 {offsets = [0, 128], sizes = [1, 64], strides = [1, 1]} : vector<1x256xf32> to vector<1x64xf32>
    %80 = vector.extract_strided_slice %75 {offsets = [0, 192], sizes = [1, 64], strides = [1, 1]} : vector<1x256xf32> to vector<1x64xf32>
    %81 = arith.mulf %78, %65 : vector<1x64xf32>
    %82 = arith.mulf %77, %79 : vector<1x64xf32>
    %83 = arith.addf %81, %82 : vector<1x64xf32>
    %84 = math.tanh %83 : vector<1x64xf32>
    %85 = arith.mulf %80, %84 : vector<1x64xf32>
    %c0_51 = arith.constant 0 : index
    %c0_52 = arith.constant 0 : index
    %86 = vector.load %arg8[%c0_51, %c0_52] : memref<1x64xf32, #tpu.memory_space<vmem>>, vector<1x64xf32>
    tpu.vector_store %arg8[%c0_51, %c0_52], %85 {strides = array<i32>} : memref<1x64xf32, #tpu.memory_space<vmem>>, vector<1x64xf32>,
    %c0_53 = arith.constant 0 : index
    %c0_54 = arith.constant 0 : index
    %87 = vector.load %arg9[%c0_53, %c0_54] : memref<1x64xf32, #tpu.memory_space<vmem>>, vector<1x64xf32>
    tpu.vector_store %arg9[%c0_53, %c0_54], %83 {strides = array<i32>} : memref<1x64xf32, #tpu.memory_space<vmem>>, vector<1x64xf32>,
    %88 = arith.index_cast %c2_i32 : i32 to index
    %c0_55 = arith.constant 0 : index
    %89 = vector.load %arg10[%88, %c0_55] : memref<16x64xf32, #tpu.memory_space<vmem>>, vector<1x64xf32>
    tpu.vector_store %arg10[%88, %c0_55], %85 {strides = array<i32>} : memref<16x64xf32, #tpu.memory_space<vmem>>, vector<1x64xf32>,
    %c3_i32 = arith.constant 3 : i32
    %c0_56 = arith.constant 0 : index
    %c0_57 = arith.constant 0 : index
    %90 = vector.load %arg8[%c0_56, %c0_57] : memref<1x64xf32, #tpu.memory_space<vmem>>, vector<1x64xf32>
    %c0_58 = arith.constant 0 : index
    %c0_59 = arith.constant 0 : index
    %91 = vector.load %arg9[%c0_58, %c0_59] : memref<1x64xf32, #tpu.memory_space<vmem>>, vector<1x64xf32>
    %92 = arith.index_cast %c3_i32 : i32 to index
    %c0_60 = arith.constant 0 : index
    %93 = vector.load %arg11[%92, %c0_60] : memref<16x256xf32, #tpu.memory_space<vmem>>, vector<1x256xf32>
    %c0_61 = arith.constant 0 : index
    %c0_62 = arith.constant 0 : index
    %94 = vector.load %arg4[%c0_61, %c0_62] : memref<64x256xf32, #tpu.memory_space<vmem>>, vector<64x256xf32>
    %cst_63 = arith.constant dense<0.000000e+00> : vector<1x256xf32>
    %95 = tpu.matmul %90, %94, %cst_63 {dimension_numbers = #tpu.dot_dimension_numbers<[1], [0], [0], [1], [0, 0, 1, 1], [], []>} : vector<1x64xf32>, vector<64x256xf32>, vector<1x256xf32> -> vector<1x256xf32>
    %96 = arith.addf %93, %95 : vector<1x256xf32>
    %97 = arith.negf %96 : vector<1x256xf32>
    %98 = math.exp %97 : vector<1x256xf32>
    %cst_64 = arith.constant 1.000000e+00 : f32
    %99 = vector.broadcast %cst_64 : f32 to vector<1x256xf32>
    %100 = arith.addf %99, %98 : vector<1x256xf32>
    %101 = arith.divf %99, %100 : vector<1x256xf32>
    %102 = math.tanh %96 : vector<1x256xf32>
    %103 = vector.extract_strided_slice %101 {offsets = [0, 0], sizes = [1, 64], strides = [1, 1]} : vector<1x256xf32> to vector<1x64xf32>
    %104 = vector.extract_strided_slice %101 {offsets = [0, 64], sizes = [1, 64], strides = [1, 1]} : vector<1x256xf32> to vector<1x64xf32>
    %105 = vector.extract_strided_slice %102 {offsets = [0, 128], sizes = [1, 64], strides = [1, 1]} : vector<1x256xf32> to vector<1x64xf32>
    %106 = vector.extract_strided_slice %101 {offsets = [0, 192], sizes = [1, 64], strides = [1, 1]} : vector<1x256xf32> to vector<1x64xf32>
    %107 = arith.mulf %104, %91 : vector<1x64xf32>
    %108 = arith.mulf %103, %105 : vector<1x64xf32>
    %109 = arith.addf %107, %108 : vector<1x64xf32>
    %110 = math.tanh %109 : vector<1x64xf32>
    %111 = arith.mulf %106, %110 : vector<1x64xf32>
    %c0_65 = arith.constant 0 : index
    %c0_66 = arith.constant 0 : index
    %112 = vector.load %arg8[%c0_65, %c0_66] : memref<1x64xf32, #tpu.memory_space<vmem>>, vector<1x64xf32>
    tpu.vector_store %arg8[%c0_65, %c0_66], %111 {strides = array<i32>} : memref<1x64xf32, #tpu.memory_space<vmem>>, vector<1x64xf32>,
    %c0_67 = arith.constant 0 : index
    %c0_68 = arith.constant 0 : index
    %113 = vector.load %arg9[%c0_67, %c0_68] : memref<1x64xf32, #tpu.memory_space<vmem>>, vector<1x64xf32>
    tpu.vector_store %arg9[%c0_67, %c0_68], %109 {strides = array<i32>} : memref<1x64xf32, #tpu.memory_space<vmem>>, vector<1x64xf32>,
    %114 = arith.index_cast %c3_i32 : i32 to index
    %c0_69 = arith.constant 0 : index
    %115 = vector.load %arg10[%114, %c0_69] : memref<16x64xf32, #tpu.memory_space<vmem>>, vector<1x64xf32>
    tpu.vector_store %arg10[%114, %c0_69], %111 {strides = array<i32>} : memref<16x64xf32, #tpu.memory_space<vmem>>, vector<1x64xf32>,
    %c4_i32 = arith.constant 4 : i32
    %c0_70 = arith.constant 0 : index
    %c0_71 = arith.constant 0 : index
    %116 = vector.load %arg8[%c0_70, %c0_71] : memref<1x64xf32, #tpu.memory_space<vmem>>, vector<1x64xf32>
    %c0_72 = arith.constant 0 : index
    %c0_73 = arith.constant 0 : index
    %117 = vector.load %arg9[%c0_72, %c0_73] : memref<1x64xf32, #tpu.memory_space<vmem>>, vector<1x64xf32>
    %118 = arith.index_cast %c4_i32 : i32 to index
    %c0_74 = arith.constant 0 : index
    %119 = vector.load %arg11[%118, %c0_74] : memref<16x256xf32, #tpu.memory_space<vmem>>, vector<1x256xf32>
    %c0_75 = arith.constant 0 : index
    %c0_76 = arith.constant 0 : index
    %120 = vector.load %arg4[%c0_75, %c0_76] : memref<64x256xf32, #tpu.memory_space<vmem>>, vector<64x256xf32>
    %cst_77 = arith.constant dense<0.000000e+00> : vector<1x256xf32>
    %121 = tpu.matmul %116, %120, %cst_77 {dimension_numbers = #tpu.dot_dimension_numbers<[1], [0], [0], [1], [0, 0, 1, 1], [], []>} : vector<1x64xf32>, vector<64x256xf32>, vector<1x256xf32> -> vector<1x256xf32>
    %122 = arith.addf %119, %121 : vector<1x256xf32>
    %123 = arith.negf %122 : vector<1x256xf32>
    %124 = math.exp %123 : vector<1x256xf32>
    %cst_78 = arith.constant 1.000000e+00 : f32
    %125 = vector.broadcast %cst_78 : f32 to vector<1x256xf32>
    %126 = arith.addf %125, %124 : vector<1x256xf32>
    %127 = arith.divf %125, %126 : vector<1x256xf32>
    %128 = math.tanh %122 : vector<1x256xf32>
    %129 = vector.extract_strided_slice %127 {offsets = [0, 0], sizes = [1, 64], strides = [1, 1]} : vector<1x256xf32> to vector<1x64xf32>
    %130 = vector.extract_strided_slice %127 {offsets = [0, 64], sizes = [1, 64], strides = [1, 1]} : vector<1x256xf32> to vector<1x64xf32>
    %131 = vector.extract_strided_slice %128 {offsets = [0, 128], sizes = [1, 64], strides = [1, 1]} : vector<1x256xf32> to vector<1x64xf32>
    %132 = vector.extract_strided_slice %127 {offsets = [0, 192], sizes = [1, 64], strides = [1, 1]} : vector<1x256xf32> to vector<1x64xf32>
    %133 = arith.mulf %130, %117 : vector<1x64xf32>
    %134 = arith.mulf %129, %131 : vector<1x64xf32>
    %135 = arith.addf %133, %134 : vector<1x64xf32>
    %136 = math.tanh %135 : vector<1x64xf32>
    %137 = arith.mulf %132, %136 : vector<1x64xf32>
    %c0_79 = arith.constant 0 : index
    %c0_80 = arith.constant 0 : index
    %138 = vector.load %arg8[%c0_79, %c0_80] : memref<1x64xf32, #tpu.memory_space<vmem>>, vector<1x64xf32>
    tpu.vector_store %arg8[%c0_79, %c0_80], %137 {strides = array<i32>} : memref<1x64xf32, #tpu.memory_space<vmem>>, vector<1x64xf32>,
    %c0_81 = arith.constant 0 : index
    %c0_82 = arith.constant 0 : index
    %139 = vector.load %arg9[%c0_81, %c0_82] : memref<1x64xf32, #tpu.memory_space<vmem>>, vector<1x64xf32>
    tpu.vector_store %arg9[%c0_81, %c0_82], %135 {strides = array<i32>} : memref<1x64xf32, #tpu.memory_space<vmem>>, vector<1x64xf32>,
    %140 = arith.index_cast %c4_i32 : i32 to index
    %c0_83 = arith.constant 0 : index
    %141 = vector.load %arg10[%140, %c0_83] : memref<16x64xf32, #tpu.memory_space<vmem>>, vector<1x64xf32>
    tpu.vector_store %arg10[%140, %c0_83], %137 {strides = array<i32>} : memref<16x64xf32, #tpu.memory_space<vmem>>, vector<1x64xf32>,
    %c5_i32 = arith.constant 5 : i32
    %c0_84 = arith.constant 0 : index
    %c0_85 = arith.constant 0 : index
    %142 = vector.load %arg8[%c0_84, %c0_85] : memref<1x64xf32, #tpu.memory_space<vmem>>, vector<1x64xf32>
    %c0_86 = arith.constant 0 : index
    %c0_87 = arith.constant 0 : index
    %143 = vector.load %arg9[%c0_86, %c0_87] : memref<1x64xf32, #tpu.memory_space<vmem>>, vector<1x64xf32>
    %144 = arith.index_cast %c5_i32 : i32 to index
    %c0_88 = arith.constant 0 : index
    %145 = vector.load %arg11[%144, %c0_88] : memref<16x256xf32, #tpu.memory_space<vmem>>, vector<1x256xf32>
    %c0_89 = arith.constant 0 : index
    %c0_90 = arith.constant 0 : index
    %146 = vector.load %arg4[%c0_89, %c0_90] : memref<64x256xf32, #tpu.memory_space<vmem>>, vector<64x256xf32>
    %cst_91 = arith.constant dense<0.000000e+00> : vector<1x256xf32>
    %147 = tpu.matmul %142, %146, %cst_91 {dimension_numbers = #tpu.dot_dimension_numbers<[1], [0], [0], [1], [0, 0, 1, 1], [], []>} : vector<1x64xf32>, vector<64x256xf32>, vector<1x256xf32> -> vector<1x256xf32>
    %148 = arith.addf %145, %147 : vector<1x256xf32>
    %149 = arith.negf %148 : vector<1x256xf32>
    %150 = math.exp %149 : vector<1x256xf32>
    %cst_92 = arith.constant 1.000000e+00 : f32
    %151 = vector.broadcast %cst_92 : f32 to vector<1x256xf32>
    %152 = arith.addf %151, %150 : vector<1x256xf32>
    %153 = arith.divf %151, %152 : vector<1x256xf32>
    %154 = math.tanh %148 : vector<1x256xf32>
    %155 = vector.extract_strided_slice %153 {offsets = [0, 0], sizes = [1, 64], strides = [1, 1]} : vector<1x256xf32> to vector<1x64xf32>
    %156 = vector.extract_strided_slice %153 {offsets = [0, 64], sizes = [1, 64], strides = [1, 1]} : vector<1x256xf32> to vector<1x64xf32>
    %157 = vector.extract_strided_slice %154 {offsets = [0, 128], sizes = [1, 64], strides = [1, 1]} : vector<1x256xf32> to vector<1x64xf32>
    %158 = vector.extract_strided_slice %153 {offsets = [0, 192], sizes = [1, 64], strides = [1, 1]} : vector<1x256xf32> to vector<1x64xf32>
    %159 = arith.mulf %156, %143 : vector<1x64xf32>
    %160 = arith.mulf %155, %157 : vector<1x64xf32>
    %161 = arith.addf %159, %160 : vector<1x64xf32>
    %162 = math.tanh %161 : vector<1x64xf32>
    %163 = arith.mulf %158, %162 : vector<1x64xf32>
    %c0_93 = arith.constant 0 : index
    %c0_94 = arith.constant 0 : index
    %164 = vector.load %arg8[%c0_93, %c0_94] : memref<1x64xf32, #tpu.memory_space<vmem>>, vector<1x64xf32>
    tpu.vector_store %arg8[%c0_93, %c0_94], %163 {strides = array<i32>} : memref<1x64xf32, #tpu.memory_space<vmem>>, vector<1x64xf32>,
    %c0_95 = arith.constant 0 : index
    %c0_96 = arith.constant 0 : index
    %165 = vector.load %arg9[%c0_95, %c0_96] : memref<1x64xf32, #tpu.memory_space<vmem>>, vector<1x64xf32>
    tpu.vector_store %arg9[%c0_95, %c0_96], %161 {strides = array<i32>} : memref<1x64xf32, #tpu.memory_space<vmem>>, vector<1x64xf32>,
    %166 = arith.index_cast %c5_i32 : i32 to index
    %c0_97 = arith.constant 0 : index
    %167 = vector.load %arg10[%166, %c0_97] : memref<16x64xf32, #tpu.memory_space<vmem>>, vector<1x64xf32>
    tpu.vector_store %arg10[%166, %c0_97], %163 {strides = array<i32>} : memref<16x64xf32, #tpu.memory_space<vmem>>, vector<1x64xf32>,
    %c6_i32 = arith.constant 6 : i32
    %c0_98 = arith.constant 0 : index
    %c0_99 = arith.constant 0 : index
    %168 = vector.load %arg8[%c0_98, %c0_99] : memref<1x64xf32, #tpu.memory_space<vmem>>, vector<1x64xf32>
    %c0_100 = arith.constant 0 : index
    %c0_101 = arith.constant 0 : index
    %169 = vector.load %arg9[%c0_100, %c0_101] : memref<1x64xf32, #tpu.memory_space<vmem>>, vector<1x64xf32>
    %170 = arith.index_cast %c6_i32 : i32 to index
    %c0_102 = arith.constant 0 : index
    %171 = vector.load %arg11[%170, %c0_102] : memref<16x256xf32, #tpu.memory_space<vmem>>, vector<1x256xf32>
    %c0_103 = arith.constant 0 : index
    %c0_104 = arith.constant 0 : index
    %172 = vector.load %arg4[%c0_103, %c0_104] : memref<64x256xf32, #tpu.memory_space<vmem>>, vector<64x256xf32>
    %cst_105 = arith.constant dense<0.000000e+00> : vector<1x256xf32>
    %173 = tpu.matmul %168, %172, %cst_105 {dimension_numbers = #tpu.dot_dimension_numbers<[1], [0], [0], [1], [0, 0, 1, 1], [], []>} : vector<1x64xf32>, vector<64x256xf32>, vector<1x256xf32> -> vector<1x256xf32>
    %174 = arith.addf %171, %173 : vector<1x256xf32>
    %175 = arith.negf %174 : vector<1x256xf32>
    %176 = math.exp %175 : vector<1x256xf32>
    %cst_106 = arith.constant 1.000000e+00 : f32
    %177 = vector.broadcast %cst_106 : f32 to vector<1x256xf32>
    %178 = arith.addf %177, %176 : vector<1x256xf32>
    %179 = arith.divf %177, %178 : vector<1x256xf32>
    %180 = math.tanh %174 : vector<1x256xf32>
    %181 = vector.extract_strided_slice %179 {offsets = [0, 0], sizes = [1, 64], strides = [1, 1]} : vector<1x256xf32> to vector<1x64xf32>
    %182 = vector.extract_strided_slice %179 {offsets = [0, 64], sizes = [1, 64], strides = [1, 1]} : vector<1x256xf32> to vector<1x64xf32>
    %183 = vector.extract_strided_slice %180 {offsets = [0, 128], sizes = [1, 64], strides = [1, 1]} : vector<1x256xf32> to vector<1x64xf32>
    %184 = vector.extract_strided_slice %179 {offsets = [0, 192], sizes = [1, 64], strides = [1, 1]} : vector<1x256xf32> to vector<1x64xf32>
    %185 = arith.mulf %182, %169 : vector<1x64xf32>
    %186 = arith.mulf %181, %183 : vector<1x64xf32>
    %187 = arith.addf %185, %186 : vector<1x64xf32>
    %188 = math.tanh %187 : vector<1x64xf32>
    %189 = arith.mulf %184, %188 : vector<1x64xf32>
    %c0_107 = arith.constant 0 : index
    %c0_108 = arith.constant 0 : index
    %190 = vector.load %arg8[%c0_107, %c0_108] : memref<1x64xf32, #tpu.memory_space<vmem>>, vector<1x64xf32>
    tpu.vector_store %arg8[%c0_107, %c0_108], %189 {strides = array<i32>} : memref<1x64xf32, #tpu.memory_space<vmem>>, vector<1x64xf32>,
    %c0_109 = arith.constant 0 : index
    %c0_110 = arith.constant 0 : index
    %191 = vector.load %arg9[%c0_109, %c0_110] : memref<1x64xf32, #tpu.memory_space<vmem>>, vector<1x64xf32>
    tpu.vector_store %arg9[%c0_109, %c0_110], %187 {strides = array<i32>} : memref<1x64xf32, #tpu.memory_space<vmem>>, vector<1x64xf32>,
    %192 = arith.index_cast %c6_i32 : i32 to index
    %c0_111 = arith.constant 0 : index
    %193 = vector.load %arg10[%192, %c0_111] : memref<16x64xf32, #tpu.memory_space<vmem>>, vector<1x64xf32>
    tpu.vector_store %arg10[%192, %c0_111], %189 {strides = array<i32>} : memref<16x64xf32, #tpu.memory_space<vmem>>, vector<1x64xf32>,
    %c7_i32 = arith.constant 7 : i32
    %c0_112 = arith.constant 0 : index
    %c0_113 = arith.constant 0 : index
    %194 = vector.load %arg8[%c0_112, %c0_113] : memref<1x64xf32, #tpu.memory_space<vmem>>, vector<1x64xf32>
    %c0_114 = arith.constant 0 : index
    %c0_115 = arith.constant 0 : index
    %195 = vector.load %arg9[%c0_114, %c0_115] : memref<1x64xf32, #tpu.memory_space<vmem>>, vector<1x64xf32>
    %196 = arith.index_cast %c7_i32 : i32 to index
    %c0_116 = arith.constant 0 : index
    %197 = vector.load %arg11[%196, %c0_116] : memref<16x256xf32, #tpu.memory_space<vmem>>, vector<1x256xf32>
    %c0_117 = arith.constant 0 : index
    %c0_118 = arith.constant 0 : index
    %198 = vector.load %arg4[%c0_117, %c0_118] : memref<64x256xf32, #tpu.memory_space<vmem>>, vector<64x256xf32>
    %cst_119 = arith.constant dense<0.000000e+00> : vector<1x256xf32>
    %199 = tpu.matmul %194, %198, %cst_119 {dimension_numbers = #tpu.dot_dimension_numbers<[1], [0], [0], [1], [0, 0, 1, 1], [], []>} : vector<1x64xf32>, vector<64x256xf32>, vector<1x256xf32> -> vector<1x256xf32>
    %200 = arith.addf %197, %199 : vector<1x256xf32>
    %201 = arith.negf %200 : vector<1x256xf32>
    %202 = math.exp %201 : vector<1x256xf32>
    %cst_120 = arith.constant 1.000000e+00 : f32
    %203 = vector.broadcast %cst_120 : f32 to vector<1x256xf32>
    %204 = arith.addf %203, %202 : vector<1x256xf32>
    %205 = arith.divf %203, %204 : vector<1x256xf32>
    %206 = math.tanh %200 : vector<1x256xf32>
    %207 = vector.extract_strided_slice %205 {offsets = [0, 0], sizes = [1, 64], strides = [1, 1]} : vector<1x256xf32> to vector<1x64xf32>
    %208 = vector.extract_strided_slice %205 {offsets = [0, 64], sizes = [1, 64], strides = [1, 1]} : vector<1x256xf32> to vector<1x64xf32>
    %209 = vector.extract_strided_slice %206 {offsets = [0, 128], sizes = [1, 64], strides = [1, 1]} : vector<1x256xf32> to vector<1x64xf32>
    %210 = vector.extract_strided_slice %205 {offsets = [0, 192], sizes = [1, 64], strides = [1, 1]} : vector<1x256xf32> to vector<1x64xf32>
    %211 = arith.mulf %208, %195 : vector<1x64xf32>
    %212 = arith.mulf %207, %209 : vector<1x64xf32>
    %213 = arith.addf %211, %212 : vector<1x64xf32>
    %214 = math.tanh %213 : vector<1x64xf32>
    %215 = arith.mulf %210, %214 : vector<1x64xf32>
    %c0_121 = arith.constant 0 : index
    %c0_122 = arith.constant 0 : index
    %216 = vector.load %arg8[%c0_121, %c0_122] : memref<1x64xf32, #tpu.memory_space<vmem>>, vector<1x64xf32>
    tpu.vector_store %arg8[%c0_121, %c0_122], %215 {strides = array<i32>} : memref<1x64xf32, #tpu.memory_space<vmem>>, vector<1x64xf32>,
    %c0_123 = arith.constant 0 : index
    %c0_124 = arith.constant 0 : index
    %217 = vector.load %arg9[%c0_123, %c0_124] : memref<1x64xf32, #tpu.memory_space<vmem>>, vector<1x64xf32>
    tpu.vector_store %arg9[%c0_123, %c0_124], %213 {strides = array<i32>} : memref<1x64xf32, #tpu.memory_space<vmem>>, vector<1x64xf32>,
    %218 = arith.index_cast %c7_i32 : i32 to index
    %c0_125 = arith.constant 0 : index
    %219 = vector.load %arg10[%218, %c0_125] : memref<16x64xf32, #tpu.memory_space<vmem>>, vector<1x64xf32>
    tpu.vector_store %arg10[%218, %c0_125], %215 {strides = array<i32>} : memref<16x64xf32, #tpu.memory_space<vmem>>, vector<1x64xf32>,
    %c8_i32 = arith.constant 8 : i32
    %c0_126 = arith.constant 0 : index
    %c0_127 = arith.constant 0 : index
    %220 = vector.load %arg8[%c0_126, %c0_127] : memref<1x64xf32, #tpu.memory_space<vmem>>, vector<1x64xf32>
    %c0_128 = arith.constant 0 : index
    %c0_129 = arith.constant 0 : index
    %221 = vector.load %arg9[%c0_128, %c0_129] : memref<1x64xf32, #tpu.memory_space<vmem>>, vector<1x64xf32>
    %222 = arith.index_cast %c8_i32 : i32 to index
    %c0_130 = arith.constant 0 : index
    %223 = vector.load %arg11[%222, %c0_130] : memref<16x256xf32, #tpu.memory_space<vmem>>, vector<1x256xf32>
    %c0_131 = arith.constant 0 : index
    %c0_132 = arith.constant 0 : index
    %224 = vector.load %arg4[%c0_131, %c0_132] : memref<64x256xf32, #tpu.memory_space<vmem>>, vector<64x256xf32>
    %cst_133 = arith.constant dense<0.000000e+00> : vector<1x256xf32>
    %225 = tpu.matmul %220, %224, %cst_133 {dimension_numbers = #tpu.dot_dimension_numbers<[1], [0], [0], [1], [0, 0, 1, 1], [], []>} : vector<1x64xf32>, vector<64x256xf32>, vector<1x256xf32> -> vector<1x256xf32>
    %226 = arith.addf %223, %225 : vector<1x256xf32>
    %227 = arith.negf %226 : vector<1x256xf32>
    %228 = math.exp %227 : vector<1x256xf32>
    %cst_134 = arith.constant 1.000000e+00 : f32
    %229 = vector.broadcast %cst_134 : f32 to vector<1x256xf32>
    %230 = arith.addf %229, %228 : vector<1x256xf32>
    %231 = arith.divf %229, %230 : vector<1x256xf32>
    %232 = math.tanh %226 : vector<1x256xf32>
    %233 = vector.extract_strided_slice %231 {offsets = [0, 0], sizes = [1, 64], strides = [1, 1]} : vector<1x256xf32> to vector<1x64xf32>
    %234 = vector.extract_strided_slice %231 {offsets = [0, 64], sizes = [1, 64], strides = [1, 1]} : vector<1x256xf32> to vector<1x64xf32>
    %235 = vector.extract_strided_slice %232 {offsets = [0, 128], sizes = [1, 64], strides = [1, 1]} : vector<1x256xf32> to vector<1x64xf32>
    %236 = vector.extract_strided_slice %231 {offsets = [0, 192], sizes = [1, 64], strides = [1, 1]} : vector<1x256xf32> to vector<1x64xf32>
    %237 = arith.mulf %234, %221 : vector<1x64xf32>
    %238 = arith.mulf %233, %235 : vector<1x64xf32>
    %239 = arith.addf %237, %238 : vector<1x64xf32>
    %240 = math.tanh %239 : vector<1x64xf32>
    %241 = arith.mulf %236, %240 : vector<1x64xf32>
    %c0_135 = arith.constant 0 : index
    %c0_136 = arith.constant 0 : index
    %242 = vector.load %arg8[%c0_135, %c0_136] : memref<1x64xf32, #tpu.memory_space<vmem>>, vector<1x64xf32>
    tpu.vector_store %arg8[%c0_135, %c0_136], %241 {strides = array<i32>} : memref<1x64xf32, #tpu.memory_space<vmem>>, vector<1x64xf32>,
    %c0_137 = arith.constant 0 : index
    %c0_138 = arith.constant 0 : index
    %243 = vector.load %arg9[%c0_137, %c0_138] : memref<1x64xf32, #tpu.memory_space<vmem>>, vector<1x64xf32>
    tpu.vector_store %arg9[%c0_137, %c0_138], %239 {strides = array<i32>} : memref<1x64xf32, #tpu.memory_space<vmem>>, vector<1x64xf32>,
    %244 = arith.index_cast %c8_i32 : i32 to index
    %c0_139 = arith.constant 0 : index
    %245 = vector.load %arg10[%244, %c0_139] : memref<16x64xf32, #tpu.memory_space<vmem>>, vector<1x64xf32>
    tpu.vector_store %arg10[%244, %c0_139], %241 {strides = array<i32>} : memref<16x64xf32, #tpu.memory_space<vmem>>, vector<1x64xf32>,
    %c9_i32 = arith.constant 9 : i32
    %c0_140 = arith.constant 0 : index
    %c0_141 = arith.constant 0 : index
    %246 = vector.load %arg8[%c0_140, %c0_141] : memref<1x64xf32, #tpu.memory_space<vmem>>, vector<1x64xf32>
    %c0_142 = arith.constant 0 : index
    %c0_143 = arith.constant 0 : index
    %247 = vector.load %arg9[%c0_142, %c0_143] : memref<1x64xf32, #tpu.memory_space<vmem>>, vector<1x64xf32>
    %248 = arith.index_cast %c9_i32 : i32 to index
    %c0_144 = arith.constant 0 : index
    %249 = vector.load %arg11[%248, %c0_144] : memref<16x256xf32, #tpu.memory_space<vmem>>, vector<1x256xf32>
    %c0_145 = arith.constant 0 : index
    %c0_146 = arith.constant 0 : index
    %250 = vector.load %arg4[%c0_145, %c0_146] : memref<64x256xf32, #tpu.memory_space<vmem>>, vector<64x256xf32>
    %cst_147 = arith.constant dense<0.000000e+00> : vector<1x256xf32>
    %251 = tpu.matmul %246, %250, %cst_147 {dimension_numbers = #tpu.dot_dimension_numbers<[1], [0], [0], [1], [0, 0, 1, 1], [], []>} : vector<1x64xf32>, vector<64x256xf32>, vector<1x256xf32> -> vector<1x256xf32>
    %252 = arith.addf %249, %251 : vector<1x256xf32>
    %253 = arith.negf %252 : vector<1x256xf32>
    %254 = math.exp %253 : vector<1x256xf32>
    %cst_148 = arith.constant 1.000000e+00 : f32
    %255 = vector.broadcast %cst_148 : f32 to vector<1x256xf32>
    %256 = arith.addf %255, %254 : vector<1x256xf32>
    %257 = arith.divf %255, %256 : vector<1x256xf32>
    %258 = math.tanh %252 : vector<1x256xf32>
    %259 = vector.extract_strided_slice %257 {offsets = [0, 0], sizes = [1, 64], strides = [1, 1]} : vector<1x256xf32> to vector<1x64xf32>
    %260 = vector.extract_strided_slice %257 {offsets = [0, 64], sizes = [1, 64], strides = [1, 1]} : vector<1x256xf32> to vector<1x64xf32>
    %261 = vector.extract_strided_slice %258 {offsets = [0, 128], sizes = [1, 64], strides = [1, 1]} : vector<1x256xf32> to vector<1x64xf32>
    %262 = vector.extract_strided_slice %257 {offsets = [0, 192], sizes = [1, 64], strides = [1, 1]} : vector<1x256xf32> to vector<1x64xf32>
    %263 = arith.mulf %260, %247 : vector<1x64xf32>
    %264 = arith.mulf %259, %261 : vector<1x64xf32>
    %265 = arith.addf %263, %264 : vector<1x64xf32>
    %266 = math.tanh %265 : vector<1x64xf32>
    %267 = arith.mulf %262, %266 : vector<1x64xf32>
    %c0_149 = arith.constant 0 : index
    %c0_150 = arith.constant 0 : index
    %268 = vector.load %arg8[%c0_149, %c0_150] : memref<1x64xf32, #tpu.memory_space<vmem>>, vector<1x64xf32>
    tpu.vector_store %arg8[%c0_149, %c0_150], %267 {strides = array<i32>} : memref<1x64xf32, #tpu.memory_space<vmem>>, vector<1x64xf32>,
    %c0_151 = arith.constant 0 : index
    %c0_152 = arith.constant 0 : index
    %269 = vector.load %arg9[%c0_151, %c0_152] : memref<1x64xf32, #tpu.memory_space<vmem>>, vector<1x64xf32>
    tpu.vector_store %arg9[%c0_151, %c0_152], %265 {strides = array<i32>} : memref<1x64xf32, #tpu.memory_space<vmem>>, vector<1x64xf32>,
    %270 = arith.index_cast %c9_i32 : i32 to index
    %c0_153 = arith.constant 0 : index
    %271 = vector.load %arg10[%270, %c0_153] : memref<16x64xf32, #tpu.memory_space<vmem>>, vector<1x64xf32>
    tpu.vector_store %arg10[%270, %c0_153], %267 {strides = array<i32>} : memref<16x64xf32, #tpu.memory_space<vmem>>, vector<1x64xf32>,
    %c10_i32 = arith.constant 10 : i32
    %c0_154 = arith.constant 0 : index
    %c0_155 = arith.constant 0 : index
    %272 = vector.load %arg8[%c0_154, %c0_155] : memref<1x64xf32, #tpu.memory_space<vmem>>, vector<1x64xf32>
    %c0_156 = arith.constant 0 : index
    %c0_157 = arith.constant 0 : index
    %273 = vector.load %arg9[%c0_156, %c0_157] : memref<1x64xf32, #tpu.memory_space<vmem>>, vector<1x64xf32>
    %274 = arith.index_cast %c10_i32 : i32 to index
    %c0_158 = arith.constant 0 : index
    %275 = vector.load %arg11[%274, %c0_158] : memref<16x256xf32, #tpu.memory_space<vmem>>, vector<1x256xf32>
    %c0_159 = arith.constant 0 : index
    %c0_160 = arith.constant 0 : index
    %276 = vector.load %arg4[%c0_159, %c0_160] : memref<64x256xf32, #tpu.memory_space<vmem>>, vector<64x256xf32>
    %cst_161 = arith.constant dense<0.000000e+00> : vector<1x256xf32>
    %277 = tpu.matmul %272, %276, %cst_161 {dimension_numbers = #tpu.dot_dimension_numbers<[1], [0], [0], [1], [0, 0, 1, 1], [], []>} : vector<1x64xf32>, vector<64x256xf32>, vector<1x256xf32> -> vector<1x256xf32>
    %278 = arith.addf %275, %277 : vector<1x256xf32>
    %279 = arith.negf %278 : vector<1x256xf32>
    %280 = math.exp %279 : vector<1x256xf32>
    %cst_162 = arith.constant 1.000000e+00 : f32
    %281 = vector.broadcast %cst_162 : f32 to vector<1x256xf32>
    %282 = arith.addf %281, %280 : vector<1x256xf32>
    %283 = arith.divf %281, %282 : vector<1x256xf32>
    %284 = math.tanh %278 : vector<1x256xf32>
    %285 = vector.extract_strided_slice %283 {offsets = [0, 0], sizes = [1, 64], strides = [1, 1]} : vector<1x256xf32> to vector<1x64xf32>
    %286 = vector.extract_strided_slice %283 {offsets = [0, 64], sizes = [1, 64], strides = [1, 1]} : vector<1x256xf32> to vector<1x64xf32>
    %287 = vector.extract_strided_slice %284 {offsets = [0, 128], sizes = [1, 64], strides = [1, 1]} : vector<1x256xf32> to vector<1x64xf32>
    %288 = vector.extract_strided_slice %283 {offsets = [0, 192], sizes = [1, 64], strides = [1, 1]} : vector<1x256xf32> to vector<1x64xf32>
    %289 = arith.mulf %286, %273 : vector<1x64xf32>
    %290 = arith.mulf %285, %287 : vector<1x64xf32>
    %291 = arith.addf %289, %290 : vector<1x64xf32>
    %292 = math.tanh %291 : vector<1x64xf32>
    %293 = arith.mulf %288, %292 : vector<1x64xf32>
    %c0_163 = arith.constant 0 : index
    %c0_164 = arith.constant 0 : index
    %294 = vector.load %arg8[%c0_163, %c0_164] : memref<1x64xf32, #tpu.memory_space<vmem>>, vector<1x64xf32>
    tpu.vector_store %arg8[%c0_163, %c0_164], %293 {strides = array<i32>} : memref<1x64xf32, #tpu.memory_space<vmem>>, vector<1x64xf32>,
    %c0_165 = arith.constant 0 : index
    %c0_166 = arith.constant 0 : index
    %295 = vector.load %arg9[%c0_165, %c0_166] : memref<1x64xf32, #tpu.memory_space<vmem>>, vector<1x64xf32>
    tpu.vector_store %arg9[%c0_165, %c0_166], %291 {strides = array<i32>} : memref<1x64xf32, #tpu.memory_space<vmem>>, vector<1x64xf32>,
    %296 = arith.index_cast %c10_i32 : i32 to index
    %c0_167 = arith.constant 0 : index
    %297 = vector.load %arg10[%296, %c0_167] : memref<16x64xf32, #tpu.memory_space<vmem>>, vector<1x64xf32>
    tpu.vector_store %arg10[%296, %c0_167], %293 {strides = array<i32>} : memref<16x64xf32, #tpu.memory_space<vmem>>, vector<1x64xf32>,
    %c11_i32 = arith.constant 11 : i32
    %c0_168 = arith.constant 0 : index
    %c0_169 = arith.constant 0 : index
    %298 = vector.load %arg8[%c0_168, %c0_169] : memref<1x64xf32, #tpu.memory_space<vmem>>, vector<1x64xf32>
    %c0_170 = arith.constant 0 : index
    %c0_171 = arith.constant 0 : index
    %299 = vector.load %arg9[%c0_170, %c0_171] : memref<1x64xf32, #tpu.memory_space<vmem>>, vector<1x64xf32>
    %300 = arith.index_cast %c11_i32 : i32 to index
    %c0_172 = arith.constant 0 : index
    %301 = vector.load %arg11[%300, %c0_172] : memref<16x256xf32, #tpu.memory_space<vmem>>, vector<1x256xf32>
    %c0_173 = arith.constant 0 : index
    %c0_174 = arith.constant 0 : index
    %302 = vector.load %arg4[%c0_173, %c0_174] : memref<64x256xf32, #tpu.memory_space<vmem>>, vector<64x256xf32>
    %cst_175 = arith.constant dense<0.000000e+00> : vector<1x256xf32>
    %303 = tpu.matmul %298, %302, %cst_175 {dimension_numbers = #tpu.dot_dimension_numbers<[1], [0], [0], [1], [0, 0, 1, 1], [], []>} : vector<1x64xf32>, vector<64x256xf32>, vector<1x256xf32> -> vector<1x256xf32>
    %304 = arith.addf %301, %303 : vector<1x256xf32>
    %305 = arith.negf %304 : vector<1x256xf32>
    %306 = math.exp %305 : vector<1x256xf32>
    %cst_176 = arith.constant 1.000000e+00 : f32
    %307 = vector.broadcast %cst_176 : f32 to vector<1x256xf32>
    %308 = arith.addf %307, %306 : vector<1x256xf32>
    %309 = arith.divf %307, %308 : vector<1x256xf32>
    %310 = math.tanh %304 : vector<1x256xf32>
    %311 = vector.extract_strided_slice %309 {offsets = [0, 0], sizes = [1, 64], strides = [1, 1]} : vector<1x256xf32> to vector<1x64xf32>
    %312 = vector.extract_strided_slice %309 {offsets = [0, 64], sizes = [1, 64], strides = [1, 1]} : vector<1x256xf32> to vector<1x64xf32>
    %313 = vector.extract_strided_slice %310 {offsets = [0, 128], sizes = [1, 64], strides = [1, 1]} : vector<1x256xf32> to vector<1x64xf32>
    %314 = vector.extract_strided_slice %309 {offsets = [0, 192], sizes = [1, 64], strides = [1, 1]} : vector<1x256xf32> to vector<1x64xf32>
    %315 = arith.mulf %312, %299 : vector<1x64xf32>
    %316 = arith.mulf %311, %313 : vector<1x64xf32>
    %317 = arith.addf %315, %316 : vector<1x64xf32>
    %318 = math.tanh %317 : vector<1x64xf32>
    %319 = arith.mulf %314, %318 : vector<1x64xf32>
    %c0_177 = arith.constant 0 : index
    %c0_178 = arith.constant 0 : index
    %320 = vector.load %arg8[%c0_177, %c0_178] : memref<1x64xf32, #tpu.memory_space<vmem>>, vector<1x64xf32>
    tpu.vector_store %arg8[%c0_177, %c0_178], %319 {strides = array<i32>} : memref<1x64xf32, #tpu.memory_space<vmem>>, vector<1x64xf32>,
    %c0_179 = arith.constant 0 : index
    %c0_180 = arith.constant 0 : index
    %321 = vector.load %arg9[%c0_179, %c0_180] : memref<1x64xf32, #tpu.memory_space<vmem>>, vector<1x64xf32>
    tpu.vector_store %arg9[%c0_179, %c0_180], %317 {strides = array<i32>} : memref<1x64xf32, #tpu.memory_space<vmem>>, vector<1x64xf32>,
    %322 = arith.index_cast %c11_i32 : i32 to index
    %c0_181 = arith.constant 0 : index
    %323 = vector.load %arg10[%322, %c0_181] : memref<16x64xf32, #tpu.memory_space<vmem>>, vector<1x64xf32>
    tpu.vector_store %arg10[%322, %c0_181], %319 {strides = array<i32>} : memref<16x64xf32, #tpu.memory_space<vmem>>, vector<1x64xf32>,
    %c12_i32 = arith.constant 12 : i32
    %c0_182 = arith.constant 0 : index
    %c0_183 = arith.constant 0 : index
    %324 = vector.load %arg8[%c0_182, %c0_183] : memref<1x64xf32, #tpu.memory_space<vmem>>, vector<1x64xf32>
    %c0_184 = arith.constant 0 : index
    %c0_185 = arith.constant 0 : index
    %325 = vector.load %arg9[%c0_184, %c0_185] : memref<1x64xf32, #tpu.memory_space<vmem>>, vector<1x64xf32>
    %326 = arith.index_cast %c12_i32 : i32 to index
    %c0_186 = arith.constant 0 : index
    %327 = vector.load %arg11[%326, %c0_186] : memref<16x256xf32, #tpu.memory_space<vmem>>, vector<1x256xf32>
    %c0_187 = arith.constant 0 : index
    %c0_188 = arith.constant 0 : index
    %328 = vector.load %arg4[%c0_187, %c0_188] : memref<64x256xf32, #tpu.memory_space<vmem>>, vector<64x256xf32>
    %cst_189 = arith.constant dense<0.000000e+00> : vector<1x256xf32>
    %329 = tpu.matmul %324, %328, %cst_189 {dimension_numbers = #tpu.dot_dimension_numbers<[1], [0], [0], [1], [0, 0, 1, 1], [], []>} : vector<1x64xf32>, vector<64x256xf32>, vector<1x256xf32> -> vector<1x256xf32>
    %330 = arith.addf %327, %329 : vector<1x256xf32>
    %331 = arith.negf %330 : vector<1x256xf32>
    %332 = math.exp %331 : vector<1x256xf32>
    %cst_190 = arith.constant 1.000000e+00 : f32
    %333 = vector.broadcast %cst_190 : f32 to vector<1x256xf32>
    %334 = arith.addf %333, %332 : vector<1x256xf32>
    %335 = arith.divf %333, %334 : vector<1x256xf32>
    %336 = math.tanh %330 : vector<1x256xf32>
    %337 = vector.extract_strided_slice %335 {offsets = [0, 0], sizes = [1, 64], strides = [1, 1]} : vector<1x256xf32> to vector<1x64xf32>
    %338 = vector.extract_strided_slice %335 {offsets = [0, 64], sizes = [1, 64], strides = [1, 1]} : vector<1x256xf32> to vector<1x64xf32>
    %339 = vector.extract_strided_slice %336 {offsets = [0, 128], sizes = [1, 64], strides = [1, 1]} : vector<1x256xf32> to vector<1x64xf32>
    %340 = vector.extract_strided_slice %335 {offsets = [0, 192], sizes = [1, 64], strides = [1, 1]} : vector<1x256xf32> to vector<1x64xf32>
    %341 = arith.mulf %338, %325 : vector<1x64xf32>
    %342 = arith.mulf %337, %339 : vector<1x64xf32>
    %343 = arith.addf %341, %342 : vector<1x64xf32>
    %344 = math.tanh %343 : vector<1x64xf32>
    %345 = arith.mulf %340, %344 : vector<1x64xf32>
    %c0_191 = arith.constant 0 : index
    %c0_192 = arith.constant 0 : index
    %346 = vector.load %arg8[%c0_191, %c0_192] : memref<1x64xf32, #tpu.memory_space<vmem>>, vector<1x64xf32>
    tpu.vector_store %arg8[%c0_191, %c0_192], %345 {strides = array<i32>} : memref<1x64xf32, #tpu.memory_space<vmem>>, vector<1x64xf32>,
    %c0_193 = arith.constant 0 : index
    %c0_194 = arith.constant 0 : index
    %347 = vector.load %arg9[%c0_193, %c0_194] : memref<1x64xf32, #tpu.memory_space<vmem>>, vector<1x64xf32>
    tpu.vector_store %arg9[%c0_193, %c0_194], %343 {strides = array<i32>} : memref<1x64xf32, #tpu.memory_space<vmem>>, vector<1x64xf32>,
    %348 = arith.index_cast %c12_i32 : i32 to index
    %c0_195 = arith.constant 0 : index
    %349 = vector.load %arg10[%348, %c0_195] : memref<16x64xf32, #tpu.memory_space<vmem>>, vector<1x64xf32>
    tpu.vector_store %arg10[%348, %c0_195], %345 {strides = array<i32>} : memref<16x64xf32, #tpu.memory_space<vmem>>, vector<1x64xf32>,
    %c13_i32 = arith.constant 13 : i32
    %c0_196 = arith.constant 0 : index
    %c0_197 = arith.constant 0 : index
    %350 = vector.load %arg8[%c0_196, %c0_197] : memref<1x64xf32, #tpu.memory_space<vmem>>, vector<1x64xf32>
    %c0_198 = arith.constant 0 : index
    %c0_199 = arith.constant 0 : index
    %351 = vector.load %arg9[%c0_198, %c0_199] : memref<1x64xf32, #tpu.memory_space<vmem>>, vector<1x64xf32>
    %352 = arith.index_cast %c13_i32 : i32 to index
    %c0_200 = arith.constant 0 : index
    %353 = vector.load %arg11[%352, %c0_200] : memref<16x256xf32, #tpu.memory_space<vmem>>, vector<1x256xf32>
    %c0_201 = arith.constant 0 : index
    %c0_202 = arith.constant 0 : index
    %354 = vector.load %arg4[%c0_201, %c0_202] : memref<64x256xf32, #tpu.memory_space<vmem>>, vector<64x256xf32>
    %cst_203 = arith.constant dense<0.000000e+00> : vector<1x256xf32>
    %355 = tpu.matmul %350, %354, %cst_203 {dimension_numbers = #tpu.dot_dimension_numbers<[1], [0], [0], [1], [0, 0, 1, 1], [], []>} : vector<1x64xf32>, vector<64x256xf32>, vector<1x256xf32> -> vector<1x256xf32>
    %356 = arith.addf %353, %355 : vector<1x256xf32>
    %357 = arith.negf %356 : vector<1x256xf32>
    %358 = math.exp %357 : vector<1x256xf32>
    %cst_204 = arith.constant 1.000000e+00 : f32
    %359 = vector.broadcast %cst_204 : f32 to vector<1x256xf32>
    %360 = arith.addf %359, %358 : vector<1x256xf32>
    %361 = arith.divf %359, %360 : vector<1x256xf32>
    %362 = math.tanh %356 : vector<1x256xf32>
    %363 = vector.extract_strided_slice %361 {offsets = [0, 0], sizes = [1, 64], strides = [1, 1]} : vector<1x256xf32> to vector<1x64xf32>
    %364 = vector.extract_strided_slice %361 {offsets = [0, 64], sizes = [1, 64], strides = [1, 1]} : vector<1x256xf32> to vector<1x64xf32>
    %365 = vector.extract_strided_slice %362 {offsets = [0, 128], sizes = [1, 64], strides = [1, 1]} : vector<1x256xf32> to vector<1x64xf32>
    %366 = vector.extract_strided_slice %361 {offsets = [0, 192], sizes = [1, 64], strides = [1, 1]} : vector<1x256xf32> to vector<1x64xf32>
    %367 = arith.mulf %364, %351 : vector<1x64xf32>
    %368 = arith.mulf %363, %365 : vector<1x64xf32>
    %369 = arith.addf %367, %368 : vector<1x64xf32>
    %370 = math.tanh %369 : vector<1x64xf32>
    %371 = arith.mulf %366, %370 : vector<1x64xf32>
    %c0_205 = arith.constant 0 : index
    %c0_206 = arith.constant 0 : index
    %372 = vector.load %arg8[%c0_205, %c0_206] : memref<1x64xf32, #tpu.memory_space<vmem>>, vector<1x64xf32>
    tpu.vector_store %arg8[%c0_205, %c0_206], %371 {strides = array<i32>} : memref<1x64xf32, #tpu.memory_space<vmem>>, vector<1x64xf32>,
    %c0_207 = arith.constant 0 : index
    %c0_208 = arith.constant 0 : index
    %373 = vector.load %arg9[%c0_207, %c0_208] : memref<1x64xf32, #tpu.memory_space<vmem>>, vector<1x64xf32>
    tpu.vector_store %arg9[%c0_207, %c0_208], %369 {strides = array<i32>} : memref<1x64xf32, #tpu.memory_space<vmem>>, vector<1x64xf32>,
    %374 = arith.index_cast %c13_i32 : i32 to index
    %c0_209 = arith.constant 0 : index
    %375 = vector.load %arg10[%374, %c0_209] : memref<16x64xf32, #tpu.memory_space<vmem>>, vector<1x64xf32>
    tpu.vector_store %arg10[%374, %c0_209], %371 {strides = array<i32>} : memref<16x64xf32, #tpu.memory_space<vmem>>, vector<1x64xf32>,
    %c14_i32 = arith.constant 14 : i32
    %c0_210 = arith.constant 0 : index
    %c0_211 = arith.constant 0 : index
    %376 = vector.load %arg8[%c0_210, %c0_211] : memref<1x64xf32, #tpu.memory_space<vmem>>, vector<1x64xf32>
    %c0_212 = arith.constant 0 : index
    %c0_213 = arith.constant 0 : index
    %377 = vector.load %arg9[%c0_212, %c0_213] : memref<1x64xf32, #tpu.memory_space<vmem>>, vector<1x64xf32>
    %378 = arith.index_cast %c14_i32 : i32 to index
    %c0_214 = arith.constant 0 : index
    %379 = vector.load %arg11[%378, %c0_214] : memref<16x256xf32, #tpu.memory_space<vmem>>, vector<1x256xf32>
    %c0_215 = arith.constant 0 : index
    %c0_216 = arith.constant 0 : index
    %380 = vector.load %arg4[%c0_215, %c0_216] : memref<64x256xf32, #tpu.memory_space<vmem>>, vector<64x256xf32>
    %cst_217 = arith.constant dense<0.000000e+00> : vector<1x256xf32>
    %381 = tpu.matmul %376, %380, %cst_217 {dimension_numbers = #tpu.dot_dimension_numbers<[1], [0], [0], [1], [0, 0, 1, 1], [], []>} : vector<1x64xf32>, vector<64x256xf32>, vector<1x256xf32> -> vector<1x256xf32>
    %382 = arith.addf %379, %381 : vector<1x256xf32>
    %383 = arith.negf %382 : vector<1x256xf32>
    %384 = math.exp %383 : vector<1x256xf32>
    %cst_218 = arith.constant 1.000000e+00 : f32
    %385 = vector.broadcast %cst_218 : f32 to vector<1x256xf32>
    %386 = arith.addf %385, %384 : vector<1x256xf32>
    %387 = arith.divf %385, %386 : vector<1x256xf32>
    %388 = math.tanh %382 : vector<1x256xf32>
    %389 = vector.extract_strided_slice %387 {offsets = [0, 0], sizes = [1, 64], strides = [1, 1]} : vector<1x256xf32> to vector<1x64xf32>
    %390 = vector.extract_strided_slice %387 {offsets = [0, 64], sizes = [1, 64], strides = [1, 1]} : vector<1x256xf32> to vector<1x64xf32>
    %391 = vector.extract_strided_slice %388 {offsets = [0, 128], sizes = [1, 64], strides = [1, 1]} : vector<1x256xf32> to vector<1x64xf32>
    %392 = vector.extract_strided_slice %387 {offsets = [0, 192], sizes = [1, 64], strides = [1, 1]} : vector<1x256xf32> to vector<1x64xf32>
    %393 = arith.mulf %390, %377 : vector<1x64xf32>
    %394 = arith.mulf %389, %391 : vector<1x64xf32>
    %395 = arith.addf %393, %394 : vector<1x64xf32>
    %396 = math.tanh %395 : vector<1x64xf32>
    %397 = arith.mulf %392, %396 : vector<1x64xf32>
    %c0_219 = arith.constant 0 : index
    %c0_220 = arith.constant 0 : index
    %398 = vector.load %arg8[%c0_219, %c0_220] : memref<1x64xf32, #tpu.memory_space<vmem>>, vector<1x64xf32>
    tpu.vector_store %arg8[%c0_219, %c0_220], %397 {strides = array<i32>} : memref<1x64xf32, #tpu.memory_space<vmem>>, vector<1x64xf32>,
    %c0_221 = arith.constant 0 : index
    %c0_222 = arith.constant 0 : index
    %399 = vector.load %arg9[%c0_221, %c0_222] : memref<1x64xf32, #tpu.memory_space<vmem>>, vector<1x64xf32>
    tpu.vector_store %arg9[%c0_221, %c0_222], %395 {strides = array<i32>} : memref<1x64xf32, #tpu.memory_space<vmem>>, vector<1x64xf32>,
    %400 = arith.index_cast %c14_i32 : i32 to index
    %c0_223 = arith.constant 0 : index
    %401 = vector.load %arg10[%400, %c0_223] : memref<16x64xf32, #tpu.memory_space<vmem>>, vector<1x64xf32>
    tpu.vector_store %arg10[%400, %c0_223], %397 {strides = array<i32>} : memref<16x64xf32, #tpu.memory_space<vmem>>, vector<1x64xf32>,
    %c15_i32 = arith.constant 15 : i32
    %c0_224 = arith.constant 0 : index
    %c0_225 = arith.constant 0 : index
    %402 = vector.load %arg8[%c0_224, %c0_225] : memref<1x64xf32, #tpu.memory_space<vmem>>, vector<1x64xf32>
    %c0_226 = arith.constant 0 : index
    %c0_227 = arith.constant 0 : index
    %403 = vector.load %arg9[%c0_226, %c0_227] : memref<1x64xf32, #tpu.memory_space<vmem>>, vector<1x64xf32>
    %404 = arith.index_cast %c15_i32 : i32 to index
    %c0_228 = arith.constant 0 : index
    %405 = vector.load %arg11[%404, %c0_228] : memref<16x256xf32, #tpu.memory_space<vmem>>, vector<1x256xf32>
    %c0_229 = arith.constant 0 : index
    %c0_230 = arith.constant 0 : index
    %406 = vector.load %arg4[%c0_229, %c0_230] : memref<64x256xf32, #tpu.memory_space<vmem>>, vector<64x256xf32>
    %cst_231 = arith.constant dense<0.000000e+00> : vector<1x256xf32>
    %407 = tpu.matmul %402, %406, %cst_231 {dimension_numbers = #tpu.dot_dimension_numbers<[1], [0], [0], [1], [0, 0, 1, 1], [], []>} : vector<1x64xf32>, vector<64x256xf32>, vector<1x256xf32> -> vector<1x256xf32>
    %408 = arith.addf %405, %407 : vector<1x256xf32>
    %409 = arith.negf %408 : vector<1x256xf32>
    %410 = math.exp %409 : vector<1x256xf32>
    %cst_232 = arith.constant 1.000000e+00 : f32
    %411 = vector.broadcast %cst_232 : f32 to vector<1x256xf32>
    %412 = arith.addf %411, %410 : vector<1x256xf32>
    %413 = arith.divf %411, %412 : vector<1x256xf32>
    %414 = math.tanh %408 : vector<1x256xf32>
    %415 = vector.extract_strided_slice %413 {offsets = [0, 0], sizes = [1, 64], strides = [1, 1]} : vector<1x256xf32> to vector<1x64xf32>
    %416 = vector.extract_strided_slice %413 {offsets = [0, 64], sizes = [1, 64], strides = [1, 1]} : vector<1x256xf32> to vector<1x64xf32>
    %417 = vector.extract_strided_slice %414 {offsets = [0, 128], sizes = [1, 64], strides = [1, 1]} : vector<1x256xf32> to vector<1x64xf32>
    %418 = vector.extract_strided_slice %413 {offsets = [0, 192], sizes = [1, 64], strides = [1, 1]} : vector<1x256xf32> to vector<1x64xf32>
    %419 = arith.mulf %416, %403 : vector<1x64xf32>
    %420 = arith.mulf %415, %417 : vector<1x64xf32>
    %421 = arith.addf %419, %420 : vector<1x64xf32>
    %422 = math.tanh %421 : vector<1x64xf32>
    %423 = arith.mulf %418, %422 : vector<1x64xf32>
    %c0_233 = arith.constant 0 : index
    %c0_234 = arith.constant 0 : index
    %424 = vector.load %arg8[%c0_233, %c0_234] : memref<1x64xf32, #tpu.memory_space<vmem>>, vector<1x64xf32>
    tpu.vector_store %arg8[%c0_233, %c0_234], %423 {strides = array<i32>} : memref<1x64xf32, #tpu.memory_space<vmem>>, vector<1x64xf32>,
    %c0_235 = arith.constant 0 : index
    %c0_236 = arith.constant 0 : index
    %425 = vector.load %arg9[%c0_235, %c0_236] : memref<1x64xf32, #tpu.memory_space<vmem>>, vector<1x64xf32>
    tpu.vector_store %arg9[%c0_235, %c0_236], %421 {strides = array<i32>} : memref<1x64xf32, #tpu.memory_space<vmem>>, vector<1x64xf32>,
    %426 = arith.index_cast %c15_i32 : i32 to index
    %c0_237 = arith.constant 0 : index
    %427 = vector.load %arg10[%426, %c0_237] : memref<16x64xf32, #tpu.memory_space<vmem>>, vector<1x64xf32>
    tpu.vector_store %arg10[%426, %c0_237], %423 {strides = array<i32>} : memref<16x64xf32, #tpu.memory_space<vmem>>, vector<1x64xf32>,
    %c16_i32 = arith.constant 16 : i32
    %c0_238 = arith.constant 0 : index
    %c0_239 = arith.constant 0 : index
    %428 = vector.load %arg10[%c0_238, %c0_239] : memref<16x64xf32, #tpu.memory_space<vmem>>, vector<16x64xf32>
    %c0_240 = arith.constant 0 : index
    %c0_241 = arith.constant 0 : index
    %429 = vector.load %arg5[%c0_240, %c0_241] : memref<64x3xf32, #tpu.memory_space<vmem>>, vector<64x3xf32>
    %cst_242 = arith.constant dense<0.000000e+00> : vector<16x3xf32>
    %430 = tpu.matmul %428, %429, %cst_242 {dimension_numbers = #tpu.dot_dimension_numbers<[1], [0], [0], [1], [0, 0, 1, 1], [], []>} : vector<16x64xf32>, vector<64x3xf32>, vector<16x3xf32> -> vector<16x3xf32>
    %c0_243 = arith.constant 0 : index
    %c0_244 = arith.constant 0 : index
    %431 = vector.load %arg6[%c0_243, %c0_244] : memref<1x3xf32, #tpu.memory_space<vmem>>, vector<1x3xf32>
    %432 = vector.broadcast %431 : vector<1x3xf32> to vector<16x3xf32>
    %433 = arith.addf %430, %432 : vector<16x3xf32>
    %434 = vector.shape_cast %433 : vector<16x3xf32> to vector<1x16x3xf32>
    %c0_245 = arith.constant 0 : index
    %c0_246 = arith.constant 0 : index
    %c0_247 = arith.constant 0 : index
    %435 = vector.load %arg7[%c0_245, %c0_246, %c0_247] : memref<1x16x3xf32, #tpu.memory_space<vmem>>, vector<1x16x3xf32>
    tpu.vector_store %arg7[%c0_245, %c0_246, %c0_247], %434 {strides = array<i32>} : memref<1x16x3xf32, #tpu.memory_space<vmem>>, vector<1x16x3xf32>,
    return
  }
  func.func @transform_0(%arg0: i32) -> (i32, i32, i32) {
    %c0_i32 = arith.constant 0 : i32
    %c0_i32_0 = arith.constant 0 : i32
    %c0_i32_1 = arith.constant 0 : i32
    return %arg0, %c0_i32, %c0_i32_0 : i32, i32, i32
  }
  func.func @transform_1(%arg0: i32) -> (i32, i32) {
    %c0_i32 = arith.constant 0 : i32
    %c0_i32_0 = arith.constant 0 : i32
    %c0_i32_1 = arith.constant 0 : i32
    return %c0_i32, %c0_i32_0 : i32, i32
  }
  func.func @transform_2(%arg0: i32) -> (i32, i32) {
    %c0_i32 = arith.constant 0 : i32
    %c0_i32_0 = arith.constant 0 : i32
    %c0_i32_1 = arith.constant 0 : i32
    return %c0_i32, %c0_i32_0 : i32, i32
  }
  func.func @transform_3(%arg0: i32) -> (i32, i32) {
    %c0_i32 = arith.constant 0 : i32
    %c0_i32_0 = arith.constant 0 : i32
    %c0_i32_1 = arith.constant 0 : i32
    return %c0_i32, %c0_i32_0 : i32, i32
  }
  func.func @transform_4(%arg0: i32) -> (i32, i32) {
    %c0_i32 = arith.constant 0 : i32
    %c0_i32_0 = arith.constant 0 : i32
    %c0_i32_1 = arith.constant 0 : i32
    return %c0_i32, %c0_i32_0 : i32, i32
  }
  func.func @transform_5(%arg0: i32) -> (i32, i32) {
    %c0_i32 = arith.constant 0 : i32
    %c0_i32_0 = arith.constant 0 : i32
    %c0_i32_1 = arith.constant 0 : i32
    return %c0_i32, %c0_i32_0 : i32, i32
  }
  func.func @transform_6(%arg0: i32) -> (i32, i32, i32) {
    %c0_i32 = arith.constant 0 : i32
    %c0_i32_0 = arith.constant 0 : i32
    %c0_i32_1 = arith.constant 0 : i32
    return %arg0, %c0_i32, %c0_i32_0 : i32, i32, i32
  }
}

</mosaic_0001>

<llo_original>
// kernel: _lambda_.1
$region0: #{_lambda_.1}
  #allocation0 [shape = 'u32[]', space=smem, size = 0x4, offset = 0x4, fixed_abs, tag = 'smem constant byte address 0x4 - core index']
  #allocation1 [shape = 'u32[144,128]{1,0:T(1,128)}', space=vmem, size = 0x12000, scoped, tag = 'internal scratch']
  #allocation2 [shape = 'f32[1,64]{1,0:T(1,128)}', space=vmem, size = 0x200, scoped, tag = 'scratch operand']
  #allocation3 [shape = 'f32[1,64]{1,0:T(1,128)}', space=vmem, size = 0x200, scoped, tag = 'scratch operand']
  #allocation4 [shape = 'f32[16,64]{1,0:T(8,128)}', space=vmem, size = 0x2000, scoped, tag = 'scratch operand']
  #allocation5 [shape = 'f32[16,256]{1,0:T(8,128)}', space=vmem, size = 0x4000, scoped, tag = 'scratch operand']
  %s0 = inlined_call_operand.vmem [shape: f32[2,16,64], index: 0, kind: input, shape index: {}]
  %s1 = inlined_call_operand.vmem [shape: f32[64,256], index: 1, kind: input, shape index: {}]
  %s2 = inlined_call_operand.vmem [shape: f32[1,256], index: 2, kind: input, shape index: {}]
  %s3 = inlined_call_operand.vmem [shape: f32[64,256], index: 3, kind: input, shape index: {}]
  %s4 = inlined_call_operand.vmem [shape: f32[64,3], index: 4, kind: input, shape index: {}]
  %s5 = inlined_call_operand.vmem [shape: f32[1,3], index: 5, kind: input, shape index: {}]
  %s6 = inlined_call_operand.vmem [shape: f32[2,16,3], index: 6, kind: output, shape index: {}]
  %s7 = sld [smem:[#allocation0]]
  $region57: #{_lambda_.1} parent=0
    _
  %s9 = ssub.s32 1, %s7
  %s10 = scalar_select 0, %s9, %s7
  loop: start=0, step=1, limit=4
  $region2: #{_lambda_.1} parent=0 // loop_pre_header
    _
  $region3: #{_lambda_.1} parent=0 // loop_header
    %s12 = sphi 0, %s16
    %p13 = scmp.ge.s32.totalorder %s12, 4
    %s22 = sphi 0, %s24
    %s25 = sphi 0, %s22
    %s26 = sphi 0, %s25
    %s42 = sphi 0, %s26
    %s46 = sphi 0, %s46
    %s48 = sphi 0, %s46
    %s49 = sphi 0, %s48
    %s63 = sphi 0, %s49
    %s67 = sphi 0, %s67
    %s69 = sphi 0, %s67
    %s70 = sphi 0, %s69
    %s84 = sphi 0, %s70
    %s88 = sphi 0, %s88
    %s90 = sphi 0, %s88
    %s91 = sphi 0, %s90
    %s105 = sphi 0, %s91
    %s109 = sphi 0, %s109
    %s111 = sphi 0, %s109
    %s112 = sphi 0, %s111
    %s126 = sphi 0, %s112
    %s130 = sphi 0, %s130
    %s132 = sphi 0, %s130
    %s133 = sphi 0, %s132
    %s147 = sphi 0, %s133
    %s153 = sphi 0, %s155
    %s156 = sphi 0, %s153
    %s157 = sphi 0, %s156
    %s173 = sphi 0, %s157
  $region4: #{_lambda_.1} parent=0 // loop_header_branch
    %15 = sbr.rel (%p13) target = $region8
  $region5: #{_lambda_.1} parent=0 // loop_body
    %s17 = ssub.s32 %s12, 1
    %s18 = ssub.s32 %s12, 2
    %s19 = sadd.s32 %s12, 1
    %s20 = ssub.s32 %s12, %s19
    %p21 = scmp.eq.s32.totalorder %s20, 0
    %s23 = sadd.s32 %s22, 1
    %s24 = scalar_select %p21, %s22, %s23
    %p27 = pneg %p21
    %p28 = scmp.eq.s32.totalorder %s12, 1
    %p29 = por %p27, %p28
    %p30 = scmp.ne.s32.totalorder %s22, %s25
    %p31 = scmp.eq.s32.totalorder %s12, 0
    %p32 = por %p30, %p31
    %p33 = scmp.ne.s32.totalorder %s22, %s25
    %p34 = scmp.eq.s32.totalorder %s17, 1
    %p35 = por %p33, %p34
    %p36 = scmp.ne.s32.totalorder %s25, %s26
    %p37 = scmp.eq.s32.totalorder %s17, 0
    %p38 = por %p36, %p37
    %p39 = scmp.ne.s32.totalorder %s25, %s26
    %p40 = scmp.eq.s32.totalorder %s18, 1
    %p41 = por %p39, %p40
    %p43 = scmp.ne.s32.totalorder %s26, %s42
    %p44 = scmp.eq.s32.totalorder %s18, 0
    %p45 = por %p43, %p44
    %s47 = sadd.s32 %s46, 1
    %p50 = scmp.eq.s32.totalorder %s12, 1
    %p51 = scmp.ne.s32.totalorder %s46, %s48
    %p52 = scmp.eq.s32.totalorder %s12, 0
    %p53 = por %p51, %p52
    %p54 = scmp.ne.s32.totalorder %s46, %s48
    %p55 = scmp.eq.s32.totalorder %s17, 1
    %p56 = por %p54, %p55
    %p57 = scmp.ne.s32.totalorder %s48, %s49
    %p58 = scmp.eq.s32.totalorder %s17, 0
    %p59 = por %p57, %p58
    %p60 = scmp.ne.s32.totalorder %s48, %s49
    %p61 = scmp.eq.s32.totalorder %s18, 1
    %p62 = por %p60, %p61
    %p64 = scmp.ne.s32.totalorder %s49, %s63
    %p65 = scmp.eq.s32.totalorder %s18, 0
    %p66 = por %p64, %p65
    %s68 = sadd.s32 %s67, 1
    %p71 = scmp.eq.s32.totalorder %s12, 1
    %p72 = scmp.ne.s32.totalorder %s67, %s69
    %p73 = scmp.eq.s32.totalorder %s12, 0
    %p74 = por %p72, %p73
    %p75 = scmp.ne.s32.totalorder %s67, %s69
    %p76 = scmp.eq.s32.totalorder %s17, 1
    %p77 = por %p75, %p76
    %p78 = scmp.ne.s32.totalorder %s69, %s70
    %p79 = scmp.eq.s32.totalorder %s17, 0
    %p80 = por %p78, %p79
    %p81 = scmp.ne.s32.totalorder %s69, %s70
    %p82 = scmp.eq.s32.totalorder %s18, 1
    %p83 = por %p81, %p82
    %p85 = scmp.ne.s32.totalorder %s70, %s84
    %p86 = scmp.eq.s32.totalorder %s18, 0
    %p87 = por %p85, %p86
    %s89 = sadd.s32 %s88, 1
    %p92 = scmp.eq.s32.totalorder %s12, 1
    %p93 = scmp.ne.s32.totalorder %s88, %s90
    %p94 = scmp.eq.s32.totalorder %s12, 0
    %p95 = por %p93, %p94
    %p96 = scmp.ne.s32.totalorder %s88, %s90
    %p97 = scmp.eq.s32.totalorder %s17, 1
    %p98 = por %p96, %p97
    %p99 = scmp.ne.s32.totalorder %s90, %s91
    %p100 = scmp.eq.s32.totalorder %s17, 0
    %p101 = por %p99, %p100
    %p102 = scmp.ne.s32.totalorder %s90, %s91
    %p103 = scmp.eq.s32.totalorder %s18, 1
    %p104 = por %p102, %p103
    %p106 = scmp.ne.s32.totalorder %s91, %s105
    %p107 = scmp.eq.s32.totalorder %s18, 0
    %p108 = por %p106, %p107
    %s110 = sadd.s32 %s109, 1
    %p113 = scmp.eq.s32.totalorder %s12, 1
    %p114 = scmp.ne.s32.totalorder %s109, %s111
    %p115 = scmp.eq.s32.totalorder %s12, 0
    %p116 = por %p114, %p115
    %p117 = scmp.ne.s32.totalorder %s109, %s111
    %p118 = scmp.eq.s32.totalorder %s17, 1
    %p119 = por %p117, %p118
    %p120 = scmp.ne.s32.totalorder %s111, %s112
    %p121 = scmp.eq.s32.totalorder %s17, 0
    %p122 = por %p120, %p121
    %p123 = scmp.ne.s32.totalorder %s111, %s112
    %p124 = scmp.eq.s32.totalorder %s18, 1
    %p125 = por %p123, %p124
    %p127 = scmp.ne.s32.totalorder %s112, %s126
    %p128 = scmp.eq.s32.totalorder %s18, 0
    %p129 = por %p127, %p128
    %s131 = sadd.s32 %s130, 1
    %p134 = scmp.eq.s32.totalorder %s12, 1
    %p135 = scmp.ne.s32.totalorder %s130, %s132
    %p136 = scmp.eq.s32.totalorder %s12, 0
    %p137 = por %p135, %p136
    %p138 = scmp.ne.s32.totalorder %s130, %s132
    %p139 = scmp.eq.s32.totalorder %s17, 1
    %p140 = por %p138, %p139
    %p141 = scmp.ne.s32.totalorder %s132, %s133
    %p142 = scmp.eq.s32.totalorder %s17, 0
    %p143 = por %p141, %p142
    %p144 = scmp.ne.s32.totalorder %s132, %s133
    %p145 = scmp.eq.s32.totalorder %s18, 1
    %p146 = por %p144, %p145
    %p148 = scmp.ne.s32.totalorder %s133, %s147
    %p149 = scmp.eq.s32.totalorder %s18, 0
    %p150 = por %p148, %p149
    %s151 = ssub.s32 %s12, %s19
    %p152 = scmp.eq.s32.totalorder %s151, 0
    %s154 = sadd.s32 %s153, 1
    %s155 = scalar_select %p152, %s153, %s154
    %p158 = pneg %p152
    %p159 = scmp.eq.s32.totalorder %s12, 1
    %p160 = por %p158, %p159
    %p161 = scmp.ne.s32.totalorder %s153, %s156
    %p162 = scmp.eq.s32.totalorder %s12, 0
    %p163 = por %p161, %p162
    %p164 = scmp.ne.s32.totalorder %s153, %s156
    %p165 = scmp.eq.s32.totalorder %s17, 1
    %p166 = por %p164, %p165
    %p167 = scmp.ne.s32.totalorder %s156, %s157
    %p168 = scmp.eq.s32.totalorder %s17, 0
    %p169 = por %p167, %p168
    %p170 = scmp.ne.s32.totalorder %s156, %s157
    %p171 = scmp.eq.s32.totalorder %s18, 1
    %p172 = por %p170, %p171
    %p174 = scmp.ne.s32.totalorder %s157, %s173
    %p175 = scmp.eq.s32.totalorder %s18, 0
    %p176 = por %p174, %p175
    %p177 = scmp.le.s32.totalorder 1, %s12
    %p178 = scmp.lt.s32.totalorder %s12, 3
    %p179 = pnand %p177, %p178
    %p180 = pneg %p179
    // Predicated region
    $region9: #{_lambda_.1} parent=5 // pred_check
      _
    $region10: #{_lambda_.1} parent=5 // pred_check_branch
      %182 = sbr.rel (%p179) target = $region12
    $region11: #{_lambda_.1} parent=5 // pred_region
      %s183 = ssub.s32 %s12, 1
      // Predicated region
      $region13: #{_lambda_.1} parent=11 // pred_check
        %p184 = pneg %p59
      $region14: #{_lambda_.1} parent=11 // pred_check_branch
        %186 = sbr.rel (%p184) target = $region16
      $region15: #{_lambda_.1} parent=11 // pred_region
        _
      $region16: #{_lambda_.1} parent=11 // pred_fallthru
        _
      // Predicated region
      $region17: #{_lambda_.1} parent=11 // pred_check
        %p187 = pneg %p80
      $region18: #{_lambda_.1} parent=11 // pred_check_branch
        %189 = sbr.rel (%p187) target = $region20
      $region19: #{_lambda_.1} parent=11 // pred_region
        _
      $region20: #{_lambda_.1} parent=11 // pred_fallthru
        _
      // Predicated region
      $region21: #{_lambda_.1} parent=11 // pred_check
        %p190 = pneg %p101
      $region22: #{_lambda_.1} parent=11 // pred_check_branch
        %192 = sbr.rel (%p190) target = $region24
      $region23: #{_lambda_.1} parent=11 // pred_region
        _
      $region24: #{_lambda_.1} parent=11 // pred_fallthru
        _
      // Predicated region
      $region25: #{_lambda_.1} parent=11 // pred_check
        %p193 = pneg %p122
      $region26: #{_lambda_.1} parent=11 // pred_check_branch
        %195 = sbr.rel (%p193) target = $region28
      $region27: #{_lambda_.1} parent=11 // pred_region
        _
      $region28: #{_lambda_.1} parent=11 // pred_fallthru
        _
      // Predicated region
      $region29: #{_lambda_.1} parent=11 // pred_check
        %p196 = pneg %p143
      $region30: #{_lambda_.1} parent=11 // pred_check_branch
        %198 = sbr.rel (%p196) target = $region32
      $region31: #{_lambda_.1} parent=11 // pred_region
        _
      $region32: #{_lambda_.1} parent=11 // pred_fallthru
        _
    $region12: #{_lambda_.1} parent=5 // pred_fallthru
      _
    %p199 = scmp.lt.s32.totalorder %s12, 2
    // Predicated region
    $region33: #{_lambda_.1} parent=5 // pred_check
      %p200 = pneg %p199
    $region34: #{_lambda_.1} parent=5 // pred_check_branch
      %202 = sbr.rel (%p200) target = $region36
    $region35: #{_lambda_.1} parent=5 // pred_region
      // Predicated region
      $region37: #{_lambda_.1} parent=35 // pred_check
        %p203 = pneg %p32
      $region38: #{_lambda_.1} parent=35 // pred_check_branch
        %205 = sbr.rel (%p203) target = $region40
      $region39: #{_lambda_.1} parent=35 // pred_region
        %p206 = scmp.lt.s32.totalorder %s12, 1
        %s207 = scalar_select %p206, %s12, 1
        %s208 = smul.addr %s207, 2
        %s209 = smul.addr %s208, 8
        %s210 = scalar_lea.vmem %s0, %s209
      $region40: #{_lambda_.1} parent=35 // pred_fallthru
        _
    $region36: #{_lambda_.1} parent=5 // pred_fallthru
      _
    %p211 = scmp.le.s32.totalorder 1, %s12
    %p212 = scmp.lt.s32.totalorder %s12, 3
    %p213 = pnand %p211, %p212
    %p214 = pneg %p213
    // Predicated region
    $region41: #{_lambda_.1} parent=5 // pred_check
      _
    $region42: #{_lambda_.1} parent=5 // pred_check_branch
      %216 = sbr.rel (%p213) target = $region44
    $region43: #{_lambda_.1} parent=5 // pred_region
      %s217 = ssub.s32 %s12, 1
      %p218 = scmp.lt.s32.totalorder %s17, 1
      %s219 = scalar_select %p218, %s17, 1
      %s220 = smul.addr %s219, 2
      %s221 = smul.addr %s220, 8
      %s222 = scalar_lea.vmem %s0, %s221
      %p223 = pneg %p38
      %p224 = pneg %p35
      %p225 = pneg %p59
      %p226 = pneg %p56
      %p227 = pneg %p80
      %p228 = pneg %p77
      %p229 = pneg %p101
      %p230 = pneg %p98
      %p231 = pneg %p122
      %p232 = pneg %p119
      %p233 = pneg %p143
      %p234 = pneg %p140
      %p235 = pneg %p169
      %p236 = pneg %p166
      %p237 = scmp.lt.s32.totalorder %s17, 1
      %s238 = scalar_select %p237, %s17, 1
      %s239 = smul.addr %s238, 2
      %s240 = smul.addr %s239, 8
      %s241 = scalar_lea.vmem %s6, %s240
      %p242 = scmp.lt.s32.totalorder %s17, 1
      %s243 = scalar_select %p242, %s17, 1
      %s244 = smul.addr %s243, 2
      %s245 = smul.addr %s244, 8
      %s246 = scalar_lea.vmem %s0, %s245
      %p247 = scmp.lt.s32.totalorder %s17, 1
      %s248 = scalar_select %p247, %s17, 1
      %s249 = smul.addr %s248, 2
      %s250 = smul.addr %s249, 8
      %s251 = scalar_lea.vmem %s6, %s250
      %v252 = vld [vmem:[%s246] sm:$0xff]
      %v253 = vld [vmem:[%s246 + $0x8] sm:$0xff]
      %v254 = vld [vmem:[%s1] sm:$0xff]
      %v255 = vld [vmem:[%s1 + $0x8] sm:$0xff]
      %v256 = vld [vmem:[%s1 + $0x10] sm:$0xff]
      %v257 = vld [vmem:[%s1 + $0x18] sm:$0xff]
      %v258 = vld [vmem:[%s1 + $0x20] sm:$0xff]
      %v259 = vld [vmem:[%s1 + $0x28] sm:$0xff]
      %v260 = vld [vmem:[%s1 + $0x30] sm:$0xff]
      %v261 = vld [vmem:[%s1 + $0x38] sm:$0xff]
      %v262 = vld [vmem:[%s1 + $0x40] sm:$0xff]
      %v263 = vld [vmem:[%s1 + $0x48] sm:$0xff]
      %v264 = vld [vmem:[%s1 + $0x50] sm:$0xff]
      %v265 = vld [vmem:[%s1 + $0x58] sm:$0xff]
      %v266 = vld [vmem:[%s1 + $0x60] sm:$0xff]
      %v267 = vld [vmem:[%s1 + $0x68] sm:$0xff]
      %v268 = vld [vmem:[%s1 + $0x70] sm:$0xff]
      %v269 = vld [vmem:[%s1 + $0x78] sm:$0xff]
      %v270 = vld [vmem:[%s2] sm:$0x3]
      %v272 = vlaneseq
      %v273 = vshrl.u32 %v272, 7
      %v274 = vsub.s32 0, %v273
      %v275 = vrot.slane %v270, %v274
      %v276 = vlaneseq
      %v277 = vshrl.u32 %v276, 7
      %v278 = vsub.s32 1, %v277
      %v279 = vrot.slane %v270, %v278
      %vm282 = vcmask 523264
      %v284 = vsel %vm282, %v252, 0
      %v287 = vsel %vm282, %v253, 0
      %289 = vmatprep.subr.mxu0 %v255
      %290 = vmatpush1.msra.mxu0 %v254
      %291 = vmatprep.subr.mxu0 %v257
      %292 = vmatpush1.msra.mxu0 %v256
      %293 = vmatprep.subr.mxu0 %v259
      %294 = vmatpush1.msra.mxu0 %v258
      %295 = vmatprep.subr.mxu0 %v261
      %296 = vmatpush1.msra.mxu0 %v260
      %297 = vmatprep.subr.mxu0 %v263
      %298 = vmatpush1.msra.mxu0 %v262
      %299 = vmatprep.subr.mxu0 %v265
      %300 = vmatpush1.msra.mxu0 %v264
      %301 = vmatprep.subr.mxu0 %v267
      %302 = vmatpush1.msra.mxu0 %v266
      %303 = vmatprep.subr.mxu0 %v269
      %304 = vmatpush1.msra.mxu0 %v268
      %305 = vmatprep.subr.mxu0 0.0
      %306 = vmatpush1.msra.mxu0 0.0
      %307 = vmatprep.subr.mxu0 0.0
      %308 = vmatpush1.msra.mxu0 0.0
      %309 = vmatprep.subr.mxu0 0.0
      %310 = vmatpush1.msra.mxu0 0.0
      %311 = vmatprep.subr.mxu0 0.0
      %312 = vmatpush1.msra.mxu0 0.0
      %313 = vmatprep.subr.mxu0 0.0
      %314 = vmatpush1.msra.mxu0 0.0
      %315 = vmatprep.subr.mxu0 0.0
      %316 = vmatpush1.msra.mxu0 0.0
      %317 = vmatprep.subr.mxu0 0.0
      %318 = vmatpush1.msra.mxu0 0.0
      %319 = vmatprep.subr.mxu0 0.0
      %320 = vmatpush1.msra.mxu0 0.0
      %321 = vmatprep.subr.mxu0 0.0
      %322 = vmatpush1.msra.mxu0 0.0
      %323 = vmatprep.subr.mxu0 0.0
      %324 = vmatpush1.msra.mxu0 0.0
      %325 = vmatprep.subr.mxu0 0.0
      %326 = vmatpush1.msra.mxu0 0.0
      %327 = vmatprep.subr.mxu0 0.0
      %328 = vmatpush1.msra.mxu0 0.0
      %329 = vmatprep.subr.mxu0 0.0
      %330 = vmatpush1.msra.mxu0 0.0
      %331 = vmatprep.subr.mxu0 0.0
      %332 = vmatpush1.msra.mxu0 0.0
      %333 = vmatprep.subr.mxu0 0.0
      %334 = vmatpush1.msra.mxu0 0.0
      %335 = vmatprep.subr.mxu0 0.0
      %336 = vmatpush1.msra.mxu0 0.0
      %337 = vmatprep.subr.mxu0 0.0
      %338 = vmatpush1.msra.mxu0 0.0
      %339 = vmatprep.subr.mxu0 0.0
      %340 = vmatpush1.msra.mxu0 0.0
      %341 = vmatprep.subr.mxu0 0.0
      %342 = vmatpush1.msra.mxu0 0.0
      %343 = vmatprep.subr.mxu0 0.0
      %344 = vmatpush1.msra.mxu0 0.0
      %345 = vmatprep.subr.mxu0 0.0
      %346 = vmatpush1.msra.mxu0 0.0
      %347 = vmatprep.subr.mxu0 0.0
      %348 = vmatpush1.msra.mxu0 0.0
      %349 = vmatprep.subr.mxu0 0.0
      %350 = vmatpush1.msra.mxu0 0.0
      %351 = vmatprep.subr.mxu0 0.0
      %352 = vmatpush1.msra.mxu0 0.0
      %353 = vmatprep.mubr.f32.mxu0 0.0
      %354 = vmatmul.mubr.f32.gmra.mrb[0].mxu0 %v284
      %v355 = vpop.f32.mrb[0].mxu0
      %v356 = vadd.f32 %v275, %v355
      %v357 = vpop.f32.mrb[0].mxu0
      %v358 = vadd.f32 %v279, %v357
      %359 = vmatprep.mubr.f32.mxu0 0.0
      %360 = vmatmul.mubr.f32.gmra.mrb[0].mxu0 %v287
      %v361 = vpop.f32.mrb[0].mxu0
      %v362 = vadd.f32 %v275, %v361
      %v363 = vpop.f32.mrb[0].mxu0
      %v364 = vadd.f32 %v279, %v363
      %365 = vdwg.mxu0
      %366 = vst [vmem:[#allocation5] sm:$0xff] %v356
      %367 = vst [vmem:[#allocation5 + $0x8] sm:$0xff] %v358
      %368 = vst [vmem:[#allocation5 + $0x10] sm:$0xff] %v362
      %369 = vst [vmem:[#allocation5 + $0x18] sm:$0xff] %v364
      %vm370 = vcmask 516096
      %371 = vst.msk [vmem:[#allocation2] sm:$0x1] %vm370, 0.0
      %372 = vst.msk [vmem:[#allocation3] sm:$0x1] %vm370, 0.0
      %v373 = vld [vmem:[#allocation2] sm:$0x1]
      %v374 = vld [vmem:[#allocation3] sm:$0x1]
      %v375 = vld [vmem:[#allocation5] ss:$8 sm:$0x3]
      %v376 = vld [vmem:[%s3] sm:$0xff]
      %v377 = vld [vmem:[%s3 + $0x8] sm:$0xff]
      %v378 = vld [vmem:[%s3 + $0x10] sm:$0xff]
      %v379 = vld [vmem:[%s3 + $0x18] sm:$0xff]
      %v380 = vld [vmem:[%s3 + $0x20] sm:$0xff]
      %v381 = vld [vmem:[%s3 + $0x28] sm:$0xff]
      %v382 = vld [vmem:[%s3 + $0x30] sm:$0xff]
      %v383 = vld [vmem:[%s3 + $0x38] sm:$0xff]
      %v384 = vld [vmem:[%s3 + $0x40] sm:$0xff]
      %v385 = vld [vmem:[%s3 + $0x48] sm:$0xff]
      %v386 = vld [vmem:[%s3 + $0x50] sm:$0xff]
      %v387 = vld [vmem:[%s3 + $0x58] sm:$0xff]
      %v388 = vld [vmem:[%s3 + $0x60] sm:$0xff]
      %v389 = vld [vmem:[%s3 + $0x68] sm:$0xff]
      %v390 = vld [vmem:[%s3 + $0x70] sm:$0xff]
      %v391 = vld [vmem:[%s3 + $0x78] sm:$0xff]
      %v393 = vsel %vm282, %v373, 0
      %395 = vmatprep.subr.mxu0 %v377
      %396 = vmatpush1.msra.mxu0 %v376
      %397 = vmatprep.subr.mxu0 %v379
      %398 = vmatpush1.msra.mxu0 %v378
      %399 = vmatprep.subr.mxu0 %v381
      %400 = vmatpush1.msra.mxu0 %v380
      %401 = vmatprep.subr.mxu0 %v383
      %402 = vmatpush1.msra.mxu0 %v382
      %403 = vmatprep.subr.mxu0 %v385
      %404 = vmatpush1.msra.mxu0 %v384
      %405 = vmatprep.subr.mxu0 %v387
      %406 = vmatpush1.msra.mxu0 %v386
      %407 = vmatprep.subr.mxu0 %v389
      %408 = vmatpush1.msra.mxu0 %v388
      %409 = vmatprep.subr.mxu0 %v391
      %410 = vmatpush1.msra.mxu0 %v390
      %411 = vmatprep.subr.mxu0 0.0
      %412 = vmatpush1.msra.mxu0 0.0
      %413 = vmatprep.subr.mxu0 0.0
      %414 = vmatpush1.msra.mxu0 0.0
      %415 = vmatprep.subr.mxu0 0.0
      %416 = vmatpush1.msra.mxu0 0.0
      %417 = vmatprep.subr.mxu0 0.0
      %418 = vmatpush1.msra.mxu0 0.0
      %419 = vmatprep.subr.mxu0 0.0
      %420 = vmatpush1.msra.mxu0 0.0
      %421 = vmatprep.subr.mxu0 0.0
      %422 = vmatpush1.msra.mxu0 0.0
      %423 = vmatprep.subr.mxu0 0.0
      %424 = vmatpush1.msra.mxu0 0.0
      %425 = vmatprep.subr.mxu0 0.0
      %426 = vmatpush1.msra.mxu0 0.0
      %427 = vmatprep.subr.mxu0 0.0
      %428 = vmatpush1.msra.mxu0 0.0
      %429 = vmatprep.subr.mxu0 0.0
      %430 = vmatpush1.msra.mxu0 0.0
      %431 = vmatprep.subr.mxu0 0.0
      %432 = vmatpush1.msra.mxu0 0.0
      %433 = vmatprep.subr.mxu0 0.0
      %434 = vmatpush1.msra.mxu0 0.0
      %435 = vmatprep.subr.mxu0 0.0
      %436 = vmatpush1.msra.mxu0 0.0
      %437 = vmatprep.subr.mxu0 0.0
      %438 = vmatpush1.msra.mxu0 0.0
      %439 = vmatprep.subr.mxu0 0.0
      %440 = vmatpush1.msra.mxu0 0.0
      %441 = vmatprep.subr.mxu0 0.0
      %442 = vmatpush1.msra.mxu0 0.0
      %443 = vmatprep.subr.mxu0 0.0
      %444 = vmatpush1.msra.mxu0 0.0
      %445 = vmatprep.subr.mxu0 0.0
      %446 = vmatpush1.msra.mxu0 0.0
      %447 = vmatprep.subr.mxu0 0.0
      %448 = vmatpush1.msra.mxu0 0.0
      %449 = vmatprep.subr.mxu0 0.0
      %450 = vmatpush1.msra.mxu0 0.0
      %451 = vmatprep.subr.mxu0 0.0
      %452 = vmatpush1.msra.mxu0 0.0
      %453 = vmatprep.subr.mxu0 0.0
      %454 = vmatpush1.msra.mxu0 0.0
      %455 = vmatprep.subr.mxu0 0.0
      %456 = vmatpush1.msra.mxu0 0.0
      %457 = vmatprep.subr.mxu0 0.0
      %458 = vmatpush1.msra.mxu0 0.0
      %459 = vmatprep.mubr.f32.mxu0 0.0
      %460 = vmatmul.mubr.f32.gmra.mrb[0].mxu0 %v393
      %v461 = vpop.f32.mrb[0].mxu0
      %v462 = vadd.f32 0.0, %v461
      %v463 = vpop.f32.mrb[0].mxu0
      %v464 = vadd.f32 0.0, %v463
      %465 = vdwg.mxu0
      %v468 = vcombine.low %v462, %v464
      %v470 = vunpack.c.l.s4 1966171168
      %v471 = vunpack.c.0.s8 %v470
      %v472 = vlaneseq
      %v473 = vshrl.u32 %v472, 7
      %v474 = vsub.s32 %v471, %v473
      %v475 = vrot.slane %v468, %v474
      %v477 = vunpack.c.l.s4 1966171168
      %v478 = vunpack.c.0.s8 %v477
      %v479 = vlaneseq
      %v480 = vshrl.u32 %v479, 7
      %v481 = vsub.s32 %v478, %v480
      %v482 = vrot.slane %v475, %v481
      %v484 = vadd.f32 %v375, %v482
      %v485 = vxor.u32 %v484, 2147483648
      %v486 = vmul.f32 %v485, 1.442695
      %v487 = vpow.pop %v486
      %v488 = vadd.f32 %v487, 1.0
      %v489 = vrcp.pop %v488
      %v490 = vmul.f32 1.0, %v489
      %v491 = vtanh.pop %v484
      %493 = vrot.lane.b32.xlu0 %v374, 64
      %v494 = vpop.permute.xlu0 %493
      %v496 = vmul.f32 %v490, %v494
      %v498 = vrot.slane %v491, 1
      %v500 = vmul.f32 %v490, %v498
      %502 = vrot.lane.b32.xlu0 %v500, 64
      %v503 = vpop.permute.xlu0 %502
      %v505 = vadd.f32 %v496, %v503
      %v506 = vtanh.pop %v505
      %508 = vrot.lane.b32.xlu0 %v490, 64
      %v509 = vpop.permute.xlu0 %508
      %v510 = vrot.slane %v509, 1
      %513 = vrot.lane.b32.xlu0 %v506, 64
      %v514 = vpop.permute.xlu0 %513
      %v516 = vmul.f32 %v510, %v514
      %517 = vst.msk [vmem:[#allocation2] sm:$0x1] %vm370, %v516
      %v519 = vlaneseq
      %v520 = vshrl.u32 %v519, 7
      %v521 = vsub.s32 0, %v520
      %v522 = vrot.slane %v505, %v521
      %523 = vrot.lane.b32.xlu0 %v522, 64
      %v524 = vpop.permute.xlu0 %523
      %526 = vst.msk [vmem:[#allocation3] sm:$0x1] %vm370, %v524
      %527 = vst.msk [vmem:[#allocation4] sm:$0x1] %vm370, %v516
      %v528 = vld [vmem:[#allocation2] sm:$0x1]
      %v529 = vld [vmem:[#allocation3] sm:$0x1]
      %s530 = scalar_lea.vmem [#allocation5], 1
      %v531 = vld [vmem:[%s530] ss:$8 sm:$0x3]
      %v532 = vld [vmem:[%s3] sm:$0xff]
      %v533 = vld [vmem:[%s3 + $0x8] sm:$0xff]
      %v534 = vld [vmem:[%s3 + $0x10] sm:$0xff]
      %v535 = vld [vmem:[%s3 + $0x18] sm:$0xff]
      %v536 = vld [vmem:[%s3 + $0x20] sm:$0xff]
      %v537 = vld [vmem:[%s3 + $0x28] sm:$0xff]
      %v538 = vld [vmem:[%s3 + $0x30] sm:$0xff]
      %v539 = vld [vmem:[%s3 + $0x38] sm:$0xff]
      %v540 = vld [vmem:[%s3 + $0x40] sm:$0xff]
      %v541 = vld [vmem:[%s3 + $0x48] sm:$0xff]
      %v542 = vld [vmem:[%s3 + $0x50] sm:$0xff]
      %v543 = vld [vmem:[%s3 + $0x58] sm:$0xff]
      %v544 = vld [vmem:[%s3 + $0x60] sm:$0xff]
      %v545 = vld [vmem:[%s3 + $0x68] sm:$0xff]
      %v546 = vld [vmem:[%s3 + $0x70] sm:$0xff]
      %v547 = vld [vmem:[%s3 + $0x78] sm:$0xff]
      %v549 = vsel %vm282, %v528, 0
      %551 = vmatprep.subr.mxu0 %v533
      %552 = vmatpush1.msra.mxu0 %v532
      %553 = vmatprep.subr.mxu0 %v535
      %554 = vmatpush1.msra.mxu0 %v534
      %555 = vmatprep.subr.mxu0 %v537
      %556 = vmatpush1.msra.mxu0 %v536
      %557 = vmatprep.subr.mxu0 %v539
      %558 = vmatpush1.msra.mxu0 %v538
      %559 = vmatprep.subr.mxu0 %v541
      %560 = vmatpush1.msra.mxu0 %v540
      %561 = vmatprep.subr.mxu0 %v543
      %562 = vmatpush1.msra.mxu0 %v542
      %563 = vmatprep.subr.mxu0 %v545
      %564 = vmatpush1.msra.mxu0 %v544
      %565 = vmatprep.subr.mxu0 %v547
      %566 = vmatpush1.msra.mxu0 %v546
      %567 = vmatprep.subr.mxu0 0.0
      %568 = vmatpush1.msra.mxu0 0.0
      %569 = vmatprep.subr.mxu0 0.0
      %570 = vmatpush1.msra.mxu0 0.0
      %571 = vmatprep.subr.mxu0 0.0
      %572 = vmatpush1.msra.mxu0 0.0
      %573 = vmatprep.subr.mxu0 0.0
      %574 = vmatpush1.msra.mxu0 0.0
      %575 = vmatprep.subr.mxu0 0.0
      %576 = vmatpush1.msra.mxu0 0.0
      %577 = vmatprep.subr.mxu0 0.0
      %578 = vmatpush1.msra.mxu0 0.0
      %579 = vmatprep.subr.mxu0 0.0
      %580 = vmatpush1.msra.mxu0 0.0
      %581 = vmatprep.subr.mxu0 0.0
      %582 = vmatpush1.msra.mxu0 0.0
      %583 = vmatprep.subr.mxu0 0.0
      %584 = vmatpush1.msra.mxu0 0.0
      %585 = vmatprep.subr.mxu0 0.0
      %586 = vmatpush1.msra.mxu0 0.0
      %587 = vmatprep.subr.mxu0 0.0
      %588 = vmatpush1.msra.mxu0 0.0
      %589 = vmatprep.subr.mxu0 0.0
      %590 = vmatpush1.msra.mxu0 0.0
      %591 = vmatprep.subr.mxu0 0.0
      %592 = vmatpush1.msra.mxu0 0.0
      %593 = vmatprep.subr.mxu0 0.0
      %594 = vmatpush1.msra.mxu0 0.0
      %595 = vmatprep.subr.mxu0 0.0
      %596 = vmatpush1.msra.mxu0 0.0
      %597 = vmatprep.subr.mxu0 0.0
      %598 = vmatpush1.msra.mxu0 0.0
      %599 = vmatprep.subr.mxu0 0.0
      %600 = vmatpush1.msra.mxu0 0.0
      %601 = vmatprep.subr.mxu0 0.0
      %602 = vmatpush1.msra.mxu0 0.0
      %603 = vmatprep.subr.mxu0 0.0
      %604 = vmatpush1.msra.mxu0 0.0
      %605 = vmatprep.subr.mxu0 0.0
      %606 = vmatpush1.msra.mxu0 0.0
      %607 = vmatprep.subr.mxu0 0.0
      %608 = vmatpush1.msra.mxu0 0.0
      %609 = vmatprep.subr.mxu0 0.0
      %610 = vmatpush1.msra.mxu0 0.0
      %611 = vmatprep.subr.mxu0 0.0
      %612 = vmatpush1.msra.mxu0 0.0
      %613 = vmatprep.subr.mxu0 0.0
      %614 = vmatpush1.msra.mxu0 0.0
      %615 = vmatprep.mubr.f32.mxu0 0.0
      %616 = vmatmul.mubr.f32.gmra.mrb[0].mxu0 %v549
      %v617 = vpop.f32.mrb[0].mxu0
      %v618 = vadd.f32 0.0, %v617
      %v619 = vpop.f32.mrb[0].mxu0
      %v620 = vadd.f32 0.0, %v619
      %621 = vdwg.mxu0
      %v624 = vcombine.low %v618, %v620
      %v626 = vunpack.c.l.s4 1966171168
      %v627 = vunpack.c.0.s8 %v626
      %v628 = vlaneseq
      %v629 = vshrl.u32 %v628, 7
      %v630 = vsub.s32 %v627, %v629
      %v631 = vrot.slane %v624, %v630
      %v633 = vunpack.c.l.s4 1966171168
      %v634 = vunpack.c.0.s8 %v633
      %v635 = vlaneseq
      %v636 = vshrl.u32 %v635, 7
      %v637 = vsub.s32 %v634, %v636
      %v638 = vrot.slane %v631, %v637
      %v640 = vadd.f32 %v531, %v638
      %v641 = vxor.u32 %v640, 2147483648
      %v642 = vmul.f32 %v641, 1.442695
      %v643 = vpow.pop %v642
      %v644 = vadd.f32 %v643, 1.0
      %v645 = vrcp.pop %v644
      %v646 = vmul.f32 1.0, %v645
      %v647 = vtanh.pop %v640
      %649 = vrot.lane.b32.xlu0 %v529, 64
      %v650 = vpop.permute.xlu0 %649
      %v652 = vmul.f32 %v646, %v650
      %v654 = vrot.slane %v647, 1
      %v656 = vmul.f32 %v646, %v654
      %658 = vrot.lane.b32.xlu0 %v656, 64
      %v659 = vpop.permute.xlu0 %658
      %v661 = vadd.f32 %v652, %v659
      %v662 = vtanh.pop %v661
      %664 = vrot.lane.b32.xlu0 %v646, 64
      %v665 = vpop.permute.xlu0 %664
      %v666 = vrot.slane %v665, 1
      %669 = vrot.lane.b32.xlu0 %v662, 64
      %v670 = vpop.permute.xlu0 %669
      %v672 = vmul.f32 %v666, %v670
      %673 = vst.msk [vmem:[#allocation2] sm:$0x1] %vm370, %v672
      %v675 = vlaneseq
      %v676 = vshrl.u32 %v675, 7
      %v677 = vsub.s32 0, %v676
      %v678 = vrot.slane %v661, %v677
      %679 = vrot.lane.b32.xlu0 %v678, 64
      %v680 = vpop.permute.xlu0 %679
      %682 = vst.msk [vmem:[#allocation3] sm:$0x1] %vm370, %v680
      %683 = vst.msk [vmem:[#allocation4 + $0x1] sm:$0x1] %vm370, %v672
      %v684 = vld [vmem:[#allocation2] sm:$0x1]
      %v685 = vld [vmem:[#allocation3] sm:$0x1]
      %s686 = scalar_lea.vmem [#allocation5], 2
      %v687 = vld [vmem:[%s686] ss:$8 sm:$0x3]
      %v688 = vld [vmem:[%s3] sm:$0xff]
      %v689 = vld [vmem:[%s3 + $0x8] sm:$0xff]
      %v690 = vld [vmem:[%s3 + $0x10] sm:$0xff]
      %v691 = vld [vmem:[%s3 + $0x18] sm:$0xff]
      %v692 = vld [vmem:[%s3 + $0x20] sm:$0xff]
      %v693 = vld [vmem:[%s3 + $0x28] sm:$0xff]
      %v694 = vld [vmem:[%s3 + $0x30] sm:$0xff]
      %v695 = vld [vmem:[%s3 + $0x38] sm:$0xff]
      %v696 = vld [vmem:[%s3 + $0x40] sm:$0xff]
      %v697 = vld [vmem:[%s3 + $0x48] sm:$0xff]
      %v698 = vld [vmem:[%s3 + $0x50] sm:$0xff]
      %v699 = vld [vmem:[%s3 + $0x58] sm:$0xff]
      %v700 = vld [vmem:[%s3 + $0x60] sm:$0xff]
      %v701 = vld [vmem:[%s3 + $0x68] sm:$0xff]
      %v702 = vld [vmem:[%s3 + $0x70] sm:$0xff]
      %v703 = vld [vmem:[%s3 + $0x78] sm:$0xff]
      %v705 = vsel %vm282, %v684, 0
      %707 = vmatprep.subr.mxu0 %v689
      %708 = vmatpush1.msra.mxu0 %v688
      %709 = vmatprep.subr.mxu0 %v691
      %710 = vmatpush1.msra.mxu0 %v690
      %711 = vmatprep.subr.mxu0 %v693
      %712 = vmatpush1.msra.mxu0 %v692
      %713 = vmatprep.subr.mxu0 %v695
      %714 = vmatpush1.msra.mxu0 %v694
      %715 = vmatprep.subr.mxu0 %v697
      %716 = vmatpush1.msra.mxu0 %v696
      %717 = vmatprep.subr.mxu0 %v699
      %718 = vmatpush1.msra.mxu0 %v698
      %719 = vmatprep.subr.mxu0 %v701
      %720 = vmatpush1.msra.mxu0 %v700
      %721 = vmatprep.subr.mxu0 %v703
      %722 = vmatpush1.msra.mxu0 %v702
      %723 = vmatprep.subr.mxu0 0.0
      %724 = vmatpush1.msra.mxu0 0.0
      %725 = vmatprep.subr.mxu0 0.0
      %726 = vmatpush1.msra.mxu0 0.0
      %727 = vmatprep.subr.mxu0 0.0
      %728 = vmatpush1.msra.mxu0 0.0
      %729 = vmatprep.subr.mxu0 0.0
      %730 = vmatpush1.msra.mxu0 0.0
      %731 = vmatprep.subr.mxu0 0.0
      %732 = vmatpush1.msra.mxu0 0.0
      %733 = vmatprep.subr.mxu0 0.0
      %734 = vmatpush1.msra.mxu0 0.0
      %735 = vmatprep.subr.mxu0 0.0
      %736 = vmatpush1.msra.mxu0 0.0
      %737 = vmatprep.subr.mxu0 0.0
      %738 = vmatpush1.msra.mxu0 0.0
      %739 = vmatprep.subr.mxu0 0.0
      %740 = vmatpush1.msra.mxu0 0.0
      %741 = vmatprep.subr.mxu0 0.0
      %742 = vmatpush1.msra.mxu0 0.0
      %743 = vmatprep.subr.mxu0 0.0
      %744 = vmatpush1.msra.mxu0 0.0
      %745 = vmatprep.subr.mxu0 0.0
      %746 = vmatpush1.msra.mxu0 0.0
      %747 = vmatprep.subr.mxu0 0.0
      %748 = vmatpush1.msra.mxu0 0.0
      %749 = vmatprep.subr.mxu0 0.0
      %750 = vmatpush1.msra.mxu0 0.0
      %751 = vmatprep.subr.mxu0 0.0
      %752 = vmatpush1.msra.mxu0 0.0
      %753 = vmatprep.subr.mxu0 0.0
      %754 = vmatpush1.msra.mxu0 0.0
      %755 = vmatprep.subr.mxu0 0.0
      %756 = vmatpush1.msra.mxu0 0.0
      %757 = vmatprep.subr.mxu0 0.0
      %758 = vmatpush1.msra.mxu0 0.0
      %759 = vmatprep.subr.mxu0 0.0
      %760 = vmatpush1.msra.mxu0 0.0
      %761 = vmatprep.subr.mxu0 0.0
      %762 = vmatpush1.msra.mxu0 0.0
      %763 = vmatprep.subr.mxu0 0.0
      %764 = vmatpush1.msra.mxu0 0.0
      %765 = vmatprep.subr.mxu0 0.0
      %766 = vmatpush1.msra.mxu0 0.0
      %767 = vmatprep.subr.mxu0 0.0
      %768 = vmatpush1.msra.mxu0 0.0
      %769 = vmatprep.subr.mxu0 0.0
      %770 = vmatpush1.msra.mxu0 0.0
      %771 = vmatprep.mubr.f32.mxu0 0.0
      %772 = vmatmul.mubr.f32.gmra.mrb[0].mxu0 %v705
      %v773 = vpop.f32.mrb[0].mxu0
      %v774 = vadd.f32 0.0, %v773
      %v775 = vpop.f32.mrb[0].mxu0
      %v776 = vadd.f32 0.0, %v775
      %777 = vdwg.mxu0
      %v780 = vcombine.low %v774, %v776
      %v782 = vunpack.c.l.s4 1966171168
      %v783 = vunpack.c.0.s8 %v782
      %v784 = vlaneseq
      %v785 = vshrl.u32 %v784, 7
      %v786 = vsub.s32 %v783, %v785
      %v787 = vrot.slane %v780, %v786
      %v789 = vunpack.c.l.s4 1966171168
      %v790 = vunpack.c.0.s8 %v789
      %v791 = vlaneseq
      %v792 = vshrl.u32 %v791, 7
      %v793 = vsub.s32 %v790, %v792
      %v794 = vrot.slane %v787, %v793
      %v796 = vadd.f32 %v687, %v794
      %v797 = vxor.u32 %v796, 2147483648
      %v798 = vmul.f32 %v797, 1.442695
      %v799 = vpow.pop %v798
      %v800 = vadd.f32 %v799, 1.0
      %v801 = vrcp.pop %v800
      %v802 = vmul.f32 1.0, %v801
      %v803 = vtanh.pop %v796
      %805 = vrot.lane.b32.xlu0 %v685, 64
      %v806 = vpop.permute.xlu0 %805
      %v808 = vmul.f32 %v802, %v806
      %v810 = vrot.slane %v803, 1
      %v812 = vmul.f32 %v802, %v810
      %814 = vrot.lane.b32.xlu0 %v812, 64
      %v815 = vpop.permute.xlu0 %814
      %v817 = vadd.f32 %v808, %v815
      %v818 = vtanh.pop %v817
      %820 = vrot.lane.b32.xlu0 %v802, 64
      %v821 = vpop.permute.xlu0 %820
      %v822 = vrot.slane %v821, 1
      %825 = vrot.lane.b32.xlu0 %v818, 64
      %v826 = vpop.permute.xlu0 %825
      %v828 = vmul.f32 %v822, %v826
      %829 = vst.msk [vmem:[#allocation2] sm:$0x1] %vm370, %v828
      %v831 = vlaneseq
      %v832 = vshrl.u32 %v831, 7
      %v833 = vsub.s32 0, %v832
      %v834 = vrot.slane %v817, %v833
      %835 = vrot.lane.b32.xlu0 %v834, 64
      %v836 = vpop.permute.xlu0 %835
      %838 = vst.msk [vmem:[#allocation3] sm:$0x1] %vm370, %v836
      %839 = vst.msk [vmem:[#allocation4 + $0x2] sm:$0x1] %vm370, %v828
      %v840 = vld [vmem:[#allocation2] sm:$0x1]
      %v841 = vld [vmem:[#allocation3] sm:$0x1]
      %s842 = scalar_lea.vmem [#allocation5], 3
      %v843 = vld [vmem:[%s842] ss:$8 sm:$0x3]
      %v844 = vld [vmem:[%s3] sm:$0xff]
      %v845 = vld [vmem:[%s3 + $0x8] sm:$0xff]
      %v846 = vld [vmem:[%s3 + $0x10] sm:$0xff]
      %v847 = vld [vmem:[%s3 + $0x18] sm:$0xff]
      %v848 = vld [vmem:[%s3 + $0x20] sm:$0xff]
      %v849 = vld [vmem:[%s3 + $0x28] sm:$0xff]
      %v850 = vld [vmem:[%s3 + $0x30] sm:$0xff]
      %v851 = vld [vmem:[%s3 + $0x38] sm:$0xff]
      %v852 = vld [vmem:[%s3 + $0x40] sm:$0xff]
      %v853 = vld [vmem:[%s3 + $0x48] sm:$0xff]
      %v854 = vld [vmem:[%s3 + $0x50] sm:$0xff]
      %v855 = vld [vmem:[%s3 + $0x58] sm:$0xff]
      %v856 = vld [vmem:[%s3 + $0x60] sm:$0xff]
      %v857 = vld [vmem:[%s3 + $0x68] sm:$0xff]
      %v858 = vld [vmem:[%s3 + $0x70] sm:$0xff]
      %v859 = vld [vmem:[%s3 + $0x78] sm:$0xff]
      %v861 = vsel %vm282, %v840, 0
      %863 = vmatprep.subr.mxu0 %v845
      %864 = vmatpush1.msra.mxu0 %v844
      %865 = vmatprep.subr.mxu0 %v847
      %866 = vmatpush1.msra.mxu0 %v846
      %867 = vmatprep.subr.mxu0 %v849
      %868 = vmatpush1.msra.mxu0 %v848
      %869 = vmatprep.subr.mxu0 %v851
      %870 = vmatpush1.msra.mxu0 %v850
      %871 = vmatprep.subr.mxu0 %v853
      %872 = vmatpush1.msra.mxu0 %v852
      %873 = vmatprep.subr.mxu0 %v855
      %874 = vmatpush1.msra.mxu0 %v854
      %875 = vmatprep.subr.mxu0 %v857
      %876 = vmatpush1.msra.mxu0 %v856
      %877 = vmatprep.subr.mxu0 %v859
      %878 = vmatpush1.msra.mxu0 %v858
      %879 = vmatprep.subr.mxu0 0.0
      %880 = vmatpush1.msra.mxu0 0.0
      %881 = vmatprep.subr.mxu0 0.0
      %882 = vmatpush1.msra.mxu0 0.0
      %883 = vmatprep.subr.mxu0 0.0
      %884 = vmatpush1.msra.mxu0 0.0
      %885 = vmatprep.subr.mxu0 0.0
      %886 = vmatpush1.msra.mxu0 0.0
      %887 = vmatprep.subr.mxu0 0.0
      %888 = vmatpush1.msra.mxu0 0.0
      %889 = vmatprep.subr.mxu0 0.0
      %890 = vmatpush1.msra.mxu0 0.0
      %891 = vmatprep.subr.mxu0 0.0
      %892 = vmatpush1.msra.mxu0 0.0
      %893 = vmatprep.subr.mxu0 0.0
      %894 = vmatpush1.msra.mxu0 0.0
      %895 = vmatprep.subr.mxu0 0.0
      %896 = vmatpush1.msra.mxu0 0.0
      %897 = vmatprep.subr.mxu0 0.0
      %898 = vmatpush1.msra.mxu0 0.0
      %899 = vmatprep.subr.mxu0 0.0
      %900 = vmatpush1.msra.mxu0 0.0
      %901 = vmatprep.subr.mxu0 0.0
      %902 = vmatpush1.msra.mxu0 0.0
      %903 = vmatprep.subr.mxu0 0.0
      %904 = vmatpush1.msra.mxu0 0.0
      %905 = vmatprep.subr.mxu0 0.0
      %906 = vmatpush1.msra.mxu0 0.0
      %907 = vmatprep.subr.mxu0 0.0
      %908 = vmatpush1.msra.mxu0 0.0
      %909 = vmatprep.subr.mxu0 0.0
      %910 = vmatpush1.msra.mxu0 0.0
      %911 = vmatprep.subr.mxu0 0.0
      %912 = vmatpush1.msra.mxu0 0.0
      %913 = vmatprep.subr.mxu0 0.0
      %914 = vmatpush1.msra.mxu0 0.0
      %915 = vmatprep.subr.mxu0 0.0
      %916 = vmatpush1.msra.mxu0 0.0
      %917 = vmatprep.subr.mxu0 0.0
      %918 = vmatpush1.msra.mxu0 0.0
      %919 = vmatprep.subr.mxu0 0.0
      %920 = vmatpush1.msra.mxu0 0.0
      %921 = vmatprep.subr.mxu0 0.0
      %922 = vmatpush1.msra.mxu0 0.0
      %923 = vmatprep.subr.mxu0 0.0
      %924 = vmatpush1.msra.mxu0 0.0
      %925 = vmatprep.subr.mxu0 0.0
      %926 = vmatpush1.msra.mxu0 0.0
      %927 = vmatprep.mubr.f32.mxu0 0.0
      %928 = vmatmul.mubr.f32.gmra.mrb[0].mxu0 %v861
      %v929 = vpop.f32.mrb[0].mxu0
      %v930 = vadd.f32 0.0, %v929
      %v931 = vpop.f32.mrb[0].mxu0
      %v932 = vadd.f32 0.0, %v931
      %933 = vdwg.mxu0
      %v936 = vcombine.low %v930, %v932
      %v938 = vunpack.c.l.s4 1966171168
      %v939 = vunpack.c.0.s8 %v938
      %v940 = vlaneseq
      %v941 = vshrl.u32 %v940, 7
      %v942 = vsub.s32 %v939, %v941
      %v943 = vrot.slane %v936, %v942
      %v945 = vunpack.c.l.s4 1966171168
      %v946 = vunpack.c.0.s8 %v945
      %v947 = vlaneseq
      %v948 = vshrl.u32 %v947, 7
      %v949 = vsub.s32 %v946, %v948
      %v950 = vrot.slane %v943, %v949
      %v952 = vadd.f32 %v843, %v950
      %v953 = vxor.u32 %v952, 2147483648
      %v954 = vmul.f32 %v953, 1.442695
      %v955 = vpow.pop %v954
      %v956 = vadd.f32 %v955, 1.0
      %v957 = vrcp.pop %v956
      %v958 = vmul.f32 1.0, %v957
      %v959 = vtanh.pop %v952
      %961 = vrot.lane.b32.xlu0 %v841, 64
      %v962 = vpop.permute.xlu0 %961
      %v964 = vmul.f32 %v958, %v962
      %v966 = vrot.slane %v959, 1
      %v968 = vmul.f32 %v958, %v966
      %970 = vrot.lane.b32.xlu0 %v968, 64
      %v971 = vpop.permute.xlu0 %970
      %v973 = vadd.f32 %v964, %v971
      %v974 = vtanh.pop %v973
      %976 = vrot.lane.b32.xlu0 %v958, 64
      %v977 = vpop.permute.xlu0 %976
      %v978 = vrot.slane %v977, 1
      %981 = vrot.lane.b32.xlu0 %v974, 64
      %v982 = vpop.permute.xlu0 %981
      %v984 = vmul.f32 %v978, %v982
      %985 = vst.msk [vmem:[#allocation2] sm:$0x1] %vm370, %v984
      %v987 = vlaneseq
      %v988 = vshrl.u32 %v987, 7
      %v989 = vsub.s32 0, %v988
      %v990 = vrot.slane %v973, %v989
      %991 = vrot.lane.b32.xlu0 %v990, 64
      %v992 = vpop.permute.xlu0 %991
      %994 = vst.msk [vmem:[#allocation3] sm:$0x1] %vm370, %v992
      %995 = vst.msk [vmem:[#allocation4 + $0x3] sm:$0x1] %vm370, %v984
      %v996 = vld [vmem:[#allocation2] sm:$0x1]
      %v997 = vld [vmem:[#allocation3] sm:$0x1]
      %s998 = scalar_lea.vmem [#allocation5], 4
      %v999 = vld [vmem:[%s998] ss:$8 sm:$0x3]
      %v1000 = vld [vmem:[%s3] sm:$0xff]
      %v1001 = vld [vmem:[%s3 + $0x8] sm:$0xff]
      %v1002 = vld [vmem:[%s3 + $0x10] sm:$0xff]
      %v1003 = vld [vmem:[%s3 + $0x18] sm:$0xff]
      %v1004 = vld [vmem:[%s3 + $0x20] sm:$0xff]
      %v1005 = vld [vmem:[%s3 + $0x28] sm:$0xff]
      %v1006 = vld [vmem:[%s3 + $0x30] sm:$0xff]
      %v1007 = vld [vmem:[%s3 + $0x38] sm:$0xff]
      %v1008 = vld [vmem:[%s3 + $0x40] sm:$0xff]
      %v1009 = vld [vmem:[%s3 + $0x48] sm:$0xff]
      %v1010 = vld [vmem:[%s3 + $0x50] sm:$0xff]
      %v1011 = vld [vmem:[%s3 + $0x58] sm:$0xff]
      %v1012 = vld [vmem:[%s3 + $0x60] sm:$0xff]
      %v1013 = vld [vmem:[%s3 + $0x68] sm:$0xff]
      %v1014 = vld [vmem:[%s3 + $0x70] sm:$0xff]
      %v1015 = vld [vmem:[%s3 + $0x78] sm:$0xff]
      %v1017 = vsel %vm282, %v996, 0
      %1019 = vmatprep.subr.mxu0 %v1001
      %1020 = vmatpush1.msra.mxu0 %v1000
      %1021 = vmatprep.subr.mxu0 %v1003
      %1022 = vmatpush1.msra.mxu0 %v1002
      %1023 = vmatprep.subr.mxu0 %v1005
      %1024 = vmatpush1.msra.mxu0 %v1004
      %1025 = vmatprep.subr.mxu0 %v1007
      %1026 = vmatpush1.msra.mxu0 %v1006
      %1027 = vmatprep.subr.mxu0 %v1009
      %1028 = vmatpush1.msra.mxu0 %v1008
      %1029 = vmatprep.subr.mxu0 %v1011
      %1030 = vmatpush1.msra.mxu0 %v1010
      %1031 = vmatprep.subr.mxu0 %v1013
      %1032 = vmatpush1.msra.mxu0 %v1012
      %1033 = vmatprep.subr.mxu0 %v1015
      %1034 = vmatpush1.msra.mxu0 %v1014
      %1035 = vmatprep.subr.mxu0 0.0
      %1036 = vmatpush1.msra.mxu0 0.0
      %1037 = vmatprep.subr.mxu0 0.0
      %1038 = vmatpush1.msra.mxu0 0.0
      %1039 = vmatprep.subr.mxu0 0.0
      %1040 = vmatpush1.msra.mxu0 0.0
      %1041 = vmatprep.subr.mxu0 0.0
      %1042 = vmatpush1.msra.mxu0 0.0
      %1043 = vmatprep.subr.mxu0 0.0
      %1044 = vmatpush1.msra.mxu0 0.0
      %1045 = vmatprep.subr.mxu0 0.0
      %1046 = vmatpush1.msra.mxu0 0.0
      %1047 = vmatprep.subr.mxu0 0.0
      %1048 = vmatpush1.msra.mxu0 0.0
      %1049 = vmatprep.subr.mxu0 0.0
      %1050 = vmatpush1.msra.mxu0 0.0
      %1051 = vmatprep.subr.mxu0 0.0
      %1052 = vmatpush1.msra.mxu0 0.0
      %1053 = vmatprep.subr.mxu0 0.0
      %1054 = vmatpush1.msra.mxu0 0.0
      %1055 = vmatprep.subr.mxu0 0.0
      %1056 = vmatpush1.msra.mxu0 0.0
      %1057 = vmatprep.subr.mxu0 0.0
      %1058 = vmatpush1.msra.mxu0 0.0
      %1059 = vmatprep.subr.mxu0 0.0
      %1060 = vmatpush1.msra.mxu0 0.0
      %1061 = vmatprep.subr.mxu0 0.0
      %1062 = vmatpush1.msra.mxu0 0.0
      %1063 = vmatprep.subr.mxu0 0.0
      %1064 = vmatpush1.msra.mxu0 0.0
      %1065 = vmatprep.subr.mxu0 0.0
      %1066 = vmatpush1.msra.mxu0 0.0
      %1067 = vmatprep.subr.mxu0 0.0
      %1068 = vmatpush1.msra.mxu0 0.0
      %1069 = vmatprep.subr.mxu0 0.0
      %1070 = vmatpush1.msra.mxu0 0.0
      %1071 = vmatprep.subr.mxu0 0.0
      %1072 = vmatpush1.msra.mxu0 0.0
      %1073 = vmatprep.subr.mxu0 0.0
      %1074 = vmatpush1.msra.mxu0 0.0
      %1075 = vmatprep.subr.mxu0 0.0
      %1076 = vmatpush1.msra.mxu0 0.0
      %1077 = vmatprep.subr.mxu0 0.0
      %1078 = vmatpush1.msra.mxu0 0.0
      %1079 = vmatprep.subr.mxu0 0.0
      %1080 = vmatpush1.msra.mxu0 0.0
      %1081 = vmatprep.subr.mxu0 0.0
      %1082 = vmatpush1.msra.mxu0 0.0
      %1083 = vmatprep.mubr.f32.mxu0 0.0
      %1084 = vmatmul.mubr.f32.gmra.mrb[0].mxu0 %v1017
      %v1085 = vpop.f32.mrb[0].mxu0
      %v1086 = vadd.f32 0.0, %v1085
      %v1087 = vpop.f32.mrb[0].mxu0
      %v1088 = vadd.f32 0.0, %v1087
      %1089 = vdwg.mxu0
      %v1092 = vcombine.low %v1086, %v1088
      %v1094 = vunpack.c.l.s4 1966171168
      %v1095 = vunpack.c.0.s8 %v1094
      %v1096 = vlaneseq
      %v1097 = vshrl.u32 %v1096, 7
      %v1098 = vsub.s32 %v1095, %v1097
      %v1099 = vrot.slane %v1092, %v1098
      %v1101 = vunpack.c.l.s4 1966171168
      %v1102 = vunpack.c.0.s8 %v1101
      %v1103 = vlaneseq
      %v1104 = vshrl.u32 %v1103, 7
      %v1105 = vsub.s32 %v1102, %v1104
      %v1106 = vrot.slane %v1099, %v1105
      %v1108 = vadd.f32 %v999, %v1106
      %v1109 = vxor.u32 %v1108, 2147483648
      %v1110 = vmul.f32 %v1109, 1.442695
      %v1111 = vpow.pop %v1110
      %v1112 = vadd.f32 %v1111, 1.0
      %v1113 = vrcp.pop %v1112
      %v1114 = vmul.f32 1.0, %v1113
      %v1115 = vtanh.pop %v1108
      %1117 = vrot.lane.b32.xlu0 %v997, 64
      %v1118 = vpop.permute.xlu0 %1117
      %v1120 = vmul.f32 %v1114, %v1118
      %v1122 = vrot.slane %v1115, 1
      %v1124 = vmul.f32 %v1114, %v1122
      %1126 = vrot.lane.b32.xlu0 %v1124, 64
      %v1127 = vpop.permute.xlu0 %1126
      %v1129 = vadd.f32 %v1120, %v1127
      %v1130 = vtanh.pop %v1129
      %1132 = vrot.lane.b32.xlu0 %v1114, 64
      %v1133 = vpop.permute.xlu0 %1132
      %v1134 = vrot.slane %v1133, 1
      %1137 = vrot.lane.b32.xlu0 %v1130, 64
      %v1138 = vpop.permute.xlu0 %1137
      %v1140 = vmul.f32 %v1134, %v1138
      %1141 = vst.msk [vmem:[#allocation2] sm:$0x1] %vm370, %v1140
      %v1143 = vlaneseq
      %v1144 = vshrl.u32 %v1143, 7
      %v1145 = vsub.s32 0, %v1144
      %v1146 = vrot.slane %v1129, %v1145
      %1147 = vrot.lane.b32.xlu0 %v1146, 64
      %v1148 = vpop.permute.xlu0 %1147
      %1150 = vst.msk [vmem:[#allocation3] sm:$0x1] %vm370, %v1148
      %1151 = vst.msk [vmem:[#allocation4 + $0x4] sm:$0x1] %vm370, %v1140
      %v1152 = vld [vmem:[#allocation2] sm:$0x1]
      %v1153 = vld [vmem:[#allocation3] sm:$0x1]
      %s1154 = scalar_lea.vmem [#allocation5], 5
      %v1155 = vld [vmem:[%s1154] ss:$8 sm:$0x3]
      %v1156 = vld [vmem:[%s3] sm:$0xff]
      %v1157 = vld [vmem:[%s3 + $0x8] sm:$0xff]
      %v1158 = vld [vmem:[%s3 + $0x10] sm:$0xff]
      %v1159 = vld [vmem:[%s3 + $0x18] sm:$0xff]
      %v1160 = vld [vmem:[%s3 + $0x20] sm:$0xff]
      %v1161 = vld [vmem:[%s3 + $0x28] sm:$0xff]
      %v1162 = vld [vmem:[%s3 + $0x30] sm:$0xff]
      %v1163 = vld [vmem:[%s3 + $0x38] sm:$0xff]
      %v1164 = vld [vmem:[%s3 + $0x40] sm:$0xff]
      %v1165 = vld [vmem:[%s3 + $0x48] sm:$0xff]
      %v1166 = vld [vmem:[%s3 + $0x50] sm:$0xff]
      %v1167 = vld [vmem:[%s3 + $0x58] sm:$0xff]
      %v1168 = vld [vmem:[%s3 + $0x60] sm:$0xff]
      %v1169 = vld [vmem:[%s3 + $0x68] sm:$0xff]
      %v1170 = vld [vmem:[%s3 + $0x70] sm:$0xff]
      %v1171 = vld [vmem:[%s3 + $0x78] sm:$0xff]
      %v1173 = vsel %vm282, %v1152, 0
      %1175 = vmatprep.subr.mxu0 %v1157
      %1176 = vmatpush1.msra.mxu0 %v1156
      %1177 = vmatprep.subr.mxu0 %v1159
      %1178 = vmatpush1.msra.mxu0 %v1158
      %1179 = vmatprep.subr.mxu0 %v1161
      %1180 = vmatpush1.msra.mxu0 %v1160
      %1181 = vmatprep.subr.mxu0 %v1163
      %1182 = vmatpush1.msra.mxu0 %v1162
      %1183 = vmatprep.subr.mxu0 %v1165
      %1184 = vmatpush1.msra.mxu0 %v1164
      %1185 = vmatprep.subr.mxu0 %v1167
      %1186 = vmatpush1.msra.mxu0 %v1166
      %1187 = vmatprep.subr.mxu0 %v1169
      %1188 = vmatpush1.msra.mxu0 %v1168
      %1189 = vmatprep.subr.mxu0 %v1171
      %1190 = vmatpush1.msra.mxu0 %v1170
      %1191 = vmatprep.subr.mxu0 0.0
      %1192 = vmatpush1.msra.mxu0 0.0
      %1193 = vmatprep.subr.mxu0 0.0
      %1194 = vmatpush1.msra.mxu0 0.0
      %1195 = vmatprep.subr.mxu0 0.0
      %1196 = vmatpush1.msra.mxu0 0.0
      %1197 = vmatprep.subr.mxu0 0.0
      %1198 = vmatpush1.msra.mxu0 0.0
      %1199 = vmatprep.subr.mxu0 0.0
      %1200 = vmatpush1.msra.mxu0 0.0
      %1201 = vmatprep.subr.mxu0 0.0
      %1202 = vmatpush1.msra.mxu0 0.0
      %1203 = vmatprep.subr.mxu0 0.0
      %1204 = vmatpush1.msra.mxu0 0.0
      %1205 = vmatprep.subr.mxu0 0.0
      %1206 = vmatpush1.msra.mxu0 0.0
      %1207 = vmatprep.subr.mxu0 0.0
      %1208 = vmatpush1.msra.mxu0 0.0
      %1209 = vmatprep.subr.mxu0 0.0
      %1210 = vmatpush1.msra.mxu0 0.0
      %1211 = vmatprep.subr.mxu0 0.0
      %1212 = vmatpush1.msra.mxu0 0.0
      %1213 = vmatprep.subr.mxu0 0.0
      %1214 = vmatpush1.msra.mxu0 0.0
      %1215 = vmatprep.subr.mxu0 0.0
      %1216 = vmatpush1.msra.mxu0 0.0
      %1217 = vmatprep.subr.mxu0 0.0
      %1218 = vmatpush1.msra.mxu0 0.0
      %1219 = vmatprep.subr.mxu0 0.0
      %1220 = vmatpush1.msra.mxu0 0.0
      %1221 = vmatprep.subr.mxu0 0.0
      %1222 = vmatpush1.msra.mxu0 0.0
      %1223 = vmatprep.subr.mxu0 0.0
      %1224 = vmatpush1.msra.mxu0 0.0
      %1225 = vmatprep.subr.mxu0 0.0
      %1226 = vmatpush1.msra.mxu0 0.0
      %1227 = vmatprep.subr.mxu0 0.0
      %1228 = vmatpush1.msra.mxu0 0.0
      %1229 = vmatprep.subr.mxu0 0.0
      %1230 = vmatpush1.msra.mxu0 0.0
      %1231 = vmatprep.subr.mxu0 0.0
      %1232 = vmatpush1.msra.mxu0 0.0
      %1233 = vmatprep.subr.mxu0 0.0
      %1234 = vmatpush1.msra.mxu0 0.0
      %1235 = vmatprep.subr.mxu0 0.0
      %1236 = vmatpush1.msra.mxu0 0.0
      %1237 = vmatprep.subr.mxu0 0.0
      %1238 = vmatpush1.msra.mxu0 0.0
      %1239 = vmatprep.mubr.f32.mxu0 0.0
      %1240 = vmatmul.mubr.f32.gmra.mrb[0].mxu0 %v1173
      %v1241 = vpop.f32.mrb[0].mxu0
      %v1242 = vadd.f32 0.0, %v1241
      %v1243 = vpop.f32.mrb[0].mxu0
      %v1244 = vadd.f32 0.0, %v1243
      %1245 = vdwg.mxu0
      %v1248 = vcombine.low %v1242, %v1244
      %v1250 = vunpack.c.l.s4 1966171168
      %v1251 = vunpack.c.0.s8 %v1250
      %v1252 = vlaneseq
      %v1253 = vshrl.u32 %v1252, 7
      %v1254 = vsub.s32 %v1251, %v1253
      %v1255 = vrot.slane %v1248, %v1254
      %v1257 = vunpack.c.l.s4 1966171168
      %v1258 = vunpack.c.0.s8 %v1257
      %v1259 = vlaneseq
      %v1260 = vshrl.u32 %v1259, 7
      %v1261 = vsub.s32 %v1258, %v1260
      %v1262 = vrot.slane %v1255, %v1261
      %v1264 = vadd.f32 %v1155, %v1262
      %v1265 = vxor.u32 %v1264, 2147483648
      %v1266 = vmul.f32 %v1265, 1.442695
      %v1267 = vpow.pop %v1266
      %v1268 = vadd.f32 %v1267, 1.0
      %v1269 = vrcp.pop %v1268
      %v1270 = vmul.f32 1.0, %v1269
      %v1271 = vtanh.pop %v1264
      %1273 = vrot.lane.b32.xlu0 %v1153, 64
      %v1274 = vpop.permute.xlu0 %1273
      %v1276 = vmul.f32 %v1270, %v1274
      %v1278 = vrot.slane %v1271, 1
      %v1280 = vmul.f32 %v1270, %v1278
      %1282 = vrot.lane.b32.xlu0 %v1280, 64
      %v1283 = vpop.permute.xlu0 %1282
      %v1285 = vadd.f32 %v1276, %v1283
      %v1286 = vtanh.pop %v1285
      %1288 = vrot.lane.b32.xlu0 %v1270, 64
      %v1289 = vpop.permute.xlu0 %1288
      %v1290 = vrot.slane %v1289, 1
      %1293 = vrot.lane.b32.xlu0 %v1286, 64
      %v1294 = vpop.permute.xlu0 %1293
      %v1296 = vmul.f32 %v1290, %v1294
      %1297 = vst.msk [vmem:[#allocation2] sm:$0x1] %vm370, %v1296
      %v1299 = vlaneseq
      %v1300 = vshrl.u32 %v1299, 7
      %v1301 = vsub.s32 0, %v1300
      %v1302 = vrot.slane %v1285, %v1301
      %1303 = vrot.lane.b32.xlu0 %v1302, 64
      %v1304 = vpop.permute.xlu0 %1303
      %1306 = vst.msk [vmem:[#allocation3] sm:$0x1] %vm370, %v1304
      %1307 = vst.msk [vmem:[#allocation4 + $0x5] sm:$0x1] %vm370, %v1296
      %v1308 = vld [vmem:[#allocation2] sm:$0x1]
      %v1309 = vld [vmem:[#allocation3] sm:$0x1]
      %s1310 = scalar_lea.vmem [#allocation5], 6
      %v1311 = vld [vmem:[%s1310] ss:$8 sm:$0x3]
      %v1312 = vld [vmem:[%s3] sm:$0xff]
      %v1313 = vld [vmem:[%s3 + $0x8] sm:$0xff]
      %v1314 = vld [vmem:[%s3 + $0x10] sm:$0xff]
      %v1315 = vld [vmem:[%s3 + $0x18] sm:$0xff]
      %v1316 = vld [vmem:[%s3 + $0x20] sm:$0xff]
      %v1317 = vld [vmem:[%s3 + $0x28] sm:$0xff]
      %v1318 = vld [vmem:[%s3 + $0x30] sm:$0xff]
      %v1319 = vld [vmem:[%s3 + $0x38] sm:$0xff]
      %v1320 = vld [vmem:[%s3 + $0x40] sm:$0xff]
      %v1321 = vld [vmem:[%s3 + $0x48] sm:$0xff]
      %v1322 = vld [vmem:[%s3 + $0x50] sm:$0xff]
      %v1323 = vld [vmem:[%s3 + $0x58] sm:$0xff]
      %v1324 = vld [vmem:[%s3 + $0x60] sm:$0xff]
      %v1325 = vld [vmem:[%s3 + $0x68] sm:$0xff]
      %v1326 = vld [vmem:[%s3 + $0x70] sm:$0xff]
      %v1327 = vld [vmem:[%s3 + $0x78] sm:$0xff]
      %v1329 = vsel %vm282, %v1308, 0
      %1331 = vmatprep.subr.mxu0 %v1313
      %1332 = vmatpush1.msra.mxu0 %v1312
      %1333 = vmatprep.subr.mxu0 %v1315
      %1334 = vmatpush1.msra.mxu0 %v1314
      %1335 = vmatprep.subr.mxu0 %v1317
      %1336 = vmatpush1.msra.mxu0 %v1316
      %1337 = vmatprep.subr.mxu0 %v1319
      %1338 = vmatpush1.msra.mxu0 %v1318
      %1339 = vmatprep.subr.mxu0 %v1321
      %1340 = vmatpush1.msra.mxu0 %v1320
      %1341 = vmatprep.subr.mxu0 %v1323
      %1342 = vmatpush1.msra.mxu0 %v1322
      %1343 = vmatprep.subr.mxu0 %v1325
      %1344 = vmatpush1.msra.mxu0 %v1324
      %1345 = vmatprep.subr.mxu0 %v1327
      %1346 = vmatpush1.msra.mxu0 %v1326
      %1347 = vmatprep.subr.mxu0 0.0
      %1348 = vmatpush1.msra.mxu0 0.0
      %1349 = vmatprep.subr.mxu0 0.0
      %1350 = vmatpush1.msra.mxu0 0.0
      %1351 = vmatprep.subr.mxu0 0.0
      %1352 = vmatpush1.msra.mxu0 0.0
      %1353 = vmatprep.subr.mxu0 0.0
      %1354 = vmatpush1.msra.mxu0 0.0
      %1355 = vmatprep.subr.mxu0 0.0
      %1356 = vmatpush1.msra.mxu0 0.0
      %1357 = vmatprep.subr.mxu0 0.0
      %1358 = vmatpush1.msra.mxu0 0.0
      %1359 = vmatprep.subr.mxu0 0.0
      %1360 = vmatpush1.msra.mxu0 0.0
      %1361 = vmatprep.subr.mxu0 0.0
      %1362 = vmatpush1.msra.mxu0 0.0
      %1363 = vmatprep.subr.mxu0 0.0
      %1364 = vmatpush1.msra.mxu0 0.0
      %1365 = vmatprep.subr.mxu0 0.0
      %1366 = vmatpush1.msra.mxu0 0.0
      %1367 = vmatprep.subr.mxu0 0.0
      %1368 = vmatpush1.msra.mxu0 0.0
      %1369 = vmatprep.subr.mxu0 0.0
      %1370 = vmatpush1.msra.mxu0 0.0
      %1371 = vmatprep.subr.mxu0 0.0
      %1372 = vmatpush1.msra.mxu0 0.0
      %1373 = vmatprep.subr.mxu0 0.0
      %1374 = vmatpush1.msra.mxu0 0.0
      %1375 = vmatprep.subr.mxu0 0.0
      %1376 = vmatpush1.msra.mxu0 0.0
      %1377 = vmatprep.subr.mxu0 0.0
      %1378 = vmatpush1.msra.mxu0 0.0
      %1379 = vmatprep.subr.mxu0 0.0
      %1380 = vmatpush1.msra.mxu0 0.0
      %1381 = vmatprep.subr.mxu0 0.0
      %1382 = vmatpush1.msra.mxu0 0.0
      %1383 = vmatprep.subr.mxu0 0.0
      %1384 = vmatpush1.msra.mxu0 0.0
      %1385 = vmatprep.subr.mxu0 0.0
      %1386 = vmatpush1.msra.mxu0 0.0
      %1387 = vmatprep.subr.mxu0 0.0
      %1388 = vmatpush1.msra.mxu0 0.0
      %1389 = vmatprep.subr.mxu0 0.0
      %1390 = vmatpush1.msra.mxu0 0.0
      %1391 = vmatprep.subr.mxu0 0.0
      %1392 = vmatpush1.msra.mxu0 0.0
      %1393 = vmatprep.subr.mxu0 0.0
      %1394 = vmatpush1.msra.mxu0 0.0
      %1395 = vmatprep.mubr.f32.mxu0 0.0
      %1396 = vmatmul.mubr.f32.gmra.mrb[0].mxu0 %v1329
      %v1397 = vpop.f32.mrb[0].mxu0
      %v1398 = vadd.f32 0.0, %v1397
      %v1399 = vpop.f32.mrb[0].mxu0
      %v1400 = vadd.f32 0.0, %v1399
      %1401 = vdwg.mxu0
      %v1404 = vcombine.low %v1398, %v1400
      %v1406 = vunpack.c.l.s4 1966171168
      %v1407 = vunpack.c.0.s8 %v1406
      %v1408 = vlaneseq
      %v1409 = vshrl.u32 %v1408, 7
      %v1410 = vsub.s32 %v1407, %v1409
      %v1411 = vrot.slane %v1404, %v1410
      %v1413 = vunpack.c.l.s4 1966171168
      %v1414 = vunpack.c.0.s8 %v1413
      %v1415 = vlaneseq
      %v1416 = vshrl.u32 %v1415, 7
      %v1417 = vsub.s32 %v1414, %v1416
      %v1418 = vrot.slane %v1411, %v1417
      %v1420 = vadd.f32 %v1311, %v1418
      %v1421 = vxor.u32 %v1420, 2147483648
      %v1422 = vmul.f32 %v1421, 1.442695
      %v1423 = vpow.pop %v1422
      %v1424 = vadd.f32 %v1423, 1.0
      %v1425 = vrcp.pop %v1424
      %v1426 = vmul.f32 1.0, %v1425
      %v1427 = vtanh.pop %v1420
      %1429 = vrot.lane.b32.xlu0 %v1309, 64
      %v1430 = vpop.permute.xlu0 %1429
      %v1432 = vmul.f32 %v1426, %v1430
      %v1434 = vrot.slane %v1427, 1
      %v1436 = vmul.f32 %v1426, %v1434
      %1438 = vrot.lane.b32.xlu0 %v1436, 64
      %v1439 = vpop.permute.xlu0 %1438
      %v1441 = vadd.f32 %v1432, %v1439
      %v1442 = vtanh.pop %v1441
      %1444 = vrot.lane.b32.xlu0 %v1426, 64
      %v1445 = vpop.permute.xlu0 %1444
      %v1446 = vrot.slane %v1445, 1
      %1449 = vrot.lane.b32.xlu0 %v1442, 64
      %v1450 = vpop.permute.xlu0 %1449
      %v1452 = vmul.f32 %v1446, %v1450
      %1453 = vst.msk [vmem:[#allocation2] sm:$0x1] %vm370, %v1452
      %v1455 = vlaneseq
      %v1456 = vshrl.u32 %v1455, 7
      %v1457 = vsub.s32 0, %v1456
      %v1458 = vrot.slane %v1441, %v1457
      %1459 = vrot.lane.b32.xlu0 %v1458, 64
      %v1460 = vpop.permute.xlu0 %1459
      %1462 = vst.msk [vmem:[#allocation3] sm:$0x1] %vm370, %v1460
      %1463 = vst.msk [vmem:[#allocation4 + $0x6] sm:$0x1] %vm370, %v1452
      %v1464 = vld [vmem:[#allocation2] sm:$0x1]
      %v1465 = vld [vmem:[#allocation3] sm:$0x1]
      %s1466 = scalar_lea.vmem [#allocation5], 7
      %v1467 = vld [vmem:[%s1466] ss:$8 sm:$0x3]
      %v1468 = vld [vmem:[%s3] sm:$0xff]
      %v1469 = vld [vmem:[%s3 + $0x8] sm:$0xff]
      %v1470 = vld [vmem:[%s3 + $0x10] sm:$0xff]
      %v1471 = vld [vmem:[%s3 + $0x18] sm:$0xff]
      %v1472 = vld [vmem:[%s3 + $0x20] sm:$0xff]
      %v1473 = vld [vmem:[%s3 + $0x28] sm:$0xff]
      %v1474 = vld [vmem:[%s3 + $0x30] sm:$0xff]
      %v1475 = vld [vmem:[%s3 + $0x38] sm:$0xff]
      %v1476 = vld [vmem:[%s3 + $0x40] sm:$0xff]
      %v1477 = vld [vmem:[%s3 + $0x48] sm:$0xff]
      %v1478 = vld [vmem:[%s3 + $0x50] sm:$0xff]
      %v1479 = vld [vmem:[%s3 + $0x58] sm:$0xff]
      %v1480 = vld [vmem:[%s3 + $0x60] sm:$0xff]
      %v1481 = vld [vmem:[%s3 + $0x68] sm:$0xff]
      %v1482 = vld [vmem:[%s3 + $0x70] sm:$0xff]
      %v1483 = vld [vmem:[%s3 + $0x78] sm:$0xff]
      %v1485 = vsel %vm282, %v1464, 0
      %1487 = vmatprep.subr.mxu0 %v1469
      %1488 = vmatpush1.msra.mxu0 %v1468
      %1489 = vmatprep.subr.mxu0 %v1471
      %1490 = vmatpush1.msra.mxu0 %v1470
      %1491 = vmatprep.subr.mxu0 %v1473
      %1492 = vmatpush1.msra.mxu0 %v1472
      %1493 = vmatprep.subr.mxu0 %v1475
      %1494 = vmatpush1.msra.mxu0 %v1474
      %1495 = vmatprep.subr.mxu0 %v1477
      %1496 = vmatpush1.msra.mxu0 %v1476
      %1497 = vmatprep.subr.mxu0 %v1479
      %1498 = vmatpush1.msra.mxu0 %v1478
      %1499 = vmatprep.subr.mxu0 %v1481
      %1500 = vmatpush1.msra.mxu0 %v1480
      %1501 = vmatprep.subr.mxu0 %v1483
      %1502 = vmatpush1.msra.mxu0 %v1482
      %1503 = vmatprep.subr.mxu0 0.0
      %1504 = vmatpush1.msra.mxu0 0.0
      %1505 = vmatprep.subr.mxu0 0.0
      %1506 = vmatpush1.msra.mxu0 0.0
      %1507 = vmatprep.subr.mxu0 0.0
      %1508 = vmatpush1.msra.mxu0 0.0
      %1509 = vmatprep.subr.mxu0 0.0
      %1510 = vmatpush1.msra.mxu0 0.0
      %1511 = vmatprep.subr.mxu0 0.0
      %1512 = vmatpush1.msra.mxu0 0.0
      %1513 = vmatprep.subr.mxu0 0.0
      %1514 = vmatpush1.msra.mxu0 0.0
      %1515 = vmatprep.subr.mxu0 0.0
      %1516 = vmatpush1.msra.mxu0 0.0
      %1517 = vmatprep.subr.mxu0 0.0
      %1518 = vmatpush1.msra.mxu0 0.0
      %1519 = vmatprep.subr.mxu0 0.0
      %1520 = vmatpush1.msra.mxu0 0.0
      %1521 = vmatprep.subr.mxu0 0.0
      %1522 = vmatpush1.msra.mxu0 0.0
      %1523 = vmatprep.subr.mxu0 0.0
      %1524 = vmatpush1.msra.mxu0 0.0
      %1525 = vmatprep.subr.mxu0 0.0
      %1526 = vmatpush1.msra.mxu0 0.0
      %1527 = vmatprep.subr.mxu0 0.0
      %1528 = vmatpush1.msra.mxu0 0.0
      %1529 = vmatprep.subr.mxu0 0.0
      %1530 = vmatpush1.msra.mxu0 0.0
      %1531 = vmatprep.subr.mxu0 0.0
      %1532 = vmatpush1.msra.mxu0 0.0
      %1533 = vmatprep.subr.mxu0 0.0
      %1534 = vmatpush1.msra.mxu0 0.0
      %1535 = vmatprep.subr.mxu0 0.0
      %1536 = vmatpush1.msra.mxu0 0.0
      %1537 = vmatprep.subr.mxu0 0.0
      %1538 = vmatpush1.msra.mxu0 0.0
      %1539 = vmatprep.subr.mxu0 0.0
      %1540 = vmatpush1.msra.mxu0 0.0
      %1541 = vmatprep.subr.mxu0 0.0
      %1542 = vmatpush1.msra.mxu0 0.0
      %1543 = vmatprep.subr.mxu0 0.0
      %1544 = vmatpush1.msra.mxu0 0.0
      %1545 = vmatprep.subr.mxu0 0.0
      %1546 = vmatpush1.msra.mxu0 0.0
      %1547 = vmatprep.subr.mxu0 0.0
      %1548 = vmatpush1.msra.mxu0 0.0
      %1549 = vmatprep.subr.mxu0 0.0
      %1550 = vmatpush1.msra.mxu0 0.0
      %1551 = vmatprep.mubr.f32.mxu0 0.0
      %1552 = vmatmul.mubr.f32.gmra.mrb[0].mxu0 %v1485
      %v1553 = vpop.f32.mrb[0].mxu0
      %v1554 = vadd.f32 0.0, %v1553
      %v1555 = vpop.f32.mrb[0].mxu0
      %v1556 = vadd.f32 0.0, %v1555
      %1557 = vdwg.mxu0
      %v1560 = vcombine.low %v1554, %v1556
      %v1562 = vunpack.c.l.s4 1966171168
      %v1563 = vunpack.c.0.s8 %v1562
      %v1564 = vlaneseq
      %v1565 = vshrl.u32 %v1564, 7
      %v1566 = vsub.s32 %v1563, %v1565
      %v1567 = vrot.slane %v1560, %v1566
      %v1569 = vunpack.c.l.s4 1966171168
      %v1570 = vunpack.c.0.s8 %v1569
      %v1571 = vlaneseq
      %v1572 = vshrl.u32 %v1571, 7
      %v1573 = vsub.s32 %v1570, %v1572
      %v1574 = vrot.slane %v1567, %v1573
      %v1576 = vadd.f32 %v1467, %v1574
      %v1577 = vxor.u32 %v1576, 2147483648
      %v1578 = vmul.f32 %v1577, 1.442695
      %v1579 = vpow.pop %v1578
      %v1580 = vadd.f32 %v1579, 1.0
      %v1581 = vrcp.pop %v1580
      %v1582 = vmul.f32 1.0, %v1581
      %v1583 = vtanh.pop %v1576
      %1585 = vrot.lane.b32.xlu0 %v1465, 64
      %v1586 = vpop.permute.xlu0 %1585
      %v1588 = vmul.f32 %v1582, %v1586
      %v1590 = vrot.slane %v1583, 1
      %v1592 = vmul.f32 %v1582, %v1590
      %1594 = vrot.lane.b32.xlu0 %v1592, 64
      %v1595 = vpop.permute.xlu0 %1594
      %v1597 = vadd.f32 %v1588, %v1595
      %v1598 = vtanh.pop %v1597
      %1600 = vrot.lane.b32.xlu0 %v1582, 64
      %v1601 = vpop.permute.xlu0 %1600
      %v1602 = vrot.slane %v1601, 1
      %1605 = vrot.lane.b32.xlu0 %v1598, 64
      %v1606 = vpop.permute.xlu0 %1605
      %v1608 = vmul.f32 %v1602, %v1606
      %1609 = vst.msk [vmem:[#allocation2] sm:$0x1] %vm370, %v1608
      %v1611 = vlaneseq
      %v1612 = vshrl.u32 %v1611, 7
      %v1613 = vsub.s32 0, %v1612
      %v1614 = vrot.slane %v1597, %v1613
      %1615 = vrot.lane.b32.xlu0 %v1614, 64
      %v1616 = vpop.permute.xlu0 %1615
      %1618 = vst.msk [vmem:[#allocation3] sm:$0x1] %vm370, %v1616
      %1619 = vst.msk [vmem:[#allocation4 + $0x7] sm:$0x1] %vm370, %v1608
      %v1620 = vld [vmem:[#allocation2] sm:$0x1]
      %v1621 = vld [vmem:[#allocation3] sm:$0x1]
      %s1622 = scalar_lea.vmem [#allocation5], 16
      %v1623 = vld [vmem:[%s1622] ss:$8 sm:$0x3]
      %v1624 = vld [vmem:[%s3] sm:$0xff]
      %v1625 = vld [vmem:[%s3 + $0x8] sm:$0xff]
      %v1626 = vld [vmem:[%s3 + $0x10] sm:$0xff]
      %v1627 = vld [vmem:[%s3 + $0x18] sm:$0xff]
      %v1628 = vld [vmem:[%s3 + $0x20] sm:$0xff]
      %v1629 = vld [vmem:[%s3 + $0x28] sm:$0xff]
      %v1630 = vld [vmem:[%s3 + $0x30] sm:$0xff]
      %v1631 = vld [vmem:[%s3 + $0x38] sm:$0xff]
      %v1632 = vld [vmem:[%s3 + $0x40] sm:$0xff]
      %v1633 = vld [vmem:[%s3 + $0x48] sm:$0xff]
      %v1634 = vld [vmem:[%s3 + $0x50] sm:$0xff]
      %v1635 = vld [vmem:[%s3 + $0x58] sm:$0xff]
      %v1636 = vld [vmem:[%s3 + $0x60] sm:$0xff]
      %v1637 = vld [vmem:[%s3 + $0x68] sm:$0xff]
      %v1638 = vld [vmem:[%s3 + $0x70] sm:$0xff]
      %v1639 = vld [vmem:[%s3 + $0x78] sm:$0xff]
      %v1641 = vsel %vm282, %v1620, 0
      %1643 = vmatprep.subr.mxu0 %v1625
      %1644 = vmatpush1.msra.mxu0 %v1624
      %1645 = vmatprep.subr.mxu0 %v1627
      %1646 = vmatpush1.msra.mxu0 %v1626
      %1647 = vmatprep.subr.mxu0 %v1629
      %1648 = vmatpush1.msra.mxu0 %v1628
      %1649 = vmatprep.subr.mxu0 %v1631
      %1650 = vmatpush1.msra.mxu0 %v1630
      %1651 = vmatprep.subr.mxu0 %v1633
      %1652 = vmatpush1.msra.mxu0 %v1632
      %1653 = vmatprep.subr.mxu0 %v1635
      %1654 = vmatpush1.msra.mxu0 %v1634
      %1655 = vmatprep.subr.mxu0 %v1637
      %1656 = vmatpush1.msra.mxu0 %v1636
      %1657 = vmatprep.subr.mxu0 %v1639
      %1658 = vmatpush1.msra.mxu0 %v1638
      %1659 = vmatprep.subr.mxu0 0.0
      %1660 = vmatpush1.msra.mxu0 0.0
      %1661 = vmatprep.subr.mxu0 0.0
      %1662 = vmatpush1.msra.mxu0 0.0
      %1663 = vmatprep.subr.mxu0 0.0
      %1664 = vmatpush1.msra.mxu0 0.0
      %1665 = vmatprep.subr.mxu0 0.0
      %1666 = vmatpush1.msra.mxu0 0.0
      %1667 = vmatprep.subr.mxu0 0.0
      %1668 = vmatpush1.msra.mxu0 0.0
      %1669 = vmatprep.subr.mxu0 0.0
      %1670 = vmatpush1.msra.mxu0 0.0
      %1671 = vmatprep.subr.mxu0 0.0
      %1672 = vmatpush1.msra.mxu0 0.0
      %1673 = vmatprep.subr.mxu0 0.0
      %1674 = vmatpush1.msra.mxu0 0.0
      %1675 = vmatprep.subr.mxu0 0.0
      %1676 = vmatpush1.msra.mxu0 0.0
      %1677 = vmatprep.subr.mxu0 0.0
      %1678 = vmatpush1.msra.mxu0 0.0
      %1679 = vmatprep.subr.mxu0 0.0
      %1680 = vmatpush1.msra.mxu0 0.0
      %1681 = vmatprep.subr.mxu0 0.0
      %1682 = vmatpush1.msra.mxu0 0.0
      %1683 = vmatprep.subr.mxu0 0.0
      %1684 = vmatpush1.msra.mxu0 0.0
      %1685 = vmatprep.subr.mxu0 0.0
      %1686 = vmatpush1.msra.mxu0 0.0
      %1687 = vmatprep.subr.mxu0 0.0
      %1688 = vmatpush1.msra.mxu0 0.0
      %1689 = vmatprep.subr.mxu0 0.0
      %1690 = vmatpush1.msra.mxu0 0.0
      %1691 = vmatprep.subr.mxu0 0.0
      %1692 = vmatpush1.msra.mxu0 0.0
      %1693 = vmatprep.subr.mxu0 0.0
      %1694 = vmatpush1.msra.mxu0 0.0
      %1695 = vmatprep.subr.mxu0 0.0
      %1696 = vmatpush1.msra.mxu0 0.0
      %1697 = vmatprep.subr.mxu0 0.0
      %1698 = vmatpush1.msra.mxu0 0.0
      %1699 = vmatprep.subr.mxu0 0.0
      %1700 = vmatpush1.msra.mxu0 0.0
      %1701 = vmatprep.subr.mxu0 0.0
      %1702 = vmatpush1.msra.mxu0 0.0
      %1703 = vmatprep.subr.mxu0 0.0
      %1704 = vmatpush1.msra.mxu0 0.0
      %1705 = vmatprep.subr.mxu0 0.0
      %1706 = vmatpush1.msra.mxu0 0.0
      %1707 = vmatprep.mubr.f32.mxu0 0.0
      %1708 = vmatmul.mubr.f32.gmra.mrb[0].mxu0 %v1641
      %v1709 = vpop.f32.mrb[0].mxu0
      %v1710 = vadd.f32 0.0, %v1709
      %v1711 = vpop.f32.mrb[0].mxu0
      %v1712 = vadd.f32 0.0, %v1711
      %1713 = vdwg.mxu0
      %v1716 = vcombine.low %v1710, %v1712
      %v1718 = vunpack.c.l.s4 1966171168
      %v1719 = vunpack.c.0.s8 %v1718
      %v1720 = vlaneseq
      %v1721 = vshrl.u32 %v1720, 7
      %v1722 = vsub.s32 %v1719, %v1721
      %v1723 = vrot.slane %v1716, %v1722
      %v1725 = vunpack.c.l.s4 1966171168
      %v1726 = vunpack.c.0.s8 %v1725
      %v1727 = vlaneseq
      %v1728 = vshrl.u32 %v1727, 7
      %v1729 = vsub.s32 %v1726, %v1728
      %v1730 = vrot.slane %v1723, %v1729
      %v1732 = vadd.f32 %v1623, %v1730
      %v1733 = vxor.u32 %v1732, 2147483648
      %v1734 = vmul.f32 %v1733, 1.442695
      %v1735 = vpow.pop %v1734
      %v1736 = vadd.f32 %v1735, 1.0
      %v1737 = vrcp.pop %v1736
      %v1738 = vmul.f32 1.0, %v1737
      %v1739 = vtanh.pop %v1732
      %1741 = vrot.lane.b32.xlu0 %v1621, 64
      %v1742 = vpop.permute.xlu0 %1741
      %v1744 = vmul.f32 %v1738, %v1742
      %v1746 = vrot.slane %v1739, 1
      %v1748 = vmul.f32 %v1738, %v1746
      %1750 = vrot.lane.b32.xlu0 %v1748, 64
      %v1751 = vpop.permute.xlu0 %1750
      %v1753 = vadd.f32 %v1744, %v1751
      %v1754 = vtanh.pop %v1753
      %1756 = vrot.lane.b32.xlu0 %v1738, 64
      %v1757 = vpop.permute.xlu0 %1756
      %v1758 = vrot.slane %v1757, 1
      %1761 = vrot.lane.b32.xlu0 %v1754, 64
      %v1762 = vpop.permute.xlu0 %1761
      %v1764 = vmul.f32 %v1758, %v1762
      %1765 = vst.msk [vmem:[#allocation2] sm:$0x1] %vm370, %v1764
      %v1767 = vlaneseq
      %v1768 = vshrl.u32 %v1767, 7
      %v1769 = vsub.s32 0, %v1768
      %v1770 = vrot.slane %v1753, %v1769
      %1771 = vrot.lane.b32.xlu0 %v1770, 64
      %v1772 = vpop.permute.xlu0 %1771
      %1774 = vst.msk [vmem:[#allocation3] sm:$0x1] %vm370, %v1772
      %1775 = vst.msk [vmem:[#allocation4 + $0x8] sm:$0x1] %vm370, %v1764
      %v1776 = vld [vmem:[#allocation2] sm:$0x1]
      %v1777 = vld [vmem:[#allocation3] sm:$0x1]
      %s1778 = scalar_lea.vmem [#allocation5], 17
      %v1779 = vld [vmem:[%s1778] ss:$8 sm:$0x3]
      %v1780 = vld [vmem:[%s3] sm:$0xff]
      %v1781 = vld [vmem:[%s3 + $0x8] sm:$0xff]
      %v1782 = vld [vmem:[%s3 + $0x10] sm:$0xff]
      %v1783 = vld [vmem:[%s3 + $0x18] sm:$0xff]
      %v1784 = vld [vmem:[%s3 + $0x20] sm:$0xff]
      %v1785 = vld [vmem:[%s3 + $0x28] sm:$0xff]
      %v1786 = vld [vmem:[%s3 + $0x30] sm:$0xff]
      %v1787 = vld [vmem:[%s3 + $0x38] sm:$0xff]
      %v1788 = vld [vmem:[%s3 + $0x40] sm:$0xff]
      %v1789 = vld [vmem:[%s3 + $0x48] sm:$0xff]
      %v1790 = vld [vmem:[%s3 + $0x50] sm:$0xff]
      %v1791 = vld [vmem:[%s3 + $0x58] sm:$0xff]
      %v1792 = vld [vmem:[%s3 + $0x60] sm:$0xff]
      %v1793 = vld [vmem:[%s3 + $0x68] sm:$0xff]
      %v1794 = vld [vmem:[%s3 + $0x70] sm:$0xff]
      %v1795 = vld [vmem:[%s3 + $0x78] sm:$0xff]
      %v1797 = vsel %vm282, %v1776, 0
      %1799 = vmatprep.subr.mxu0 %v1781
      %1800 = vmatpush1.msra.mxu0 %v1780
      %1801 = vmatprep.subr.mxu0 %v1783
      %1802 = vmatpush1.msra.mxu0 %v1782
      %1803 = vmatprep.subr.mxu0 %v1785
      %1804 = vmatpush1.msra.mxu0 %v1784
      %1805 = vmatprep.subr.mxu0 %v1787
      %1806 = vmatpush1.msra.mxu0 %v1786
      %1807 = vmatprep.subr.mxu0 %v1789
      %1808 = vmatpush1.msra.mxu0 %v1788
      %1809 = vmatprep.subr.mxu0 %v1791
      %1810 = vmatpush1.msra.mxu0 %v1790
      %1811 = vmatprep.subr.mxu0 %v1793
      %1812 = vmatpush1.msra.mxu0 %v1792
      %1813 = vmatprep.subr.mxu0 %v1795
      %1814 = vmatpush1.msra.mxu0 %v1794
      %1815 = vmatprep.subr.mxu0 0.0
      %1816 = vmatpush1.msra.mxu0 0.0
      %1817 = vmatprep.subr.mxu0 0.0
      %1818 = vmatpush1.msra.mxu0 0.0
      %1819 = vmatprep.subr.mxu0 0.0
      %1820 = vmatpush1.msra.mxu0 0.0
      %1821 = vmatprep.subr.mxu0 0.0
      %1822 = vmatpush1.msra.mxu0 0.0
      %1823 = vmatprep.subr.mxu0 0.0
      %1824 = vmatpush1.msra.mxu0 0.0
      %1825 = vmatprep.subr.mxu0 0.0
      %1826 = vmatpush1.msra.mxu0 0.0
      %1827 = vmatprep.subr.mxu0 0.0
      %1828 = vmatpush1.msra.mxu0 0.0
      %1829 = vmatprep.subr.mxu0 0.0
      %1830 = vmatpush1.msra.mxu0 0.0
      %1831 = vmatprep.subr.mxu0 0.0
      %1832 = vmatpush1.msra.mxu0 0.0
      %1833 = vmatprep.subr.mxu0 0.0
      %1834 = vmatpush1.msra.mxu0 0.0
      %1835 = vmatprep.subr.mxu0 0.0
      %1836 = vmatpush1.msra.mxu0 0.0
      %1837 = vmatprep.subr.mxu0 0.0
      %1838 = vmatpush1.msra.mxu0 0.0
      %1839 = vmatprep.subr.mxu0 0.0
      %1840 = vmatpush1.msra.mxu0 0.0
      %1841 = vmatprep.subr.mxu0 0.0
      %1842 = vmatpush1.msra.mxu0 0.0
      %1843 = vmatprep.subr.mxu0 0.0
      %1844 = vmatpush1.msra.mxu0 0.0
      %1845 = vmatprep.subr.mxu0 0.0
      %1846 = vmatpush1.msra.mxu0 0.0
      %1847 = vmatprep.subr.mxu0 0.0
      %1848 = vmatpush1.msra.mxu0 0.0
      %1849 = vmatprep.subr.mxu0 0.0
      %1850 = vmatpush1.msra.mxu0 0.0
      %1851 = vmatprep.subr.mxu0 0.0
      %1852 = vmatpush1.msra.mxu0 0.0
      %1853 = vmatprep.subr.mxu0 0.0
      %1854 = vmatpush1.msra.mxu0 0.0
      %1855 = vmatprep.subr.mxu0 0.0
      %1856 = vmatpush1.msra.mxu0 0.0
      %1857 = vmatprep.subr.mxu0 0.0
      %1858 = vmatpush1.msra.mxu0 0.0
      %1859 = vmatprep.subr.mxu0 0.0
      %1860 = vmatpush1.msra.mxu0 0.0
      %1861 = vmatprep.subr.mxu0 0.0
      %1862 = vmatpush1.msra.mxu0 0.0
      %1863 = vmatprep.mubr.f32.mxu0 0.0
      %1864 = vmatmul.mubr.f32.gmra.mrb[0].mxu0 %v1797
      %v1865 = vpop.f32.mrb[0].mxu0
      %v1866 = vadd.f32 0.0, %v1865
      %v1867 = vpop.f32.mrb[0].mxu0
      %v1868 = vadd.f32 0.0, %v1867
      %1869 = vdwg.mxu0
      %v1872 = vcombine.low %v1866, %v1868
      %v1874 = vunpack.c.l.s4 1966171168
      %v1875 = vunpack.c.0.s8 %v1874
      %v1876 = vlaneseq
      %v1877 = vshrl.u32 %v1876, 7
      %v1878 = vsub.s32 %v1875, %v1877
      %v1879 = vrot.slane %v1872, %v1878
      %v1881 = vunpack.c.l.s4 1966171168
      %v1882 = vunpack.c.0.s8 %v1881
      %v1883 = vlaneseq
      %v1884 = vshrl.u32 %v1883, 7
      %v1885 = vsub.s32 %v1882, %v1884
      %v1886 = vrot.slane %v1879, %v1885
      %v1888 = vadd.f32 %v1779, %v1886
      %v1889 = vxor.u32 %v1888, 2147483648
      %v1890 = vmul.f32 %v1889, 1.442695
      %v1891 = vpow.pop %v1890
      %v1892 = vadd.f32 %v1891, 1.0
      %v1893 = vrcp.pop %v1892
      %v1894 = vmul.f32 1.0, %v1893
      %v1895 = vtanh.pop %v1888
      %1897 = vrot.lane.b32.xlu0 %v1777, 64
      %v1898 = vpop.permute.xlu0 %1897
      %v1900 = vmul.f32 %v1894, %v1898
      %v1902 = vrot.slane %v1895, 1
      %v1904 = vmul.f32 %v1894, %v1902
      %1906 = vrot.lane.b32.xlu0 %v1904, 64
      %v1907 = vpop.permute.xlu0 %1906
      %v1909 = vadd.f32 %v1900, %v1907
      %v1910 = vtanh.pop %v1909
      %1912 = vrot.lane.b32.xlu0 %v1894, 64
      %v1913 = vpop.permute.xlu0 %1912
      %v1914 = vrot.slane %v1913, 1
      %1917 = vrot.lane.b32.xlu0 %v1910, 64
      %v1918 = vpop.permute.xlu0 %1917
      %v1920 = vmul.f32 %v1914, %v1918
      %1921 = vst.msk [vmem:[#allocation2] sm:$0x1] %vm370, %v1920
      %v1923 = vlaneseq
      %v1924 = vshrl.u32 %v1923, 7
      %v1925 = vsub.s32 0, %v1924
      %v1926 = vrot.slane %v1909, %v1925
      %1927 = vrot.lane.b32.xlu0 %v1926, 64
      %v1928 = vpop.permute.xlu0 %1927
      %1930 = vst.msk [vmem:[#allocation3] sm:$0x1] %vm370, %v1928
      %1931 = vst.msk [vmem:[#allocation4 + $0x9] sm:$0x1] %vm370, %v1920
      %v1932 = vld [vmem:[#allocation2] sm:$0x1]
      %v1933 = vld [vmem:[#allocation3] sm:$0x1]
      %s1934 = scalar_lea.vmem [#allocation5], 18
      %v1935 = vld [vmem:[%s1934] ss:$8 sm:$0x3]
      %v1936 = vld [vmem:[%s3] sm:$0xff]
      %v1937 = vld [vmem:[%s3 + $0x8] sm:$0xff]
      %v1938 = vld [vmem:[%s3 + $0x10] sm:$0xff]
      %v1939 = vld [vmem:[%s3 + $0x18] sm:$0xff]
      %v1940 = vld [vmem:[%s3 + $0x20] sm:$0xff]
      %v1941 = vld [vmem:[%s3 + $0x28] sm:$0xff]
      %v1942 = vld [vmem:[%s3 + $0x30] sm:$0xff]
      %v1943 = vld [vmem:[%s3 + $0x38] sm:$0xff]
      %v1944 = vld [vmem:[%s3 + $0x40] sm:$0xff]
      %v1945 = vld [vmem:[%s3 + $0x48] sm:$0xff]
      %v1946 = vld [vmem:[%s3 + $0x50] sm:$0xff]
      %v1947 = vld [vmem:[%s3 + $0x58] sm:$0xff]
      %v1948 = vld [vmem:[%s3 + $0x60] sm:$0xff]
      %v1949 = vld [vmem:[%s3 + $0x68] sm:$0xff]
      %v1950 = vld [vmem:[%s3 + $0x70] sm:$0xff]
      %v1951 = vld [vmem:[%s3 + $0x78] sm:$0xff]
      %v1953 = vsel %vm282, %v1932, 0
      %1955 = vmatprep.subr.mxu0 %v1937
      %1956 = vmatpush1.msra.mxu0 %v1936
      %1957 = vmatprep.subr.mxu0 %v1939
      %1958 = vmatpush1.msra.mxu0 %v1938
      %1959 = vmatprep.subr.mxu0 %v1941
      %1960 = vmatpush1.msra.mxu0 %v1940
      %1961 = vmatprep.subr.mxu0 %v1943
      %1962 = vmatpush1.msra.mxu0 %v1942
      %1963 = vmatprep.subr.mxu0 %v1945
      %1964 = vmatpush1.msra.mxu0 %v1944
      %1965 = vmatprep.subr.mxu0 %v1947
      %1966 = vmatpush1.msra.mxu0 %v1946
      %1967 = vmatprep.subr.mxu0 %v1949
      %1968 = vmatpush1.msra.mxu0 %v1948
      %1969 = vmatprep.subr.mxu0 %v1951
      %1970 = vmatpush1.msra.mxu0 %v1950
      %1971 = vmatprep.subr.mxu0 0.0
      %1972 = vmatpush1.msra.mxu0 0.0
      %1973 = vmatprep.subr.mxu0 0.0
      %1974 = vmatpush1.msra.mxu0 0.0
      %1975 = vmatprep.subr.mxu0 0.0
      %1976 = vmatpush1.msra.mxu0 0.0
      %1977 = vmatprep.subr.mxu0 0.0
      %1978 = vmatpush1.msra.mxu0 0.0
      %1979 = vmatprep.subr.mxu0 0.0
      %1980 = vmatpush1.msra.mxu0 0.0
      %1981 = vmatprep.subr.mxu0 0.0
      %1982 = vmatpush1.msra.mxu0 0.0
      %1983 = vmatprep.subr.mxu0 0.0
      %1984 = vmatpush1.msra.mxu0 0.0
      %1985 = vmatprep.subr.mxu0 0.0
      %1986 = vmatpush1.msra.mxu0 0.0
      %1987 = vmatprep.subr.mxu0 0.0
      %1988 = vmatpush1.msra.mxu0 0.0
      %1989 = vmatprep.subr.mxu0 0.0
      %1990 = vmatpush1.msra.mxu0 0.0
      %1991 = vmatprep.subr.mxu0 0.0
      %1992 = vmatpush1.msra.mxu0 0.0
      %1993 = vmatprep.subr.mxu0 0.0
      %1994 = vmatpush1.msra.mxu0 0.0
      %1995 = vmatprep.subr.mxu0 0.0
      %1996 = vmatpush1.msra.mxu0 0.0
      %1997 = vmatprep.subr.mxu0 0.0
      %1998 = vmatpush1.msra.mxu0 0.0
      %1999 = vmatprep.subr.mxu0 0.0
      %2000 = vmatpush1.msra.mxu0 0.0
      %2001 = vmatprep.subr.mxu0 0.0
      %2002 = vmatpush1.msra.mxu0 0.0
      %2003 = vmatprep.subr.mxu0 0.0
      %2004 = vmatpush1.msra.mxu0 0.0
      %2005 = vmatprep.subr.mxu0 0.0
      %2006 = vmatpush1.msra.mxu0 0.0
      %2007 = vmatprep.subr.mxu0 0.0
      %2008 = vmatpush1.msra.mxu0 0.0
      %2009 = vmatprep.subr.mxu0 0.0
      %2010 = vmatpush1.msra.mxu0 0.0
      %2011 = vmatprep.subr.mxu0 0.0
      %2012 = vmatpush1.msra.mxu0 0.0
      %2013 = vmatprep.subr.mxu0 0.0
      %2014 = vmatpush1.msra.mxu0 0.0
      %2015 = vmatprep.subr.mxu0 0.0
      %2016 = vmatpush1.msra.mxu0 0.0
      %2017 = vmatprep.subr.mxu0 0.0
      %2018 = vmatpush1.msra.mxu0 0.0
      %2019 = vmatprep.mubr.f32.mxu0 0.0
      %2020 = vmatmul.mubr.f32.gmra.mrb[0].mxu0 %v1953
      %v2021 = vpop.f32.mrb[0].mxu0
      %v2022 = vadd.f32 0.0, %v2021
      %v2023 = vpop.f32.mrb[0].mxu0
      %v2024 = vadd.f32 0.0, %v2023
      %2025 = vdwg.mxu0
      %v2028 = vcombine.low %v2022, %v2024
      %v2030 = vunpack.c.l.s4 1966171168
      %v2031 = vunpack.c.0.s8 %v2030
      %v2032 = vlaneseq
      %v2033 = vshrl.u32 %v2032, 7
      %v2034 = vsub.s32 %v2031, %v2033
      %v2035 = vrot.slane %v2028, %v2034
      %v2037 = vunpack.c.l.s4 1966171168
      %v2038 = vunpack.c.0.s8 %v2037
      %v2039 = vlaneseq
      %v2040 = vshrl.u32 %v2039, 7
      %v2041 = vsub.s32 %v2038, %v2040
      %v2042 = vrot.slane %v2035, %v2041
      %v2044 = vadd.f32 %v1935, %v2042
      %v2045 = vxor.u32 %v2044, 2147483648
      %v2046 = vmul.f32 %v2045, 1.442695
      %v2047 = vpow.pop %v2046
      %v2048 = vadd.f32 %v2047, 1.0
      %v2049 = vrcp.pop %v2048
      %v2050 = vmul.f32 1.0, %v2049
      %v2051 = vtanh.pop %v2044
      %2053 = vrot.lane.b32.xlu0 %v1933, 64
      %v2054 = vpop.permute.xlu0 %2053
      %v2056 = vmul.f32 %v2050, %v2054
      %v2058 = vrot.slane %v2051, 1
      %v2060 = vmul.f32 %v2050, %v2058
      %2062 = vrot.lane.b32.xlu0 %v2060, 64
      %v2063 = vpop.permute.xlu0 %2062
      %v2065 = vadd.f32 %v2056, %v2063
      %v2066 = vtanh.pop %v2065
      %2068 = vrot.lane.b32.xlu0 %v2050, 64
      %v2069 = vpop.permute.xlu0 %2068
      %v2070 = vrot.slane %v2069, 1
      %2073 = vrot.lane.b32.xlu0 %v2066, 64
      %v2074 = vpop.permute.xlu0 %2073
      %v2076 = vmul.f32 %v2070, %v2074
      %2077 = vst.msk [vmem:[#allocation2] sm:$0x1] %vm370, %v2076
      %v2079 = vlaneseq
      %v2080 = vshrl.u32 %v2079, 7
      %v2081 = vsub.s32 0, %v2080
      %v2082 = vrot.slane %v2065, %v2081
      %2083 = vrot.lane.b32.xlu0 %v2082, 64
      %v2084 = vpop.permute.xlu0 %2083
      %2086 = vst.msk [vmem:[#allocation3] sm:$0x1] %vm370, %v2084
      %2087 = vst.msk [vmem:[#allocation4 + $0xa] sm:$0x1] %vm370, %v2076
      %v2088 = vld [vmem:[#allocation2] sm:$0x1]
      %v2089 = vld [vmem:[#allocation3] sm:$0x1]
      %s2090 = scalar_lea.vmem [#allocation5], 19
      %v2091 = vld [vmem:[%s2090] ss:$8 sm:$0x3]
      %v2092 = vld [vmem:[%s3] sm:$0xff]
      %v2093 = vld [vmem:[%s3 + $0x8] sm:$0xff]
      %v2094 = vld [vmem:[%s3 + $0x10] sm:$0xff]
      %v2095 = vld [vmem:[%s3 + $0x18] sm:$0xff]
      %v2096 = vld [vmem:[%s3 + $0x20] sm:$0xff]
      %v2097 = vld [vmem:[%s3 + $0x28] sm:$0xff]
      %v2098 = vld [vmem:[%s3 + $0x30] sm:$0xff]
      %v2099 = vld [vmem:[%s3 + $0x38] sm:$0xff]
      %v2100 = vld [vmem:[%s3 + $0x40] sm:$0xff]
      %v2101 = vld [vmem:[%s3 + $0x48] sm:$0xff]
      %v2102 = vld [vmem:[%s3 + $0x50] sm:$0xff]
      %v2103 = vld [vmem:[%s3 + $0x58] sm:$0xff]
      %v2104 = vld [vmem:[%s3 + $0x60] sm:$0xff]
      %v2105 = vld [vmem:[%s3 + $0x68] sm:$0xff]
      %v2106 = vld [vmem:[%s3 + $0x70] sm:$0xff]
      %v2107 = vld [vmem:[%s3 + $0x78] sm:$0xff]
      %v2109 = vsel %vm282, %v2088, 0
      %2111 = vmatprep.subr.mxu0 %v2093
      %2112 = vmatpush1.msra.mxu0 %v2092
      %2113 = vmatprep.subr.mxu0 %v2095
      %2114 = vmatpush1.msra.mxu0 %v2094
      %2115 = vmatprep.subr.mxu0 %v2097
      %2116 = vmatpush1.msra.mxu0 %v2096
      %2117 = vmatprep.subr.mxu0 %v2099
      %2118 = vmatpush1.msra.mxu0 %v2098
      %2119 = vmatprep.subr.mxu0 %v2101
      %2120 = vmatpush1.msra.mxu0 %v2100
      %2121 = vmatprep.subr.mxu0 %v2103
      %2122 = vmatpush1.msra.mxu0 %v2102
      %2123 = vmatprep.subr.mxu0 %v2105
      %2124 = vmatpush1.msra.mxu0 %v2104
      %2125 = vmatprep.subr.mxu0 %v2107
      %2126 = vmatpush1.msra.mxu0 %v2106
      %2127 = vmatprep.subr.mxu0 0.0
      %2128 = vmatpush1.msra.mxu0 0.0
      %2129 = vmatprep.subr.mxu0 0.0
      %2130 = vmatpush1.msra.mxu0 0.0
      %2131 = vmatprep.subr.mxu0 0.0
      %2132 = vmatpush1.msra.mxu0 0.0
      %2133 = vmatprep.subr.mxu0 0.0
      %2134 = vmatpush1.msra.mxu0 0.0
      %2135 = vmatprep.subr.mxu0 0.0
      %2136 = vmatpush1.msra.mxu0 0.0
      %2137 = vmatprep.subr.mxu0 0.0
      %2138 = vmatpush1.msra.mxu0 0.0
      %2139 = vmatprep.subr.mxu0 0.0
      %2140 = vmatpush1.msra.mxu0 0.0
      %2141 = vmatprep.subr.mxu0 0.0
      %2142 = vmatpush1.msra.mxu0 0.0
      %2143 = vmatprep.subr.mxu0 0.0
      %2144 = vmatpush1.msra.mxu0 0.0
      %2145 = vmatprep.subr.mxu0 0.0
      %2146 = vmatpush1.msra.mxu0 0.0
      %2147 = vmatprep.subr.mxu0 0.0
      %2148 = vmatpush1.msra.mxu0 0.0
      %2149 = vmatprep.subr.mxu0 0.0
      %2150 = vmatpush1.msra.mxu0 0.0
      %2151 = vmatprep.subr.mxu0 0.0
      %2152 = vmatpush1.msra.mxu0 0.0
      %2153 = vmatprep.subr.mxu0 0.0
      %2154 = vmatpush1.msra.mxu0 0.0
      %2155 = vmatprep.subr.mxu0 0.0
      %2156 = vmatpush1.msra.mxu0 0.0
      %2157 = vmatprep.subr.mxu0 0.0
      %2158 = vmatpush1.msra.mxu0 0.0
      %2159 = vmatprep.subr.mxu0 0.0
      %2160 = vmatpush1.msra.mxu0 0.0
      %2161 = vmatprep.subr.mxu0 0.0
      %2162 = vmatpush1.msra.mxu0 0.0
      %2163 = vmatprep.subr.mxu0 0.0
      %2164 = vmatpush1.msra.mxu0 0.0
      %2165 = vmatprep.subr.mxu0 0.0
      %2166 = vmatpush1.msra.mxu0 0.0
      %2167 = vmatprep.subr.mxu0 0.0
      %2168 = vmatpush1.msra.mxu0 0.0
      %2169 = vmatprep.subr.mxu0 0.0
      %2170 = vmatpush1.msra.mxu0 0.0
      %2171 = vmatprep.subr.mxu0 0.0
      %2172 = vmatpush1.msra.mxu0 0.0
      %2173 = vmatprep.subr.mxu0 0.0
      %2174 = vmatpush1.msra.mxu0 0.0
      %2175 = vmatprep.mubr.f32.mxu0 0.0
      %2176 = vmatmul.mubr.f32.gmra.mrb[0].mxu0 %v2109
      %v2177 = vpop.f32.mrb[0].mxu0
      %v2178 = vadd.f32 0.0, %v2177
      %v2179 = vpop.f32.mrb[0].mxu0
      %v2180 = vadd.f32 0.0, %v2179
      %2181 = vdwg.mxu0
      %v2184 = vcombine.low %v2178, %v2180
      %v2186 = vunpack.c.l.s4 1966171168
      %v2187 = vunpack.c.0.s8 %v2186
      %v2188 = vlaneseq
      %v2189 = vshrl.u32 %v2188, 7
      %v2190 = vsub.s32 %v2187, %v2189
      %v2191 = vrot.slane %v2184, %v2190
      %v2193 = vunpack.c.l.s4 1966171168
      %v2194 = vunpack.c.0.s8 %v2193
      %v2195 = vlaneseq
      %v2196 = vshrl.u32 %v2195, 7
      %v2197 = vsub.s32 %v2194, %v2196
      %v2198 = vrot.slane %v2191, %v2197
      %v2200 = vadd.f32 %v2091, %v2198
      %v2201 = vxor.u32 %v2200, 2147483648
      %v2202 = vmul.f32 %v2201, 1.442695
      %v2203 = vpow.pop %v2202
      %v2204 = vadd.f32 %v2203, 1.0
      %v2205 = vrcp.pop %v2204
      %v2206 = vmul.f32 1.0, %v2205
      %v2207 = vtanh.pop %v2200
      %2209 = vrot.lane.b32.xlu0 %v2089, 64
      %v2210 = vpop.permute.xlu0 %2209
      %v2212 = vmul.f32 %v2206, %v2210
      %v2214 = vrot.slane %v2207, 1
      %v2216 = vmul.f32 %v2206, %v2214
      %2218 = vrot.lane.b32.xlu0 %v2216, 64
      %v2219 = vpop.permute.xlu0 %2218
      %v2221 = vadd.f32 %v2212, %v2219
      %v2222 = vtanh.pop %v2221
      %2224 = vrot.lane.b32.xlu0 %v2206, 64
      %v2225 = vpop.permute.xlu0 %2224
      %v2226 = vrot.slane %v2225, 1
      %2229 = vrot.lane.b32.xlu0 %v2222, 64
      %v2230 = vpop.permute.xlu0 %2229
      %v2232 = vmul.f32 %v2226, %v2230
      %2233 = vst.msk [vmem:[#allocation2] sm:$0x1] %vm370, %v2232
      %v2235 = vlaneseq
      %v2236 = vshrl.u32 %v2235, 7
      %v2237 = vsub.s32 0, %v2236
      %v2238 = vrot.slane %v2221, %v2237
      %2239 = vrot.lane.b32.xlu0 %v2238, 64
      %v2240 = vpop.permute.xlu0 %2239
      %2242 = vst.msk [vmem:[#allocation3] sm:$0x1] %vm370, %v2240
      %2243 = vst.msk [vmem:[#allocation4 + $0xb] sm:$0x1] %vm370, %v2232
      %v2244 = vld [vmem:[#allocation2] sm:$0x1]
      %v2245 = vld [vmem:[#allocation3] sm:$0x1]
      %s2246 = scalar_lea.vmem [#allocation5], 20
      %v2247 = vld [vmem:[%s2246] ss:$8 sm:$0x3]
      %v2248 = vld [vmem:[%s3] sm:$0xff]
      %v2249 = vld [vmem:[%s3 + $0x8] sm:$0xff]
      %v2250 = vld [vmem:[%s3 + $0x10] sm:$0xff]
      %v2251 = vld [vmem:[%s3 + $0x18] sm:$0xff]
      %v2252 = vld [vmem:[%s3 + $0x20] sm:$0xff]
      %v2253 = vld [vmem:[%s3 + $0x28] sm:$0xff]
      %v2254 = vld [vmem:[%s3 + $0x30] sm:$0xff]
      %v2255 = vld [vmem:[%s3 + $0x38] sm:$0xff]
      %v2256 = vld [vmem:[%s3 + $0x40] sm:$0xff]
      %v2257 = vld [vmem:[%s3 + $0x48] sm:$0xff]
      %v2258 = vld [vmem:[%s3 + $0x50] sm:$0xff]
      %v2259 = vld [vmem:[%s3 + $0x58] sm:$0xff]
      %v2260 = vld [vmem:[%s3 + $0x60] sm:$0xff]
      %v2261 = vld [vmem:[%s3 + $0x68] sm:$0xff]
      %v2262 = vld [vmem:[%s3 + $0x70] sm:$0xff]
      %v2263 = vld [vmem:[%s3 + $0x78] sm:$0xff]
      %v2265 = vsel %vm282, %v2244, 0
      %2267 = vmatprep.subr.mxu0 %v2249
      %2268 = vmatpush1.msra.mxu0 %v2248
      %2269 = vmatprep.subr.mxu0 %v2251
      %2270 = vmatpush1.msra.mxu0 %v2250
      %2271 = vmatprep.subr.mxu0 %v2253
      %2272 = vmatpush1.msra.mxu0 %v2252
      %2273 = vmatprep.subr.mxu0 %v2255
      %2274 = vmatpush1.msra.mxu0 %v2254
      %2275 = vmatprep.subr.mxu0 %v2257
      %2276 = vmatpush1.msra.mxu0 %v2256
      %2277 = vmatprep.subr.mxu0 %v2259
      %2278 = vmatpush1.msra.mxu0 %v2258
      %2279 = vmatprep.subr.mxu0 %v2261
      %2280 = vmatpush1.msra.mxu0 %v2260
      %2281 = vmatprep.subr.mxu0 %v2263
      %2282 = vmatpush1.msra.mxu0 %v2262
      %2283 = vmatprep.subr.mxu0 0.0
      %2284 = vmatpush1.msra.mxu0 0.0
      %2285 = vmatprep.subr.mxu0 0.0
      %2286 = vmatpush1.msra.mxu0 0.0
      %2287 = vmatprep.subr.mxu0 0.0
      %2288 = vmatpush1.msra.mxu0 0.0
      %2289 = vmatprep.subr.mxu0 0.0
      %2290 = vmatpush1.msra.mxu0 0.0
      %2291 = vmatprep.subr.mxu0 0.0
      %2292 = vmatpush1.msra.mxu0 0.0
      %2293 = vmatprep.subr.mxu0 0.0
      %2294 = vmatpush1.msra.mxu0 0.0
      %2295 = vmatprep.subr.mxu0 0.0
      %2296 = vmatpush1.msra.mxu0 0.0
      %2297 = vmatprep.subr.mxu0 0.0
      %2298 = vmatpush1.msra.mxu0 0.0
      %2299 = vmatprep.subr.mxu0 0.0
      %2300 = vmatpush1.msra.mxu0 0.0
      %2301 = vmatprep.subr.mxu0 0.0
      %2302 = vmatpush1.msra.mxu0 0.0
      %2303 = vmatprep.subr.mxu0 0.0
      %2304 = vmatpush1.msra.mxu0 0.0
      %2305 = vmatprep.subr.mxu0 0.0
      %2306 = vmatpush1.msra.mxu0 0.0
      %2307 = vmatprep.subr.mxu0 0.0
      %2308 = vmatpush1.msra.mxu0 0.0
      %2309 = vmatprep.subr.mxu0 0.0
      %2310 = vmatpush1.msra.mxu0 0.0
      %2311 = vmatprep.subr.mxu0 0.0
      %2312 = vmatpush1.msra.mxu0 0.0
      %2313 = vmatprep.subr.mxu0 0.0
      %2314 = vmatpush1.msra.mxu0 0.0
      %2315 = vmatprep.subr.mxu0 0.0
      %2316 = vmatpush1.msra.mxu0 0.0
      %2317 = vmatprep.subr.mxu0 0.0
      %2318 = vmatpush1.msra.mxu0 0.0
      %2319 = vmatprep.subr.mxu0 0.0
      %2320 = vmatpush1.msra.mxu0 0.0
      %2321 = vmatprep.subr.mxu0 0.0
      %2322 = vmatpush1.msra.mxu0 0.0
      %2323 = vmatprep.subr.mxu0 0.0
      %2324 = vmatpush1.msra.mxu0 0.0
      %2325 = vmatprep.subr.mxu0 0.0
      %2326 = vmatpush1.msra.mxu0 0.0
      %2327 = vmatprep.subr.mxu0 0.0
      %2328 = vmatpush1.msra.mxu0 0.0
      %2329 = vmatprep.subr.mxu0 0.0
      %2330 = vmatpush1.msra.mxu0 0.0
      %2331 = vmatprep.mubr.f32.mxu0 0.0
      %2332 = vmatmul.mubr.f32.gmra.mrb[0].mxu0 %v2265
      %v2333 = vpop.f32.mrb[0].mxu0
      %v2334 = vadd.f32 0.0, %v2333
      %v2335 = vpop.f32.mrb[0].mxu0
      %v2336 = vadd.f32 0.0, %v2335
      %2337 = vdwg.mxu0
      %v2340 = vcombine.low %v2334, %v2336
      %v2342 = vunpack.c.l.s4 1966171168
      %v2343 = vunpack.c.0.s8 %v2342
      %v2344 = vlaneseq
      %v2345 = vshrl.u32 %v2344, 7
      %v2346 = vsub.s32 %v2343, %v2345
      %v2347 = vrot.slane %v2340, %v2346
      %v2349 = vunpack.c.l.s4 1966171168
      %v2350 = vunpack.c.0.s8 %v2349
      %v2351 = vlaneseq
      %v2352 = vshrl.u32 %v2351, 7
      %v2353 = vsub.s32 %v2350, %v2352
      %v2354 = vrot.slane %v2347, %v2353
      %v2356 = vadd.f32 %v2247, %v2354
      %v2357 = vxor.u32 %v2356, 2147483648
      %v2358 = vmul.f32 %v2357, 1.442695
      %v2359 = vpow.pop %v2358
      %v2360 = vadd.f32 %v2359, 1.0
      %v2361 = vrcp.pop %v2360
      %v2362 = vmul.f32 1.0, %v2361
      %v2363 = vtanh.pop %v2356
      %2365 = vrot.lane.b32.xlu0 %v2245, 64
      %v2366 = vpop.permute.xlu0 %2365
      %v2368 = vmul.f32 %v2362, %v2366
      %v2370 = vrot.slane %v2363, 1
      %v2372 = vmul.f32 %v2362, %v2370
      %2374 = vrot.lane.b32.xlu0 %v2372, 64
      %v2375 = vpop.permute.xlu0 %2374
      %v2377 = vadd.f32 %v2368, %v2375
      %v2378 = vtanh.pop %v2377
      %2380 = vrot.lane.b32.xlu0 %v2362, 64
      %v2381 = vpop.permute.xlu0 %2380
      %v2382 = vrot.slane %v2381, 1
      %2385 = vrot.lane.b32.xlu0 %v2378, 64
      %v2386 = vpop.permute.xlu0 %2385
      %v2388 = vmul.f32 %v2382, %v2386
      %2389 = vst.msk [vmem:[#allocation2] sm:$0x1] %vm370, %v2388
      %v2391 = vlaneseq
      %v2392 = vshrl.u32 %v2391, 7
      %v2393 = vsub.s32 0, %v2392
      %v2394 = vrot.slane %v2377, %v2393
      %2395 = vrot.lane.b32.xlu0 %v2394, 64
      %v2396 = vpop.permute.xlu0 %2395
      %2398 = vst.msk [vmem:[#allocation3] sm:$0x1] %vm370, %v2396
      %2399 = vst.msk [vmem:[#allocation4 + $0xc] sm:$0x1] %vm370, %v2388
      %v2400 = vld [vmem:[#allocation2] sm:$0x1]
      %v2401 = vld [vmem:[#allocation3] sm:$0x1]
      %s2402 = scalar_lea.vmem [#allocation5], 21
      %v2403 = vld [vmem:[%s2402] ss:$8 sm:$0x3]
      %v2404 = vld [vmem:[%s3] sm:$0xff]
      %v2405 = vld [vmem:[%s3 + $0x8] sm:$0xff]
      %v2406 = vld [vmem:[%s3 + $0x10] sm:$0xff]
      %v2407 = vld [vmem:[%s3 + $0x18] sm:$0xff]
      %v2408 = vld [vmem:[%s3 + $0x20] sm:$0xff]
      %v2409 = vld [vmem:[%s3 + $0x28] sm:$0xff]
      %v2410 = vld [vmem:[%s3 + $0x30] sm:$0xff]
      %v2411 = vld [vmem:[%s3 + $0x38] sm:$0xff]
      %v2412 = vld [vmem:[%s3 + $0x40] sm:$0xff]
      %v2413 = vld [vmem:[%s3 + $0x48] sm:$0xff]
      %v2414 = vld [vmem:[%s3 + $0x50] sm:$0xff]
      %v2415 = vld [vmem:[%s3 + $0x58] sm:$0xff]
      %v2416 = vld [vmem:[%s3 + $0x60] sm:$0xff]
      %v2417 = vld [vmem:[%s3 + $0x68] sm:$0xff]
      %v2418 = vld [vmem:[%s3 + $0x70] sm:$0xff]
      %v2419 = vld [vmem:[%s3 + $0x78] sm:$0xff]
      %v2421 = vsel %vm282, %v2400, 0
      %2423 = vmatprep.subr.mxu0 %v2405
      %2424 = vmatpush1.msra.mxu0 %v2404
      %2425 = vmatprep.subr.mxu0 %v2407
      %2426 = vmatpush1.msra.mxu0 %v2406
      %2427 = vmatprep.subr.mxu0 %v2409
      %2428 = vmatpush1.msra.mxu0 %v2408
      %2429 = vmatprep.subr.mxu0 %v2411
      %2430 = vmatpush1.msra.mxu0 %v2410
      %2431 = vmatprep.subr.mxu0 %v2413
      %2432 = vmatpush1.msra.mxu0 %v2412
      %2433 = vmatprep.subr.mxu0 %v2415
      %2434 = vmatpush1.msra.mxu0 %v2414
      %2435 = vmatprep.subr.mxu0 %v2417
      %2436 = vmatpush1.msra.mxu0 %v2416
      %2437 = vmatprep.subr.mxu0 %v2419
      %2438 = vmatpush1.msra.mxu0 %v2418
      %2439 = vmatprep.subr.mxu0 0.0
      %2440 = vmatpush1.msra.mxu0 0.0
      %2441 = vmatprep.subr.mxu0 0.0
      %2442 = vmatpush1.msra.mxu0 0.0
      %2443 = vmatprep.subr.mxu0 0.0
      %2444 = vmatpush1.msra.mxu0 0.0
      %2445 = vmatprep.subr.mxu0 0.0
      %2446 = vmatpush1.msra.mxu0 0.0
      %2447 = vmatprep.subr.mxu0 0.0
      %2448 = vmatpush1.msra.mxu0 0.0
      %2449 = vmatprep.subr.mxu0 0.0
      %2450 = vmatpush1.msra.mxu0 0.0
      %2451 = vmatprep.subr.mxu0 0.0
      %2452 = vmatpush1.msra.mxu0 0.0
      %2453 = vmatprep.subr.mxu0 0.0
      %2454 = vmatpush1.msra.mxu0 0.0
      %2455 = vmatprep.subr.mxu0 0.0
      %2456 = vmatpush1.msra.mxu0 0.0
      %2457 = vmatprep.subr.mxu0 0.0
      %2458 = vmatpush1.msra.mxu0 0.0
      %2459 = vmatprep.subr.mxu0 0.0
      %2460 = vmatpush1.msra.mxu0 0.0
      %2461 = vmatprep.subr.mxu0 0.0
      %2462 = vmatpush1.msra.mxu0 0.0
      %2463 = vmatprep.subr.mxu0 0.0
      %2464 = vmatpush1.msra.mxu0 0.0
      %2465 = vmatprep.subr.mxu0 0.0
      %2466 = vmatpush1.msra.mxu0 0.0
      %2467 = vmatprep.subr.mxu0 0.0
      %2468 = vmatpush1.msra.mxu0 0.0
      %2469 = vmatprep.subr.mxu0 0.0
      %2470 = vmatpush1.msra.mxu0 0.0
      %2471 = vmatprep.subr.mxu0 0.0
      %2472 = vmatpush1.msra.mxu0 0.0
      %2473 = vmatprep.subr.mxu0 0.0
      %2474 = vmatpush1.msra.mxu0 0.0
      %2475 = vmatprep.subr.mxu0 0.0
      %2476 = vmatpush1.msra.mxu0 0.0
      %2477 = vmatprep.subr.mxu0 0.0
      %2478 = vmatpush1.msra.mxu0 0.0
      %2479 = vmatprep.subr.mxu0 0.0
      %2480 = vmatpush1.msra.mxu0 0.0
      %2481 = vmatprep.subr.mxu0 0.0
      %2482 = vmatpush1.msra.mxu0 0.0
      %2483 = vmatprep.subr.mxu0 0.0
      %2484 = vmatpush1.msra.mxu0 0.0
      %2485 = vmatprep.subr.mxu0 0.0
      %2486 = vmatpush1.msra.mxu0 0.0
      %2487 = vmatprep.mubr.f32.mxu0 0.0
      %2488 = vmatmul.mubr.f32.gmra.mrb[0].mxu0 %v2421
      %v2489 = vpop.f32.mrb[0].mxu0
      %v2490 = vadd.f32 0.0, %v2489
      %v2491 = vpop.f32.mrb[0].mxu0
      %v2492 = vadd.f32 0.0, %v2491
      %2493 = vdwg.mxu0
      %v2496 = vcombine.low %v2490, %v2492
      %v2498 = vunpack.c.l.s4 1966171168
      %v2499 = vunpack.c.0.s8 %v2498
      %v2500 = vlaneseq
      %v2501 = vshrl.u32 %v2500, 7
      %v2502 = vsub.s32 %v2499, %v2501
      %v2503 = vrot.slane %v2496, %v2502
      %v2505 = vunpack.c.l.s4 1966171168
      %v2506 = vunpack.c.0.s8 %v2505
      %v2507 = vlaneseq
      %v2508 = vshrl.u32 %v2507, 7
      %v2509 = vsub.s32 %v2506, %v2508
      %v2510 = vrot.slane %v2503, %v2509
      %v2512 = vadd.f32 %v2403, %v2510
      %v2513 = vxor.u32 %v2512, 2147483648
      %v2514 = vmul.f32 %v2513, 1.442695
      %v2515 = vpow.pop %v2514
      %v2516 = vadd.f32 %v2515, 1.0
      %v2517 = vrcp.pop %v2516
      %v2518 = vmul.f32 1.0, %v2517
      %v2519 = vtanh.pop %v2512
      %2521 = vrot.lane.b32.xlu0 %v2401, 64
      %v2522 = vpop.permute.xlu0 %2521
      %v2524 = vmul.f32 %v2518, %v2522
      %v2526 = vrot.slane %v2519, 1
      %v2528 = vmul.f32 %v2518, %v2526
      %2530 = vrot.lane.b32.xlu0 %v2528, 64
      %v2531 = vpop.permute.xlu0 %2530
      %v2533 = vadd.f32 %v2524, %v2531
      %v2534 = vtanh.pop %v2533
      %2536 = vrot.lane.b32.xlu0 %v2518, 64
      %v2537 = vpop.permute.xlu0 %2536
      %v2538 = vrot.slane %v2537, 1
      %2541 = vrot.lane.b32.xlu0 %v2534, 64
      %v2542 = vpop.permute.xlu0 %2541
      %v2544 = vmul.f32 %v2538, %v2542
      %2545 = vst.msk [vmem:[#allocation2] sm:$0x1] %vm370, %v2544
      %v2547 = vlaneseq
      %v2548 = vshrl.u32 %v2547, 7
      %v2549 = vsub.s32 0, %v2548
      %v2550 = vrot.slane %v2533, %v2549
      %2551 = vrot.lane.b32.xlu0 %v2550, 64
      %v2552 = vpop.permute.xlu0 %2551
      %2554 = vst.msk [vmem:[#allocation3] sm:$0x1] %vm370, %v2552
      %2555 = vst.msk [vmem:[#allocation4 + $0xd] sm:$0x1] %vm370, %v2544
      %v2556 = vld [vmem:[#allocation2] sm:$0x1]
      %v2557 = vld [vmem:[#allocation3] sm:$0x1]
      %s2558 = scalar_lea.vmem [#allocation5], 22
      %v2559 = vld [vmem:[%s2558] ss:$8 sm:$0x3]
      %v2560 = vld [vmem:[%s3] sm:$0xff]
      %v2561 = vld [vmem:[%s3 + $0x8] sm:$0xff]
      %v2562 = vld [vmem:[%s3 + $0x10] sm:$0xff]
      %v2563 = vld [vmem:[%s3 + $0x18] sm:$0xff]
      %v2564 = vld [vmem:[%s3 + $0x20] sm:$0xff]
      %v2565 = vld [vmem:[%s3 + $0x28] sm:$0xff]
      %v2566 = vld [vmem:[%s3 + $0x30] sm:$0xff]
      %v2567 = vld [vmem:[%s3 + $0x38] sm:$0xff]
      %v2568 = vld [vmem:[%s3 + $0x40] sm:$0xff]
      %v2569 = vld [vmem:[%s3 + $0x48] sm:$0xff]
      %v2570 = vld [vmem:[%s3 + $0x50] sm:$0xff]
      %v2571 = vld [vmem:[%s3 + $0x58] sm:$0xff]
      %v2572 = vld [vmem:[%s3 + $0x60] sm:$0xff]
      %v2573 = vld [vmem:[%s3 + $0x68] sm:$0xff]
      %v2574 = vld [vmem:[%s3 + $0x70] sm:$0xff]
      %v2575 = vld [vmem:[%s3 + $0x78] sm:$0xff]
      %v2577 = vsel %vm282, %v2556, 0
      %2579 = vmatprep.subr.mxu0 %v2561
      %2580 = vmatpush1.msra.mxu0 %v2560
      %2581 = vmatprep.subr.mxu0 %v2563
      %2582 = vmatpush1.msra.mxu0 %v2562
      %2583 = vmatprep.subr.mxu0 %v2565
      %2584 = vmatpush1.msra.mxu0 %v2564
      %2585 = vmatprep.subr.mxu0 %v2567
      %2586 = vmatpush1.msra.mxu0 %v2566
      %2587 = vmatprep.subr.mxu0 %v2569
      %2588 = vmatpush1.msra.mxu0 %v2568
      %2589 = vmatprep.subr.mxu0 %v2571
      %2590 = vmatpush1.msra.mxu0 %v2570
      %2591 = vmatprep.subr.mxu0 %v2573
      %2592 = vmatpush1.msra.mxu0 %v2572
      %2593 = vmatprep.subr.mxu0 %v2575
      %2594 = vmatpush1.msra.mxu0 %v2574
      %2595 = vmatprep.subr.mxu0 0.0
      %2596 = vmatpush1.msra.mxu0 0.0
      %2597 = vmatprep.subr.mxu0 0.0
      %2598 = vmatpush1.msra.mxu0 0.0
      %2599 = vmatprep.subr.mxu0 0.0
      %2600 = vmatpush1.msra.mxu0 0.0
      %2601 = vmatprep.subr.mxu0 0.0
      %2602 = vmatpush1.msra.mxu0 0.0
      %2603 = vmatprep.subr.mxu0 0.0
      %2604 = vmatpush1.msra.mxu0 0.0
      %2605 = vmatprep.subr.mxu0 0.0
      %2606 = vmatpush1.msra.mxu0 0.0
      %2607 = vmatprep.subr.mxu0 0.0
      %2608 = vmatpush1.msra.mxu0 0.0
      %2609 = vmatprep.subr.mxu0 0.0
      %2610 = vmatpush1.msra.mxu0 0.0
      %2611 = vmatprep.subr.mxu0 0.0
      %2612 = vmatpush1.msra.mxu0 0.0
      %2613 = vmatprep.subr.mxu0 0.0
      %2614 = vmatpush1.msra.mxu0 0.0
      %2615 = vmatprep.subr.mxu0 0.0
      %2616 = vmatpush1.msra.mxu0 0.0
      %2617 = vmatprep.subr.mxu0 0.0
      %2618 = vmatpush1.msra.mxu0 0.0
      %2619 = vmatprep.subr.mxu0 0.0
      %2620 = vmatpush1.msra.mxu0 0.0
      %2621 = vmatprep.subr.mxu0 0.0
      %2622 = vmatpush1.msra.mxu0 0.0
      %2623 = vmatprep.subr.mxu0 0.0
      %2624 = vmatpush1.msra.mxu0 0.0
      %2625 = vmatprep.subr.mxu0 0.0
      %2626 = vmatpush1.msra.mxu0 0.0
      %2627 = vmatprep.subr.mxu0 0.0
      %2628 = vmatpush1.msra.mxu0 0.0
      %2629 = vmatprep.subr.mxu0 0.0
      %2630 = vmatpush1.msra.mxu0 0.0
      %2631 = vmatprep.subr.mxu0 0.0
      %2632 = vmatpush1.msra.mxu0 0.0
      %2633 = vmatprep.subr.mxu0 0.0
      %2634 = vmatpush1.msra.mxu0 0.0
      %2635 = vmatprep.subr.mxu0 0.0
      %2636 = vmatpush1.msra.mxu0 0.0
      %2637 = vmatprep.subr.mxu0 0.0
      %2638 = vmatpush1.msra.mxu0 0.0
      %2639 = vmatprep.subr.mxu0 0.0
      %2640 = vmatpush1.msra.mxu0 0.0
      %2641 = vmatprep.subr.mxu0 0.0
      %2642 = vmatpush1.msra.mxu0 0.0
      %2643 = vmatprep.mubr.f32.mxu0 0.0
      %2644 = vmatmul.mubr.f32.gmra.mrb[0].mxu0 %v2577
      %v2645 = vpop.f32.mrb[0].mxu0
      %v2646 = vadd.f32 0.0, %v2645
      %v2647 = vpop.f32.mrb[0].mxu0
      %v2648 = vadd.f32 0.0, %v2647
      %2649 = vdwg.mxu0
      %v2652 = vcombine.low %v2646, %v2648
      %v2654 = vunpack.c.l.s4 1966171168
      %v2655 = vunpack.c.0.s8 %v2654
      %v2656 = vlaneseq
      %v2657 = vshrl.u32 %v2656, 7
      %v2658 = vsub.s32 %v2655, %v2657
      %v2659 = vrot.slane %v2652, %v2658
      %v2661 = vunpack.c.l.s4 1966171168
      %v2662 = vunpack.c.0.s8 %v2661
      %v2663 = vlaneseq
      %v2664 = vshrl.u32 %v2663, 7
      %v2665 = vsub.s32 %v2662, %v2664
      %v2666 = vrot.slane %v2659, %v2665
      %v2668 = vadd.f32 %v2559, %v2666
      %v2669 = vxor.u32 %v2668, 2147483648
      %v2670 = vmul.f32 %v2669, 1.442695
      %v2671 = vpow.pop %v2670
      %v2672 = vadd.f32 %v2671, 1.0
      %v2673 = vrcp.pop %v2672
      %v2674 = vmul.f32 1.0, %v2673
      %v2675 = vtanh.pop %v2668
      %2677 = vrot.lane.b32.xlu0 %v2557, 64
      %v2678 = vpop.permute.xlu0 %2677
      %v2680 = vmul.f32 %v2674, %v2678
      %v2682 = vrot.slane %v2675, 1
      %v2684 = vmul.f32 %v2674, %v2682
      %2686 = vrot.lane.b32.xlu0 %v2684, 64
      %v2687 = vpop.permute.xlu0 %2686
      %v2689 = vadd.f32 %v2680, %v2687
      %v2690 = vtanh.pop %v2689
      %2692 = vrot.lane.b32.xlu0 %v2674, 64
      %v2693 = vpop.permute.xlu0 %2692
      %v2694 = vrot.slane %v2693, 1
      %2697 = vrot.lane.b32.xlu0 %v2690, 64
      %v2698 = vpop.permute.xlu0 %2697
      %v2700 = vmul.f32 %v2694, %v2698
      %2701 = vst.msk [vmem:[#allocation2] sm:$0x1] %vm370, %v2700
      %v2703 = vlaneseq
      %v2704 = vshrl.u32 %v2703, 7
      %v2705 = vsub.s32 0, %v2704
      %v2706 = vrot.slane %v2689, %v2705
      %2707 = vrot.lane.b32.xlu0 %v2706, 64
      %v2708 = vpop.permute.xlu0 %2707
      %2710 = vst.msk [vmem:[#allocation3] sm:$0x1] %vm370, %v2708
      %2711 = vst.msk [vmem:[#allocation4 + $0xe] sm:$0x1] %vm370, %v2700
      %v2712 = vld [vmem:[#allocation2] sm:$0x1]
      %v2713 = vld [vmem:[#allocation3] sm:$0x1]
      %s2714 = scalar_lea.vmem [#allocation5], 23
      %v2715 = vld [vmem:[%s2714] ss:$8 sm:$0x3]
      %v2716 = vld [vmem:[%s3] sm:$0xff]
      %v2717 = vld [vmem:[%s3 + $0x8] sm:$0xff]
      %v2718 = vld [vmem:[%s3 + $0x10] sm:$0xff]
      %v2719 = vld [vmem:[%s3 + $0x18] sm:$0xff]
      %v2720 = vld [vmem:[%s3 + $0x20] sm:$0xff]
      %v2721 = vld [vmem:[%s3 + $0x28] sm:$0xff]
      %v2722 = vld [vmem:[%s3 + $0x30] sm:$0xff]
      %v2723 = vld [vmem:[%s3 + $0x38] sm:$0xff]
      %v2724 = vld [vmem:[%s3 + $0x40] sm:$0xff]
      %v2725 = vld [vmem:[%s3 + $0x48] sm:$0xff]
      %v2726 = vld [vmem:[%s3 + $0x50] sm:$0xff]
      %v2727 = vld [vmem:[%s3 + $0x58] sm:$0xff]
      %v2728 = vld [vmem:[%s3 + $0x60] sm:$0xff]
      %v2729 = vld [vmem:[%s3 + $0x68] sm:$0xff]
      %v2730 = vld [vmem:[%s3 + $0x70] sm:$0xff]
      %v2731 = vld [vmem:[%s3 + $0x78] sm:$0xff]
      %v2733 = vsel %vm282, %v2712, 0
      %2735 = vmatprep.subr.mxu0 %v2717
      %2736 = vmatpush1.msra.mxu0 %v2716
      %2737 = vmatprep.subr.mxu0 %v2719
      %2738 = vmatpush1.msra.mxu0 %v2718
      %2739 = vmatprep.subr.mxu0 %v2721
      %2740 = vmatpush1.msra.mxu0 %v2720
      %2741 = vmatprep.subr.mxu0 %v2723
      %2742 = vmatpush1.msra.mxu0 %v2722
      %2743 = vmatprep.subr.mxu0 %v2725
      %2744 = vmatpush1.msra.mxu0 %v2724
      %2745 = vmatprep.subr.mxu0 %v2727
      %2746 = vmatpush1.msra.mxu0 %v2726
      %2747 = vmatprep.subr.mxu0 %v2729
      %2748 = vmatpush1.msra.mxu0 %v2728
      %2749 = vmatprep.subr.mxu0 %v2731
      %2750 = vmatpush1.msra.mxu0 %v2730
      %2751 = vmatprep.subr.mxu0 0.0
      %2752 = vmatpush1.msra.mxu0 0.0
      %2753 = vmatprep.subr.mxu0 0.0
      %2754 = vmatpush1.msra.mxu0 0.0
      %2755 = vmatprep.subr.mxu0 0.0
      %2756 = vmatpush1.msra.mxu0 0.0
      %2757 = vmatprep.subr.mxu0 0.0
      %2758 = vmatpush1.msra.mxu0 0.0
      %2759 = vmatprep.subr.mxu0 0.0
      %2760 = vmatpush1.msra.mxu0 0.0
      %2761 = vmatprep.subr.mxu0 0.0
      %2762 = vmatpush1.msra.mxu0 0.0
      %2763 = vmatprep.subr.mxu0 0.0
      %2764 = vmatpush1.msra.mxu0 0.0
      %2765 = vmatprep.subr.mxu0 0.0
      %2766 = vmatpush1.msra.mxu0 0.0
      %2767 = vmatprep.subr.mxu0 0.0
      %2768 = vmatpush1.msra.mxu0 0.0
      %2769 = vmatprep.subr.mxu0 0.0
      %2770 = vmatpush1.msra.mxu0 0.0
      %2771 = vmatprep.subr.mxu0 0.0
      %2772 = vmatpush1.msra.mxu0 0.0
      %2773 = vmatprep.subr.mxu0 0.0
      %2774 = vmatpush1.msra.mxu0 0.0
      %2775 = vmatprep.subr.mxu0 0.0
      %2776 = vmatpush1.msra.mxu0 0.0
      %2777 = vmatprep.subr.mxu0 0.0
      %2778 = vmatpush1.msra.mxu0 0.0
      %2779 = vmatprep.subr.mxu0 0.0
      %2780 = vmatpush1.msra.mxu0 0.0
      %2781 = vmatprep.subr.mxu0 0.0
      %2782 = vmatpush1.msra.mxu0 0.0
      %2783 = vmatprep.subr.mxu0 0.0
      %2784 = vmatpush1.msra.mxu0 0.0
      %2785 = vmatprep.subr.mxu0 0.0
      %2786 = vmatpush1.msra.mxu0 0.0
      %2787 = vmatprep.subr.mxu0 0.0
      %2788 = vmatpush1.msra.mxu0 0.0
      %2789 = vmatprep.subr.mxu0 0.0
      %2790 = vmatpush1.msra.mxu0 0.0
      %2791 = vmatprep.subr.mxu0 0.0
      %2792 = vmatpush1.msra.mxu0 0.0
      %2793 = vmatprep.subr.mxu0 0.0
      %2794 = vmatpush1.msra.mxu0 0.0
      %2795 = vmatprep.subr.mxu0 0.0
      %2796 = vmatpush1.msra.mxu0 0.0
      %2797 = vmatprep.subr.mxu0 0.0
      %2798 = vmatpush1.msra.mxu0 0.0
      %2799 = vmatprep.mubr.f32.mxu0 0.0
      %2800 = vmatmul.mubr.f32.gmra.mrb[0].mxu0 %v2733
      %v2801 = vpop.f32.mrb[0].mxu0
      %v2802 = vadd.f32 0.0, %v2801
      %v2803 = vpop.f32.mrb[0].mxu0
      %v2804 = vadd.f32 0.0, %v2803
      %2805 = vdwg.mxu0
      %v2808 = vcombine.low %v2802, %v2804
      %v2810 = vunpack.c.l.s4 1966171168
      %v2811 = vunpack.c.0.s8 %v2810
      %v2812 = vlaneseq
      %v2813 = vshrl.u32 %v2812, 7
      %v2814 = vsub.s32 %v2811, %v2813
      %v2815 = vrot.slane %v2808, %v2814
      %v2817 = vunpack.c.l.s4 1966171168
      %v2818 = vunpack.c.0.s8 %v2817
      %v2819 = vlaneseq
      %v2820 = vshrl.u32 %v2819, 7
      %v2821 = vsub.s32 %v2818, %v2820
      %v2822 = vrot.slane %v2815, %v2821
      %v2824 = vadd.f32 %v2715, %v2822
      %v2825 = vxor.u32 %v2824, 2147483648
      %v2826 = vmul.f32 %v2825, 1.442695
      %v2827 = vpow.pop %v2826
      %v2828 = vadd.f32 %v2827, 1.0
      %v2829 = vrcp.pop %v2828
      %v2830 = vmul.f32 1.0, %v2829
      %v2831 = vtanh.pop %v2824
      %2833 = vrot.lane.b32.xlu0 %v2713, 64
      %v2834 = vpop.permute.xlu0 %2833
      %v2836 = vmul.f32 %v2830, %v2834
      %v2838 = vrot.slane %v2831, 1
      %v2840 = vmul.f32 %v2830, %v2838
      %2842 = vrot.lane.b32.xlu0 %v2840, 64
      %v2843 = vpop.permute.xlu0 %2842
      %v2845 = vadd.f32 %v2836, %v2843
      %v2846 = vtanh.pop %v2845
      %2848 = vrot.lane.b32.xlu0 %v2830, 64
      %v2849 = vpop.permute.xlu0 %2848
      %v2850 = vrot.slane %v2849, 1
      %2853 = vrot.lane.b32.xlu0 %v2846, 64
      %v2854 = vpop.permute.xlu0 %2853
      %v2856 = vmul.f32 %v2850, %v2854
      %2857 = vst.msk [vmem:[#allocation2] sm:$0x1] %vm370, %v2856
      %v2859 = vlaneseq
      %v2860 = vshrl.u32 %v2859, 7
      %v2861 = vsub.s32 0, %v2860
      %v2862 = vrot.slane %v2845, %v2861
      %2863 = vrot.lane.b32.xlu0 %v2862, 64
      %v2864 = vpop.permute.xlu0 %2863
      %2866 = vst.msk [vmem:[#allocation3] sm:$0x1] %vm370, %v2864
      %2867 = vst.msk [vmem:[#allocation4 + $0xf] sm:$0x1] %vm370, %v2856
      %v2868 = vld [vmem:[#allocation4] sm:$0xff]
      %v2869 = vld [vmem:[#allocation4 + $0x8] sm:$0xff]
      %v2870 = vld [vmem:[%s4] sm:$0xff]
      %v2871 = vld [vmem:[%s4 + $0x8] sm:$0xff]
      %v2872 = vld [vmem:[%s4 + $0x10] sm:$0xff]
      %v2873 = vld [vmem:[%s4 + $0x18] sm:$0xff]
      %v2874 = vld [vmem:[%s4 + $0x20] sm:$0xff]
      %v2875 = vld [vmem:[%s4 + $0x28] sm:$0xff]
      %v2876 = vld [vmem:[%s4 + $0x30] sm:$0xff]
      %v2877 = vld [vmem:[%s4 + $0x38] sm:$0xff]
      %v2878 = vld [vmem:[%s5] sm:$0x1]
      %v2880 = vlaneseq
      %v2881 = vshrl.u32 %v2880, 7
      %v2882 = vsub.s32 0, %v2881
      %v2883 = vrot.slane %v2878, %v2882
      %v2886 = vsel %vm282, %v2868, 0
      %v2889 = vsel %vm282, %v2869, 0
      %2891 = vmatprep.subr.mxu0 0.0
      %2892 = vmatpush1.msra.mxu0 %v2870
      %2893 = vmatprep.subr.mxu0 0.0
      %2894 = vmatpush1.msra.mxu0 %v2871
      %2895 = vmatprep.subr.mxu0 0.0
      %2896 = vmatpush1.msra.mxu0 %v2872
      %2897 = vmatprep.subr.mxu0 0.0
      %2898 = vmatpush1.msra.mxu0 %v2873
      %2899 = vmatprep.subr.mxu0 0.0
      %2900 = vmatpush1.msra.mxu0 %v2874
      %2901 = vmatprep.subr.mxu0 0.0
      %2902 = vmatpush1.msra.mxu0 %v2875
      %2903 = vmatprep.subr.mxu0 0.0
      %2904 = vmatpush1.msra.mxu0 %v2876
      %2905 = vmatprep.subr.mxu0 0.0
      %2906 = vmatpush1.msra.mxu0 %v2877
      %2907 = vmatprep.subr.mxu0 0.0
      %2908 = vmatpush1.msra.mxu0 0.0
      %2909 = vmatprep.subr.mxu0 0.0
      %2910 = vmatpush1.msra.mxu0 0.0
      %2911 = vmatprep.subr.mxu0 0.0
      %2912 = vmatpush1.msra.mxu0 0.0
      %2913 = vmatprep.subr.mxu0 0.0
      %2914 = vmatpush1.msra.mxu0 0.0
      %2915 = vmatprep.subr.mxu0 0.0
      %2916 = vmatpush1.msra.mxu0 0.0
      %2917 = vmatprep.subr.mxu0 0.0
      %2918 = vmatpush1.msra.mxu0 0.0
      %2919 = vmatprep.subr.mxu0 0.0
      %2920 = vmatpush1.msra.mxu0 0.0
      %2921 = vmatprep.subr.mxu0 0.0
      %2922 = vmatpush1.msra.mxu0 0.0
      %2923 = vmatprep.subr.mxu0 0.0
      %2924 = vmatpush1.msra.mxu0 0.0
      %2925 = vmatprep.subr.mxu0 0.0
      %2926 = vmatpush1.msra.mxu0 0.0
      %2927 = vmatprep.subr.mxu0 0.0
      %2928 = vmatpush1.msra.mxu0 0.0
      %2929 = vmatprep.subr.mxu0 0.0
      %2930 = vmatpush1.msra.mxu0 0.0
      %2931 = vmatprep.subr.mxu0 0.0
      %2932 = vmatpush1.msra.mxu0 0.0
      %2933 = vmatprep.subr.mxu0 0.0
      %2934 = vmatpush1.msra.mxu0 0.0
      %2935 = vmatprep.subr.mxu0 0.0
      %2936 = vmatpush1.msra.mxu0 0.0
      %2937 = vmatprep.subr.mxu0 0.0
      %2938 = vmatpush1.msra.mxu0 0.0
      %2939 = vmatprep.subr.mxu0 0.0
      %2940 = vmatpush1.msra.mxu0 0.0
      %2941 = vmatprep.subr.mxu0 0.0
      %2942 = vmatpush1.msra.mxu0 0.0
      %2943 = vmatprep.subr.mxu0 0.0
      %2944 = vmatpush1.msra.mxu0 0.0
      %2945 = vmatprep.subr.mxu0 0.0
      %2946 = vmatpush1.msra.mxu0 0.0
      %2947 = vmatprep.subr.mxu0 0.0
      %2948 = vmatpush1.msra.mxu0 0.0
      %2949 = vmatprep.subr.mxu0 0.0
      %2950 = vmatpush1.msra.mxu0 0.0
      %2951 = vmatprep.subr.mxu0 0.0
      %2952 = vmatpush1.msra.mxu0 0.0
      %2953 = vmatprep.subr.mxu0 0.0
      %2954 = vmatpush1.msra.mxu0 0.0
      %2955 = vmatprep.mubr.f32.mxu0 0.0
      %2956 = vmatmul.mubr.f32.gmra.mrb[0].mxu0 %v2886
      %v2957 = vpop.f32.mrb[0].mxu0
      %v2958 = vadd.f32 %v2883, %v2957
      %v2959 = vpop.f32.mrb[0].mxu0
      %2960 = vmatprep.mubr.f32.mxu0 0.0
      %2961 = vmatmul.mubr.f32.gmra.mrb[0].mxu0 %v2889
      %v2962 = vpop.f32.mrb[0].mxu0
      %v2963 = vadd.f32 %v2883, %v2962
      %v2964 = vpop.f32.mrb[0].mxu0
      %2965 = vdwg.mxu0
      %vm2966 = vcmask 23552
      %2967 = vst.msk [vmem:[%s251] sm:$0xff] %vm2966, %v2958
      %2968 = vst.msk [vmem:[%s251 + $0x8] sm:$0xff] %vm2966, %v2963
      %p2969 = scmp.lt.s32.totalorder %s17, 1
      %s2970 = scalar_select %p2969, %s17, 1
      %s2971 = smul.addr %s2970, 2
      %s2972 = smul.addr %s2971, 8
      %s2973 = scalar_lea.vmem %s6, %s2972
      // Predicated region
      $region45: #{_lambda_.1} parent=43 // pred_check
        %p2974 = pneg %p166
      $region46: #{_lambda_.1} parent=43 // pred_check_branch
        %2976 = sbr.rel (%p2974) target = $region48
      $region47: #{_lambda_.1} parent=43 // pred_region
        _
      $region48: #{_lambda_.1} parent=43 // pred_fallthru
        _
    $region44: #{_lambda_.1} parent=5 // pred_fallthru
      _
    %p2977 = scmp.le.s32.totalorder 2, %s12
    // Predicated region
    $region49: #{_lambda_.1} parent=5 // pred_check
      %p2978 = pneg %p2977
    $region50: #{_lambda_.1} parent=5 // pred_check_branch
      %2980 = sbr.rel (%p2978) target = $region52
    $region51: #{_lambda_.1} parent=5 // pred_region
      %s2981 = ssub.s32 %s12, 2
      // Predicated region
      $region53: #{_lambda_.1} parent=51 // pred_check
        %p2982 = pneg %p172
      $region54: #{_lambda_.1} parent=51 // pred_check_branch
        %2984 = sbr.rel (%p2982) target = $region56
      $region55: #{_lambda_.1} parent=51 // pred_region
        %p2985 = scmp.lt.s32.totalorder %s18, 1
        %s2986 = scalar_select %p2985, %s18, 1
        %s2987 = smul.addr %s2986, 2
        %s2988 = smul.addr %s2987, 8
        %s2989 = scalar_lea.vmem %s6, %s2988
      $region56: #{_lambda_.1} parent=51 // pred_fallthru
        _
    $region52: #{_lambda_.1} parent=5 // pred_fallthru
      _
  $region6: #{_lambda_.1} parent=0 // loop_footer
    %s16 = sadd.s32 1, %s12
  $region7: #{_lambda_.1} parent=0 // loop_footer_branch
    %11 = sbr.rel target = $region3
  $region8: #{_lambda_.1} parent=0 // loop_exit
    _

</llo_original>
